<compile_context>
chip_gen: v7x
topology: tpu7x:2x2x1
jax: 0.10.0
libtpu: 0.0.40
codegen_flags: <defaults>
</compile_context>

<pallas_src>
import functools
import math

import jax
import jax.numpy as jnp
from jax.experimental import pallas as pl
from jax.experimental.pallas import tpu as pltpu

LN_EPS = 1e-5  # PyTorch nn.LayerNorm default

# ---------------------------------------------------------------------------
# Packing layouts
# ---------------------------------------------------------------------------
# Wide weight block (row dim = d_model), concatenated along columns:
#   [ Wqkv(3D) | Wo_self(D) | Wq_cross(D) | Wkv_cross(2D) | Wo_cross(D) | Wff1(F) ]
WIDE_ORDER = ('wqkv', 'wo1', 'wqc', 'wkvc', 'woc', 'w1')


def _vec_layout(d_model, d_ff):
    # Order/widths of the packed (1, 15*D + F) bias / LayerNorm vector.
    return (('bqkv', 3 * d_model), ('bo1', d_model), ('g1', d_model),
            ('be1', d_model), ('bqc', d_model), ('bkvc', 2 * d_model),
            ('boc', d_model), ('g2', d_model), ('be2', d_model),
            ('b1', d_ff), ('b2', d_model), ('g3', d_model), ('be3', d_model))


# ---------------------------------------------------------------------------
# In-kernel helpers (pure jnp, traced inside the Pallas kernel body)
# ---------------------------------------------------------------------------
def _layernorm(h, g, b):
    mu = jnp.mean(h, axis=-1, keepdims=True)
    var = jnp.mean((h - mu) ** 2, axis=-1, keepdims=True)
    return (h - mu) * jax.lax.rsqrt(var + LN_EPS) * g + b


def _split_heads(t, block_b, n_heads, dk):
    # (block_b*S, H*dk) -> (H*block_b, S, dk).  Head slices are lane-aligned
    # (dk is a multiple of 128 in the demo -> full-vreg extracts).
    rows = t.shape[0] // block_b
    t3 = t.reshape(block_b, rows, n_heads * dk)
    return jnp.concatenate([t3[:, :, h * dk:(h + 1) * dk]
                            for h in range(n_heads)], axis=0)


def _merge_heads(ctx, block_b, n_heads, dk):
    # (H*block_b, S, dk) -> (block_b*S, H*dk), inverse of _split_heads.
    rows = ctx.shape[1]
    parts = [ctx[h * block_b:(h + 1) * block_b] for h in range(n_heads)]
    out = jnp.concatenate(parts, axis=-1)            # (block_b, S, H*dk)
    return out.reshape(block_b * rows, n_heads * dk)


def _mha(q, k, v, block_b, n_heads):
    # q: (block_b*Sq, D) f32, k/v: (block_b*Skv, D) f32 -> (block_b*Sq, D) f32.
    # Attention stays separate per batch element; mask=None path only.
    D = q.shape[-1]
    dk = D // n_heads
    scale = 1.0 / math.sqrt(dk)

    qh = _split_heads((q * scale).astype(jnp.bfloat16), block_b, n_heads, dk)
    kh = _split_heads(k.astype(jnp.bfloat16), block_b, n_heads, dk)
    vh = _split_heads(v.astype(jnp.bfloat16), block_b, n_heads, dk)

    # One batched matmul for all (batch, head) pairs; f32 accumulation.
    s = jnp.einsum('nqd,nkd->nqk', qh, kh,
                   preferred_element_type=jnp.float32)      # (B*H, Sq, Skv)
    s = s - jnp.max(s, axis=-1, keepdims=True)
    p = jnp.exp(s)
    p = p * pl.reciprocal(jnp.sum(p, axis=-1, keepdims=True), approx=True)

    ctx = jnp.einsum('nqk,nkd->nqd', p.astype(jnp.bfloat16), vh,
                     preferred_element_type=jnp.float32)    # (B*H, Sq, dk)
    return _merge_heads(ctx, block_b, n_heads, dk)


# ---------------------------------------------------------------------------
# Fused decoder-stack kernel: grid = (batch_blocks, num_layers)
# ---------------------------------------------------------------------------
def decoder_stack_kernel(x_ref, enc_ref, wa_ref, wb_ref, vec_ref,
                         fcw_ref, fcb_ref, o_ref, carry_ref, *,
                         n_heads, block_b):
    l = pl.program_id(1)

    # Layer 0: load the (embedded + positionally encoded) activations into the
    # f32 VMEM carry that persists across the "arbitrary" layer axis.
    @pl.when(l == 0)
    def _():
        carry_ref[...] = x_ref[...].astype(jnp.float32)

    D = x_ref.shape[-1]
    F = wb_ref.shape[0]

    # Static offsets into the packed bias / LayerNorm vector.
    offs = {}
    c = 0
    for name, width in _vec_layout(D, F):
        offs[name] = (c, c + width)
        c += width

    def vec(name):
        a, b = offs[name]
        return vec_ref[:, a:b]                  # (1, width) f32

    def wa(c0, c1):
        return wa_ref[:, c0:c1]                 # (D, c1-c0) bf16

    x = carry_ref[...]                          # (M, D) f32
    x_bf = x.astype(jnp.bfloat16)
    enc_bf = enc_ref[...]                       # (Me, D) bf16

    # ---- self-attention (fused QKV projection) ---------------------------
    qkv = jnp.dot(x_bf, wa(0, 3 * D),
                  preferred_element_type=jnp.float32) + vec('bqkv')
    q, k, v = qkv[:, :D], qkv[:, D:2 * D], qkv[:, 2 * D:]
    ctx = _mha(q, k, v, block_b, n_heads)
    sa = jnp.dot(ctx.astype(jnp.bfloat16), wa(3 * D, 4 * D),
                 preferred_element_type=jnp.float32) + vec('bo1')
    x1 = _layernorm(x + sa, vec('g1'), vec('be1'))
    x1_bf = x1.astype(jnp.bfloat16)

    # ---- cross-attention over encoder memory (fused KV projection) -------
    qc = jnp.dot(x1_bf, wa(4 * D, 5 * D),
                 preferred_element_type=jnp.float32) + vec('bqc')
    kvc = jnp.dot(enc_bf, wa(5 * D, 7 * D),
                  preferred_element_type=jnp.float32) + vec('bkvc')
    ctxc = _mha(qc, kvc[:, :D], kvc[:, D:], block_b, n_heads)
    ca = jnp.dot(ctxc.astype(jnp.bfloat16), wa(7 * D, 8 * D),
                 preferred_element_type=jnp.float32) + vec('boc')
    x2 = _layernorm(x1 + ca, vec('g2'), vec('be2'))
    x2_bf = x2.astype(jnp.bfloat16)

    # ---- feed-forward -----------------------------------------------------
    h1 = jnp.dot(x2_bf, wa(8 * D, 8 * D + F),
                 preferred_element_type=jnp.float32) + vec('b1')
    h1 = jnp.maximum(h1, 0.0)
    h2 = jnp.dot(h1.astype(jnp.bfloat16), wb_ref[...],
                 preferred_element_type=jnp.float32) + vec('b2')
    x3 = _layernorm(x2 + h2, vec('g3'), vec('be3'))

    carry_ref[...] = x3

    # ---- fused fc_out on the final layer ----------------------------------
    @pl.when(l == pl.num_programs(1) - 1)
    def _():
        logits = jnp.dot(x3.astype(jnp.bfloat16), fcw_ref[...],
                         preferred_element_type=jnp.float32) + fcb_ref[...]
        o_ref[...] = logits


# ---------------------------------------------------------------------------
# Wrapper: one pallas_call for the whole decoder
# ---------------------------------------------------------------------------
def transformer_decoder(tgt, enc_out, emb, wa, wb, vec, fc_w, fc_b, *,
                        n_heads, block_b=None):
    """tgt: (B, S) int32, enc_out: (B, Se, D) f32 -> logits (B, S, V) f32."""
    B, S = tgt.shape
    _, Se, D = enc_out.shape
    L, _, WA = wa.shape
    F = wb.shape[1]
    KV = vec.shape[2]
    V = fc_w.shape[1]

    if block_b is None:
        block_b = B          # fold the full batch into the matmul M dimension
    assert B % block_b == 0
    nb = B // block_b        # nb > 1 also feeds v7x's second TensorCore

    # Embedding lookup + positional encoding: plain-JAX glue (a vocab gather
    # is not worth a Pallas kernel at these sizes).
    x = emb[tgt] + positional_encoding(S, D)[None, :, :]
    x = x.reshape(nb, block_b * S, D).astype(jnp.bfloat16)
    enc = enc_out.reshape(nb, block_b * Se, D).astype(jnp.bfloat16)

    kernel = functools.partial(decoder_stack_kernel,
                               n_heads=n_heads, block_b=block_b)
    out = pl.pallas_call(
        kernel,
        out_shape=jax.ShapeDtypeStruct((nb, block_b * S, V), jnp.float32),
        grid=(nb, L),
        in_specs=[
            pl.BlockSpec((None, block_b * S, D), lambda b, l: (b, 0, 0)),   # x
            pl.BlockSpec((None, block_b * Se, D), lambda b, l: (b, 0, 0)),  # enc
            pl.BlockSpec((None, D, WA), lambda b, l: (l, 0, 0)),     # packed wide W
            pl.BlockSpec((None, F, D), lambda b, l: (l, 0, 0)),      # W_ff2
            pl.BlockSpec((None, 1, KV), lambda b, l: (l, 0, 0)),     # biases / LN
            pl.BlockSpec((D, V), lambda b, l: (0, 0)),               # fc_out W
            pl.BlockSpec((1, V), lambda b, l: (0, 0)),               # fc_out b
        ],
        out_specs=pl.BlockSpec((None, block_b * S, V), lambda b, l: (b, 0, 0)),
        scratch_shapes=[pltpu.VMEM((block_b * S, D), jnp.float32)],
        compiler_params=pltpu.CompilerParams(
            dimension_semantics=("parallel", "arbitrary")),
    )(x, enc, wa, wb, vec, fc_w, fc_b)
    return out.reshape(B, S, V)


# ---------------------------------------------------------------------------
# Params: init, packing, sinusoidal positional encoding
# ---------------------------------------------------------------------------
def positional_encoding(seq_len, d_model):
    position = jnp.arange(seq_len, dtype=jnp.float32)[:, None]
    div_term = jnp.exp(jnp.arange(0, d_model, 2, dtype=jnp.float32)
                       * (-math.log(10000.0) / d_model))
    pe = jnp.zeros((seq_len, d_model), jnp.float32)
    pe = pe.at[:, 0::2].set(jnp.sin(position * div_term))
    pe = pe.at[:, 1::2].set(jnp.cos(position * div_term))
    return pe


def init_params(key, vocab_size, d_model, d_ff, num_layers):
    keys = iter(jax.random.split(key, 14 * num_layers + 4))

    def dense(fan_in, shape):
        w = jax.random.normal(next(keys), shape, jnp.float32) / math.sqrt(fan_in)
        return w.astype(jnp.bfloat16)           # bf16 MXU operands

    def bias(width):
        return jax.random.normal(next(keys), (1, width), jnp.float32) * 0.02

    emb = jax.random.normal(next(keys), (vocab_size, d_model), jnp.float32) * 0.02

    layers = []
    for _ in range(num_layers):
        layers.append(dict(
            wqkv=dense(d_model, (d_model, 3 * d_model)), bqkv=bias(3 * d_model),
            wo1=dense(d_model, (d_model, d_model)), bo1=bias(d_model),
            g1=jnp.ones((1, d_model), jnp.float32),
            be1=jnp.zeros((1, d_model), jnp.float32),
            wqc=dense(d_model, (d_model, d_model)), bqc=bias(d_model),
            wkvc=dense(d_model, (d_model, 2 * d_model)), bkvc=bias(2 * d_model),
            woc=dense(d_model, (d_model, d_model)), boc=bias(d_model),
            g2=jnp.ones((1, d_model), jnp.float32),
            be2=jnp.zeros((1, d_model), jnp.float32),
            w1=dense(d_model, (d_model, d_ff)), b1=bias(d_ff),
            w2=dense(d_ff, (d_ff, d_model)), b2=bias(d_model),
            g3=jnp.ones((1, d_model), jnp.float32),
            be3=jnp.zeros((1, d_model), jnp.float32),
        ))

    fc_w = dense(d_model, (d_model, vocab_size))
    fc_b = bias(vocab_size)
    return emb, layers, fc_w, fc_b


def pack_params(layers, d_model, d_ff):
    wa = jnp.stack([jnp.concatenate([p[k] for k in WIDE_ORDER], axis=1)
                    for p in layers], axis=0)                 # (L, D, 8D+F) bf16
    wb = jnp.stack([p['w2'] for p in layers], axis=0)         # (L, F, D) bf16
    vec = jnp.stack([jnp.concatenate(
        [p[name] for name, _ in _vec_layout(d_model, d_ff)], axis=1)
        for p in layers], axis=0)                             # (L, 1, 15D+F) f32
    return wa, wb, vec


# ---------------------------------------------------------------------------
# Plain-JAX reference (same bf16-operand / f32-accumulate recipe, un-packed
# params) used as an in-script sanity check of the fused kernel.
# ---------------------------------------------------------------------------
def reference_forward(tgt, enc_out, emb, layers, fc_w, fc_b, n_heads):
    B, S = tgt.shape
    D = emb.shape[1]
    H = n_heads
    dk = D // H

    def mm(a, w, b):
        return jnp.dot(a.astype(jnp.bfloat16), w,
                       preferred_element_type=jnp.float32) + b

    def ln(h, g, b):
        mu = jnp.mean(h, axis=-1, keepdims=True)
        var = jnp.mean((h - mu) ** 2, axis=-1, keepdims=True)
        return (h - mu) * jax.lax.rsqrt(var + LN_EPS) * g + b

    def mha(q_in, kv_in, wq, bq, wk, bk, wv, bv, wo, bo):
        q, k, v = mm(q_in, wq, bq), mm(kv_in, wk, bk), mm(kv_in, wv, bv)
        Sq, Skv = q.shape[1], k.shape[1]
        qh = q.reshape(B, Sq, H, dk).transpose(0, 2, 1, 3)
        kh = k.reshape(B, Skv, H, dk).transpose(0, 2, 1, 3)
        vh = v.reshape(B, Skv, H, dk).transpose(0, 2, 1, 3)
        s = jnp.einsum('bhqd,bhkd->bhqk', qh.astype(jnp.bfloat16),
                       kh.astype(jnp.bfloat16),
                       preferred_element_type=jnp.float32) / math.sqrt(dk)
        p = jax.nn.softmax(s, axis=-1)
        ctx = jnp.einsum('bhqk,bhkd->bhqd', p.astype(jnp.bfloat16),
                         vh.astype(jnp.bfloat16),
                         preferred_element_type=jnp.float32)
        ctx = ctx.transpose(0, 2, 1, 3).reshape(B, Sq, D)
        return mm(ctx, wo, bo)

    x = (emb[tgt] + positional_encoding(S, D)[None, :, :]).astype(jnp.bfloat16)
    x = x.astype(jnp.float32)
    enc = enc_out.astype(jnp.bfloat16)
    for p in layers:
        wq, wk, wv = p['wqkv'][:, :D], p['wqkv'][:, D:2 * D], p['wqkv'][:, 2 * D:]
        bq, bk, bv = p['bqkv'][:, :D], p['bqkv'][:, D:2 * D], p['bqkv'][:, 2 * D:]
        sa = mha(x, x, wq, bq, wk, bk, wv, bv, p['wo1'], p['bo1'])
        x = ln(x + sa, p['g1'], p['be1'])
        wkx, wvx = p['wkvc'][:, :D], p['wkvc'][:, D:]
        bkx, bvx = p['bkvc'][:, :D], p['bkvc'][:, D:]
        ca = mha(x, enc, p['wqc'], p['bqc'], wkx, bkx, wvx, bvx,
                 p['woc'], p['boc'])
        x = ln(x + ca, p['g2'], p['be2'])
        h1 = jnp.maximum(mm(x, p['w1'], p['b1']), 0.0)
        h2 = mm(h1, p['w2'], p['b2'])
        x = ln(x + h2, p['g3'], p['be3'])
    return mm(x, fc_w, fc_b)


if __name__ == "__main__":
    vocab_size = 256     # lane-dense (multiple of 128)
    d_model = 256        # lane-dense
    n_heads = 2          # d_k = 128 -> fully lane-aligned head slices
    d_ff = 512           # lane-dense
    num_layers = 2
    batch, tgt_seq, src_seq = 2, 8, 8

    key = jax.random.PRNGKey(0)
    k_param, k_tgt, k_enc = jax.random.split(key, 3)
    emb, layers, fc_w, fc_b = init_params(k_param, vocab_size, d_model, d_ff,
                                          num_layers)
    wa, wb, vec = pack_params(layers, d_model, d_ff)

    tgt = jax.random.randint(k_tgt, (batch, tgt_seq), 0, vocab_size,
                             dtype=jnp.int32)
    enc_out = jax.random.normal(k_enc, (batch, src_seq, d_model), jnp.float32)

    logits = transformer_decoder(tgt, enc_out, emb, wa, wb, vec, fc_w, fc_b,
                                 n_heads=n_heads)
    logits = jax.block_until_ready(logits)
    assert logits.shape == (batch, tgt_seq, vocab_size)

    # Sanity check against an un-fused, un-packed plain-JAX reference.
    ref = reference_forward(tgt, enc_out, emb, layers, fc_w, fc_b, n_heads)
    max_err = float(jnp.max(jnp.abs(logits - ref)))
    assert max_err < 0.15, f"kernel/reference mismatch: max_err={max_err}"
    print("KERNEL_OK")
</pallas_src>

<mosaic_0001>
module attributes {stable_mosaic.version = 11 : i64} {
  func.func @decoder_stack_kernel(%arg0: i32, %arg1: i32, %arg2: memref<1x16x256xbf16, #tpu.memory_space<vmem>>, %arg3: memref<1x16x256xbf16, #tpu.memory_space<vmem>>, %arg4: memref<1x256x2560xbf16, #tpu.memory_space<vmem>>, %arg5: memref<1x512x256xbf16, #tpu.memory_space<vmem>>, %arg6: memref<1x1x4352xf32, #tpu.memory_space<vmem>>, %arg7: memref<256x256xbf16, #tpu.memory_space<vmem>>, %arg8: memref<1x256xf32, #tpu.memory_space<vmem>>, %arg9: memref<1x16x256xf32, #tpu.memory_space<vmem>>, %arg10: memref<16x256xf32, #tpu.memory_space<vmem>>) attributes {dimension_semantics = [#tpu.dimension_semantics<parallel>, #tpu.dimension_semantics<arbitrary>], iteration_bounds = array<i64: 1, 2>, scalar_prefetch = 0 : i64, scratch_operands = 1 : i64, tpu.core_type = #tpu.core_type<tc>, window_params = [{transform_indices = @transform_0, window_bounds = array<i64: 1, 16, 256>}, {transform_indices = @transform_1, window_bounds = array<i64: 1, 16, 256>}, {transform_indices = @transform_2, window_bounds = array<i64: 1, 256, 2560>}, {transform_indices = @transform_3, window_bounds = array<i64: 1, 512, 256>}, {transform_indices = @transform_4, window_bounds = array<i64: 1, 1, 4352>}, {pipeline_mode = #tpu.pipeline_mode<synchronous>, transform_indices = @transform_5, window_bounds = array<i64: 256, 256>}, {pipeline_mode = #tpu.pipeline_mode<synchronous>, transform_indices = @transform_6, window_bounds = array<i64: 1, 256>}, {transform_indices = @transform_7, window_bounds = array<i64: 1, 16, 256>}]} {
    %c0_i32 = arith.constant 0 : i32
    %0 = arith.cmpi eq, %arg1, %c0_i32 : i32
    %1 = arith.extui %0 : i1 to i32
    %c0_i32_0 = arith.constant 0 : i32
    %2 = arith.cmpi ne, %1, %c0_i32_0 : i32
    scf.if %2 {
      %c0_87 = arith.constant 0 : index
      %c0_88 = arith.constant 0 : index
      %c0_89 = arith.constant 0 : index
      %221 = vector.load %arg2[%c0_87, %c0_88, %c0_89] : memref<1x16x256xbf16, #tpu.memory_space<vmem>>, vector<1x16x256xbf16>
      %222 = vector.shape_cast %221 : vector<1x16x256xbf16> to vector<16x256xbf16>
      %223 = arith.extf %222 : vector<16x256xbf16> to vector<16x256xf32>
      %c0_90 = arith.constant 0 : index
      %c0_91 = arith.constant 0 : index
      %224 = vector.load %arg10[%c0_90, %c0_91] : memref<16x256xf32, #tpu.memory_space<vmem>>, vector<16x256xf32>
      tpu.vector_store %arg10[%c0_90, %c0_91], %223 {strides = array<i32>} : memref<16x256xf32, #tpu.memory_space<vmem>>, vector<16x256xf32>,
    } else {
    }
    %c0 = arith.constant 0 : index
    %c0_1 = arith.constant 0 : index
    %3 = vector.load %arg10[%c0, %c0_1] : memref<16x256xf32, #tpu.memory_space<vmem>>, vector<16x256xf32>
    %4 = arith.truncf %3 : vector<16x256xf32> to vector<16x256xbf16>
    %c0_2 = arith.constant 0 : index
    %c0_3 = arith.constant 0 : index
    %c0_4 = arith.constant 0 : index
    %5 = vector.load %arg3[%c0_2, %c0_3, %c0_4] : memref<1x16x256xbf16, #tpu.memory_space<vmem>>, vector<1x16x256xbf16>
    %6 = vector.shape_cast %5 : vector<1x16x256xbf16> to vector<16x256xbf16>
    %c0_5 = arith.constant 0 : index
    %c0_6 = arith.constant 0 : index
    %c0_7 = arith.constant 0 : index
    %7 = vector.load %arg4[%c0_5, %c0_6, %c0_7] : memref<1x256x2560xbf16, #tpu.memory_space<vmem>>, vector<1x256x768xbf16>
    %8 = vector.shape_cast %7 : vector<1x256x768xbf16> to vector<256x768xbf16>
    %cst = arith.constant dense<0.000000e+00> : vector<16x768xf32>
    %9 = tpu.matmul %4, %8, %cst {dimension_numbers = #tpu.dot_dimension_numbers<[1], [0], [0], [1], [0, 0, 1, 1], [], []>} : vector<16x256xbf16>, vector<256x768xbf16>, vector<16x768xf32> -> vector<16x768xf32>
    %c0_8 = arith.constant 0 : index
    %c0_9 = arith.constant 0 : index
    %c0_10 = arith.constant 0 : index
    %10 = vector.load %arg6[%c0_8, %c0_9, %c0_10] : memref<1x1x4352xf32, #tpu.memory_space<vmem>>, vector<1x1x768xf32>
    %11 = vector.shape_cast %10 : vector<1x1x768xf32> to vector<1x768xf32>
    %12 = vector.broadcast %11 : vector<1x768xf32> to vector<16x768xf32>
    %13 = arith.addf %9, %12 : vector<16x768xf32>
    %14 = vector.extract_strided_slice %13 {offsets = [0, 0], sizes = [16, 256], strides = [1, 1]} : vector<16x768xf32> to vector<16x256xf32>
    %15 = vector.extract_strided_slice %13 {offsets = [0, 256], sizes = [16, 256], strides = [1, 1]} : vector<16x768xf32> to vector<16x256xf32>
    %16 = vector.extract_strided_slice %13 {offsets = [0, 512], sizes = [16, 256], strides = [1, 1]} : vector<16x768xf32> to vector<16x256xf32>
    %cst_11 = arith.constant 0.0883883461 : f32
    %17 = vector.broadcast %cst_11 : f32 to vector<16x256xf32>
    %18 = arith.mulf %14, %17 : vector<16x256xf32>
    %19 = arith.truncf %18 : vector<16x256xf32> to vector<16x256xbf16>
    %20 = vector.shape_cast %19 : vector<16x256xbf16> to vector<2x8x256xbf16>
    %21 = vector.extract_strided_slice %20 {offsets = [0, 0, 0], sizes = [2, 8, 128], strides = [1, 1, 1]} : vector<2x8x256xbf16> to vector<2x8x128xbf16>
    %22 = vector.extract_strided_slice %20 {offsets = [0, 0, 128], sizes = [2, 8, 128], strides = [1, 1, 1]} : vector<2x8x256xbf16> to vector<2x8x128xbf16>
    %23 = tpu.concatenate %21, %22 in 0 : vector<2x8x128xbf16>, vector<2x8x128xbf16> -> vector<4x8x128xbf16>
    %24 = arith.truncf %15 : vector<16x256xf32> to vector<16x256xbf16>
    %25 = vector.shape_cast %24 : vector<16x256xbf16> to vector<2x8x256xbf16>
    %26 = vector.extract_strided_slice %25 {offsets = [0, 0, 0], sizes = [2, 8, 128], strides = [1, 1, 1]} : vector<2x8x256xbf16> to vector<2x8x128xbf16>
    %27 = vector.extract_strided_slice %25 {offsets = [0, 0, 128], sizes = [2, 8, 128], strides = [1, 1, 1]} : vector<2x8x256xbf16> to vector<2x8x128xbf16>
    %28 = tpu.concatenate %26, %27 in 0 : vector<2x8x128xbf16>, vector<2x8x128xbf16> -> vector<4x8x128xbf16>
    %29 = arith.truncf %16 : vector<16x256xf32> to vector<16x256xbf16>
    %30 = vector.shape_cast %29 : vector<16x256xbf16> to vector<2x8x256xbf16>
    %31 = vector.extract_strided_slice %30 {offsets = [0, 0, 0], sizes = [2, 8, 128], strides = [1, 1, 1]} : vector<2x8x256xbf16> to vector<2x8x128xbf16>
    %32 = vector.extract_strided_slice %30 {offsets = [0, 0, 128], sizes = [2, 8, 128], strides = [1, 1, 1]} : vector<2x8x256xbf16> to vector<2x8x128xbf16>
    %33 = tpu.concatenate %31, %32 in 0 : vector<2x8x128xbf16>, vector<2x8x128xbf16> -> vector<4x8x128xbf16>
    "tpu.trace_start"() <{level = 10 : i32, message = "nqd,nkd->nqk"}> : () -> ()
    %cst_12 = arith.constant dense<0.000000e+00> : vector<4x8x8xf32>
    %34 = tpu.matmul %23, %28, %cst_12 {dimension_numbers = #tpu.dot_dimension_numbers<[2], [2], [1], [1], [0, 0, 0, 1, 1, 1], [0], [0]>} : vector<4x8x128xbf16>, vector<4x8x128xbf16>, vector<4x8x8xf32> -> vector<4x8x8xf32>
    "tpu.trace_stop"() : () -> ()
    %cst_13 = arith.constant dense<0xFF800000> : vector<4x8xf32>
    %35 = vector.multi_reduction <maximumf>, %34, %cst_13 [2] : vector<4x8x8xf32> to vector<4x8xf32>
    %36 = vector.shape_cast %35 : vector<4x8xf32> to vector<4x8x1xf32>
    %37 = vector.broadcast %36 : vector<4x8x1xf32> to vector<4x8x8xf32>
    %38 = arith.subf %34, %37 : vector<4x8x8xf32>
    %39 = math.exp %38 : vector<4x8x8xf32>
    %cst_14 = arith.constant dense<0.000000e+00> : vector<4x8xf32>
    %40 = vector.multi_reduction <add>, %39, %cst_14 [2] : vector<4x8x8xf32> to vector<4x8xf32>
    %41 = vector.shape_cast %40 : vector<4x8xf32> to vector<4x8x1xf32>
    %42 = tpu.reciprocal %41 {approx = true} : vector<4x8x1xf32> -> vector<4x8x1xf32>
    %43 = vector.broadcast %42 : vector<4x8x1xf32> to vector<4x8x8xf32>
    %44 = arith.mulf %39, %43 : vector<4x8x8xf32>
    %45 = arith.truncf %44 : vector<4x8x8xf32> to vector<4x8x8xbf16>
    "tpu.trace_start"() <{level = 10 : i32, message = "nqk,nkd->nqd"}> : () -> ()
    %cst_15 = arith.constant dense<0.000000e+00> : vector<4x8x128xf32>
    %46 = tpu.matmul %45, %33, %cst_15 {dimension_numbers = #tpu.dot_dimension_numbers<[2], [1], [1], [2], [0, 0, 0, 1, 1, 2], [0], [0]>} : vector<4x8x8xbf16>, vector<4x8x128xbf16>, vector<4x8x128xf32> -> vector<4x8x128xf32>
    "tpu.trace_stop"() : () -> ()
    %47 = vector.extract_strided_slice %46 {offsets = [0, 0, 0], sizes = [2, 8, 128], strides = [1, 1, 1]} : vector<4x8x128xf32> to vector<2x8x128xf32>
    %48 = vector.extract_strided_slice %46 {offsets = [2, 0, 0], sizes = [2, 8, 128], strides = [1, 1, 1]} : vector<4x8x128xf32> to vector<2x8x128xf32>
    %49 = tpu.concatenate %47, %48 in 2 : vector<2x8x128xf32>, vector<2x8x128xf32> -> vector<2x8x256xf32>
    %50 = vector.shape_cast %49 : vector<2x8x256xf32> to vector<16x256xf32>
    %51 = arith.truncf %50 : vector<16x256xf32> to vector<16x256xbf16>
    %c0_16 = arith.constant 0 : index
    %c0_17 = arith.constant 0 : index
    %c768 = arith.constant 768 : index
    %52 = vector.load %arg4[%c0_16, %c0_17, %c768] : memref<1x256x2560xbf16, #tpu.memory_space<vmem>>, vector<1x256x256xbf16>
    %53 = vector.shape_cast %52 : vector<1x256x256xbf16> to vector<256x256xbf16>
    %cst_18 = arith.constant dense<0.000000e+00> : vector<16x256xf32>
    %54 = tpu.matmul %51, %53, %cst_18 {dimension_numbers = #tpu.dot_dimension_numbers<[1], [0], [0], [1], [0, 0, 1, 1], [], []>} : vector<16x256xbf16>, vector<256x256xbf16>, vector<16x256xf32> -> vector<16x256xf32>
    %c0_19 = arith.constant 0 : index
    %c0_20 = arith.constant 0 : index
    %c768_21 = arith.constant 768 : index
    %55 = vector.load %arg6[%c0_19, %c0_20, %c768_21] : memref<1x1x4352xf32, #tpu.memory_space<vmem>>, vector<1x1x256xf32>
    %56 = vector.shape_cast %55 : vector<1x1x256xf32> to vector<1x256xf32>
    %57 = vector.broadcast %56 : vector<1x256xf32> to vector<16x256xf32>
    %58 = arith.addf %54, %57 : vector<16x256xf32>
    %59 = arith.addf %3, %58 : vector<16x256xf32>
    %c0_22 = arith.constant 0 : index
    %c0_23 = arith.constant 0 : index
    %c1024 = arith.constant 1024 : index
    %60 = vector.load %arg6[%c0_22, %c0_23, %c1024] : memref<1x1x4352xf32, #tpu.memory_space<vmem>>, vector<1x1x256xf32>
    %61 = vector.shape_cast %60 : vector<1x1x256xf32> to vector<1x256xf32>
    %c0_24 = arith.constant 0 : index
    %c0_25 = arith.constant 0 : index
    %c1280 = arith.constant 1280 : index
    %62 = vector.load %arg6[%c0_24, %c0_25, %c1280] : memref<1x1x4352xf32, #tpu.memory_space<vmem>>, vector<1x1x256xf32>
    %63 = vector.shape_cast %62 : vector<1x1x256xf32> to vector<1x256xf32>
    %cst_26 = arith.constant dense<0.000000e+00> : vector<16xf32>
    %64 = vector.multi_reduction <add>, %59, %cst_26 [1] : vector<16x256xf32> to vector<16xf32>
    %65 = vector.shape_cast %64 : vector<16xf32> to vector<16x1xf32>
    %cst_27 = arith.constant 2.560000e+02 : f32
    %66 = vector.broadcast %cst_27 : f32 to vector<16x1xf32>
    %67 = arith.divf %65, %66 : vector<16x1xf32>
    %68 = vector.broadcast %67 : vector<16x1xf32> to vector<16x256xf32>
    %69 = arith.subf %59, %68 : vector<16x256xf32>
    %70 = arith.mulf %69, %69 : vector<16x256xf32>
    %cst_28 = arith.constant dense<0.000000e+00> : vector<16xf32>
    %71 = vector.multi_reduction <add>, %70, %cst_28 [1] : vector<16x256xf32> to vector<16xf32>
    %72 = vector.shape_cast %71 : vector<16xf32> to vector<16x1xf32>
    %cst_29 = arith.constant 2.560000e+02 : f32
    %73 = vector.broadcast %cst_29 : f32 to vector<16x1xf32>
    %74 = arith.divf %72, %73 : vector<16x1xf32>
    %75 = vector.broadcast %67 : vector<16x1xf32> to vector<16x256xf32>
    %76 = arith.subf %59, %75 : vector<16x256xf32>
    %cst_30 = arith.constant 9.99999974E-6 : f32
    %77 = vector.broadcast %cst_30 : f32 to vector<16x1xf32>
    %78 = arith.addf %74, %77 : vector<16x1xf32>
    %79 = math.rsqrt %78 : vector<16x1xf32>
    %80 = vector.broadcast %79 : vector<16x1xf32> to vector<16x256xf32>
    %81 = arith.mulf %76, %80 : vector<16x256xf32>
    %82 = vector.broadcast %61 : vector<1x256xf32> to vector<16x256xf32>
    %83 = arith.mulf %81, %82 : vector<16x256xf32>
    %84 = vector.broadcast %63 : vector<1x256xf32> to vector<16x256xf32>
    %85 = arith.addf %83, %84 : vector<16x256xf32>
    %86 = arith.truncf %85 : vector<16x256xf32> to vector<16x256xbf16>
    %c0_31 = arith.constant 0 : index
    %c0_32 = arith.constant 0 : index
    %c1024_33 = arith.constant 1024 : index
    %87 = vector.load %arg4[%c0_31, %c0_32, %c1024_33] : memref<1x256x2560xbf16, #tpu.memory_space<vmem>>, vector<1x256x256xbf16>
    %88 = vector.shape_cast %87 : vector<1x256x256xbf16> to vector<256x256xbf16>
    %cst_34 = arith.constant dense<0.000000e+00> : vector<16x256xf32>
    %89 = tpu.matmul %86, %88, %cst_34 {dimension_numbers = #tpu.dot_dimension_numbers<[1], [0], [0], [1], [0, 0, 1, 1], [], []>} : vector<16x256xbf16>, vector<256x256xbf16>, vector<16x256xf32> -> vector<16x256xf32>
    %c0_35 = arith.constant 0 : index
    %c0_36 = arith.constant 0 : index
    %c1536 = arith.constant 1536 : index
    %90 = vector.load %arg6[%c0_35, %c0_36, %c1536] : memref<1x1x4352xf32, #tpu.memory_space<vmem>>, vector<1x1x256xf32>
    %91 = vector.shape_cast %90 : vector<1x1x256xf32> to vector<1x256xf32>
    %92 = vector.broadcast %91 : vector<1x256xf32> to vector<16x256xf32>
    %93 = arith.addf %89, %92 : vector<16x256xf32>
    %c0_37 = arith.constant 0 : index
    %c0_38 = arith.constant 0 : index
    %c1280_39 = arith.constant 1280 : index
    %94 = vector.load %arg4[%c0_37, %c0_38, %c1280_39] : memref<1x256x2560xbf16, #tpu.memory_space<vmem>>, vector<1x256x512xbf16>
    %95 = vector.shape_cast %94 : vector<1x256x512xbf16> to vector<256x512xbf16>
    %cst_40 = arith.constant dense<0.000000e+00> : vector<16x512xf32>
    %96 = tpu.matmul %6, %95, %cst_40 {dimension_numbers = #tpu.dot_dimension_numbers<[1], [0], [0], [1], [0, 0, 1, 1], [], []>} : vector<16x256xbf16>, vector<256x512xbf16>, vector<16x512xf32> -> vector<16x512xf32>
    %c0_41 = arith.constant 0 : index
    %c0_42 = arith.constant 0 : index
    %c1792 = arith.constant 1792 : index
    %97 = vector.load %arg6[%c0_41, %c0_42, %c1792] : memref<1x1x4352xf32, #tpu.memory_space<vmem>>, vector<1x1x512xf32>
    %98 = vector.shape_cast %97 : vector<1x1x512xf32> to vector<1x512xf32>
    %99 = vector.broadcast %98 : vector<1x512xf32> to vector<16x512xf32>
    %100 = arith.addf %96, %99 : vector<16x512xf32>
    %101 = vector.extract_strided_slice %100 {offsets = [0, 0], sizes = [16, 256], strides = [1, 1]} : vector<16x512xf32> to vector<16x256xf32>
    %102 = vector.extract_strided_slice %100 {offsets = [0, 256], sizes = [16, 256], strides = [1, 1]} : vector<16x512xf32> to vector<16x256xf32>
    %cst_43 = arith.constant 0.0883883461 : f32
    %103 = vector.broadcast %cst_43 : f32 to vector<16x256xf32>
    %104 = arith.mulf %93, %103 : vector<16x256xf32>
    %105 = arith.truncf %104 : vector<16x256xf32> to vector<16x256xbf16>
    %106 = vector.shape_cast %105 : vector<16x256xbf16> to vector<2x8x256xbf16>
    %107 = vector.extract_strided_slice %106 {offsets = [0, 0, 0], sizes = [2, 8, 128], strides = [1, 1, 1]} : vector<2x8x256xbf16> to vector<2x8x128xbf16>
    %108 = vector.extract_strided_slice %106 {offsets = [0, 0, 128], sizes = [2, 8, 128], strides = [1, 1, 1]} : vector<2x8x256xbf16> to vector<2x8x128xbf16>
    %109 = tpu.concatenate %107, %108 in 0 : vector<2x8x128xbf16>, vector<2x8x128xbf16> -> vector<4x8x128xbf16>
    %110 = arith.truncf %101 : vector<16x256xf32> to vector<16x256xbf16>
    %111 = vector.shape_cast %110 : vector<16x256xbf16> to vector<2x8x256xbf16>
    %112 = vector.extract_strided_slice %111 {offsets = [0, 0, 0], sizes = [2, 8, 128], strides = [1, 1, 1]} : vector<2x8x256xbf16> to vector<2x8x128xbf16>
    %113 = vector.extract_strided_slice %111 {offsets = [0, 0, 128], sizes = [2, 8, 128], strides = [1, 1, 1]} : vector<2x8x256xbf16> to vector<2x8x128xbf16>
    %114 = tpu.concatenate %112, %113 in 0 : vector<2x8x128xbf16>, vector<2x8x128xbf16> -> vector<4x8x128xbf16>
    %115 = arith.truncf %102 : vector<16x256xf32> to vector<16x256xbf16>
    %116 = vector.shape_cast %115 : vector<16x256xbf16> to vector<2x8x256xbf16>
    %117 = vector.extract_strided_slice %116 {offsets = [0, 0, 0], sizes = [2, 8, 128], strides = [1, 1, 1]} : vector<2x8x256xbf16> to vector<2x8x128xbf16>
    %118 = vector.extract_strided_slice %116 {offsets = [0, 0, 128], sizes = [2, 8, 128], strides = [1, 1, 1]} : vector<2x8x256xbf16> to vector<2x8x128xbf16>
    %119 = tpu.concatenate %117, %118 in 0 : vector<2x8x128xbf16>, vector<2x8x128xbf16> -> vector<4x8x128xbf16>
    "tpu.trace_start"() <{level = 10 : i32, message = "nqd,nkd->nqk"}> : () -> ()
    %cst_44 = arith.constant dense<0.000000e+00> : vector<4x8x8xf32>
    %120 = tpu.matmul %109, %114, %cst_44 {dimension_numbers = #tpu.dot_dimension_numbers<[2], [2], [1], [1], [0, 0, 0, 1, 1, 1], [0], [0]>} : vector<4x8x128xbf16>, vector<4x8x128xbf16>, vector<4x8x8xf32> -> vector<4x8x8xf32>
    "tpu.trace_stop"() : () -> ()
    %cst_45 = arith.constant dense<0xFF800000> : vector<4x8xf32>
    %121 = vector.multi_reduction <maximumf>, %120, %cst_45 [2] : vector<4x8x8xf32> to vector<4x8xf32>
    %122 = vector.shape_cast %121 : vector<4x8xf32> to vector<4x8x1xf32>
    %123 = vector.broadcast %122 : vector<4x8x1xf32> to vector<4x8x8xf32>
    %124 = arith.subf %120, %123 : vector<4x8x8xf32>
    %125 = math.exp %124 : vector<4x8x8xf32>
    %cst_46 = arith.constant dense<0.000000e+00> : vector<4x8xf32>
    %126 = vector.multi_reduction <add>, %125, %cst_46 [2] : vector<4x8x8xf32> to vector<4x8xf32>
    %127 = vector.shape_cast %126 : vector<4x8xf32> to vector<4x8x1xf32>
    %128 = tpu.reciprocal %127 {approx = true} : vector<4x8x1xf32> -> vector<4x8x1xf32>
    %129 = vector.broadcast %128 : vector<4x8x1xf32> to vector<4x8x8xf32>
    %130 = arith.mulf %125, %129 : vector<4x8x8xf32>
    %131 = arith.truncf %130 : vector<4x8x8xf32> to vector<4x8x8xbf16>
    "tpu.trace_start"() <{level = 10 : i32, message = "nqk,nkd->nqd"}> : () -> ()
    %cst_47 = arith.constant dense<0.000000e+00> : vector<4x8x128xf32>
    %132 = tpu.matmul %131, %119, %cst_47 {dimension_numbers = #tpu.dot_dimension_numbers<[2], [1], [1], [2], [0, 0, 0, 1, 1, 2], [0], [0]>} : vector<4x8x8xbf16>, vector<4x8x128xbf16>, vector<4x8x128xf32> -> vector<4x8x128xf32>
    "tpu.trace_stop"() : () -> ()
    %133 = vector.extract_strided_slice %132 {offsets = [0, 0, 0], sizes = [2, 8, 128], strides = [1, 1, 1]} : vector<4x8x128xf32> to vector<2x8x128xf32>
    %134 = vector.extract_strided_slice %132 {offsets = [2, 0, 0], sizes = [2, 8, 128], strides = [1, 1, 1]} : vector<4x8x128xf32> to vector<2x8x128xf32>
    %135 = tpu.concatenate %133, %134 in 2 : vector<2x8x128xf32>, vector<2x8x128xf32> -> vector<2x8x256xf32>
    %136 = vector.shape_cast %135 : vector<2x8x256xf32> to vector<16x256xf32>
    %137 = arith.truncf %136 : vector<16x256xf32> to vector<16x256xbf16>
    %c0_48 = arith.constant 0 : index
    %c0_49 = arith.constant 0 : index
    %c1792_50 = arith.constant 1792 : index
    %138 = vector.load %arg4[%c0_48, %c0_49, %c1792_50] : memref<1x256x2560xbf16, #tpu.memory_space<vmem>>, vector<1x256x256xbf16>
    %139 = vector.shape_cast %138 : vector<1x256x256xbf16> to vector<256x256xbf16>
    %cst_51 = arith.constant dense<0.000000e+00> : vector<16x256xf32>
    %140 = tpu.matmul %137, %139, %cst_51 {dimension_numbers = #tpu.dot_dimension_numbers<[1], [0], [0], [1], [0, 0, 1, 1], [], []>} : vector<16x256xbf16>, vector<256x256xbf16>, vector<16x256xf32> -> vector<16x256xf32>
    %c0_52 = arith.constant 0 : index
    %c0_53 = arith.constant 0 : index
    %c2304 = arith.constant 2304 : index
    %141 = vector.load %arg6[%c0_52, %c0_53, %c2304] : memref<1x1x4352xf32, #tpu.memory_space<vmem>>, vector<1x1x256xf32>
    %142 = vector.shape_cast %141 : vector<1x1x256xf32> to vector<1x256xf32>
    %143 = vector.broadcast %142 : vector<1x256xf32> to vector<16x256xf32>
    %144 = arith.addf %140, %143 : vector<16x256xf32>
    %145 = arith.addf %85, %144 : vector<16x256xf32>
    %c0_54 = arith.constant 0 : index
    %c0_55 = arith.constant 0 : index
    %c2560 = arith.constant 2560 : index
    %146 = vector.load %arg6[%c0_54, %c0_55, %c2560] : memref<1x1x4352xf32, #tpu.memory_space<vmem>>, vector<1x1x256xf32>
    %147 = vector.shape_cast %146 : vector<1x1x256xf32> to vector<1x256xf32>
    %c0_56 = arith.constant 0 : index
    %c0_57 = arith.constant 0 : index
    %c2816 = arith.constant 2816 : index
    %148 = vector.load %arg6[%c0_56, %c0_57, %c2816] : memref<1x1x4352xf32, #tpu.memory_space<vmem>>, vector<1x1x256xf32>
    %149 = vector.shape_cast %148 : vector<1x1x256xf32> to vector<1x256xf32>
    %cst_58 = arith.constant dense<0.000000e+00> : vector<16xf32>
    %150 = vector.multi_reduction <add>, %145, %cst_58 [1] : vector<16x256xf32> to vector<16xf32>
    %151 = vector.shape_cast %150 : vector<16xf32> to vector<16x1xf32>
    %cst_59 = arith.constant 2.560000e+02 : f32
    %152 = vector.broadcast %cst_59 : f32 to vector<16x1xf32>
    %153 = arith.divf %151, %152 : vector<16x1xf32>
    %154 = vector.broadcast %153 : vector<16x1xf32> to vector<16x256xf32>
    %155 = arith.subf %145, %154 : vector<16x256xf32>
    %156 = arith.mulf %155, %155 : vector<16x256xf32>
    %cst_60 = arith.constant dense<0.000000e+00> : vector<16xf32>
    %157 = vector.multi_reduction <add>, %156, %cst_60 [1] : vector<16x256xf32> to vector<16xf32>
    %158 = vector.shape_cast %157 : vector<16xf32> to vector<16x1xf32>
    %cst_61 = arith.constant 2.560000e+02 : f32
    %159 = vector.broadcast %cst_61 : f32 to vector<16x1xf32>
    %160 = arith.divf %158, %159 : vector<16x1xf32>
    %161 = vector.broadcast %153 : vector<16x1xf32> to vector<16x256xf32>
    %162 = arith.subf %145, %161 : vector<16x256xf32>
    %cst_62 = arith.constant 9.99999974E-6 : f32
    %163 = vector.broadcast %cst_62 : f32 to vector<16x1xf32>
    %164 = arith.addf %160, %163 : vector<16x1xf32>
    %165 = math.rsqrt %164 : vector<16x1xf32>
    %166 = vector.broadcast %165 : vector<16x1xf32> to vector<16x256xf32>
    %167 = arith.mulf %162, %166 : vector<16x256xf32>
    %168 = vector.broadcast %147 : vector<1x256xf32> to vector<16x256xf32>
    %169 = arith.mulf %167, %168 : vector<16x256xf32>
    %170 = vector.broadcast %149 : vector<1x256xf32> to vector<16x256xf32>
    %171 = arith.addf %169, %170 : vector<16x256xf32>
    %172 = arith.truncf %171 : vector<16x256xf32> to vector<16x256xbf16>
    %c0_63 = arith.constant 0 : index
    %c0_64 = arith.constant 0 : index
    %c2048 = arith.constant 2048 : index
    %173 = vector.load %arg4[%c0_63, %c0_64, %c2048] : memref<1x256x2560xbf16, #tpu.memory_space<vmem>>, vector<1x256x512xbf16>
    %174 = vector.shape_cast %173 : vector<1x256x512xbf16> to vector<256x512xbf16>
    %cst_65 = arith.constant dense<0.000000e+00> : vector<16x512xf32>
    %175 = tpu.matmul %172, %174, %cst_65 {dimension_numbers = #tpu.dot_dimension_numbers<[1], [0], [0], [1], [0, 0, 1, 1], [], []>} : vector<16x256xbf16>, vector<256x512xbf16>, vector<16x512xf32> -> vector<16x512xf32>
    %c0_66 = arith.constant 0 : index
    %c0_67 = arith.constant 0 : index
    %c3072 = arith.constant 3072 : index
    %176 = vector.load %arg6[%c0_66, %c0_67, %c3072] : memref<1x1x4352xf32, #tpu.memory_space<vmem>>, vector<1x1x512xf32>
    %177 = vector.shape_cast %176 : vector<1x1x512xf32> to vector<1x512xf32>
    %178 = vector.broadcast %177 : vector<1x512xf32> to vector<16x512xf32>
    %179 = arith.addf %175, %178 : vector<16x512xf32>
    %cst_68 = arith.constant 0.000000e+00 : f32
    %180 = vector.broadcast %cst_68 : f32 to vector<16x512xf32>
    %181 = arith.maximumf %179, %180 : vector<16x512xf32>
    %182 = arith.truncf %181 : vector<16x512xf32> to vector<16x512xbf16>
    %c0_69 = arith.constant 0 : index
    %c0_70 = arith.constant 0 : index
    %c0_71 = arith.constant 0 : index
    %183 = vector.load %arg5[%c0_69, %c0_70, %c0_71] : memref<1x512x256xbf16, #tpu.memory_space<vmem>>, vector<1x512x256xbf16>
    %184 = vector.shape_cast %183 : vector<1x512x256xbf16> to vector<512x256xbf16>
    %cst_72 = arith.constant dense<0.000000e+00> : vector<16x256xf32>
    %185 = tpu.matmul %182, %184, %cst_72 {dimension_numbers = #tpu.dot_dimension_numbers<[1], [0], [0], [1], [0, 0, 1, 1], [], []>} : vector<16x512xbf16>, vector<512x256xbf16>, vector<16x256xf32> -> vector<16x256xf32>
    %c0_73 = arith.constant 0 : index
    %c0_74 = arith.constant 0 : index
    %c3584 = arith.constant 3584 : index
    %186 = vector.load %arg6[%c0_73, %c0_74, %c3584] : memref<1x1x4352xf32, #tpu.memory_space<vmem>>, vector<1x1x256xf32>
    %187 = vector.shape_cast %186 : vector<1x1x256xf32> to vector<1x256xf32>
    %188 = vector.broadcast %187 : vector<1x256xf32> to vector<16x256xf32>
    %189 = arith.addf %185, %188 : vector<16x256xf32>
    %190 = arith.addf %171, %189 : vector<16x256xf32>
    %c0_75 = arith.constant 0 : index
    %c0_76 = arith.constant 0 : index
    %c3840 = arith.constant 3840 : index
    %191 = vector.load %arg6[%c0_75, %c0_76, %c3840] : memref<1x1x4352xf32, #tpu.memory_space<vmem>>, vector<1x1x256xf32>
    %192 = vector.shape_cast %191 : vector<1x1x256xf32> to vector<1x256xf32>
    %c0_77 = arith.constant 0 : index
    %c0_78 = arith.constant 0 : index
    %c4096 = arith.constant 4096 : index
    %193 = vector.load %arg6[%c0_77, %c0_78, %c4096] : memref<1x1x4352xf32, #tpu.memory_space<vmem>>, vector<1x1x256xf32>
    %194 = vector.shape_cast %193 : vector<1x1x256xf32> to vector<1x256xf32>
    %cst_79 = arith.constant dense<0.000000e+00> : vector<16xf32>
    %195 = vector.multi_reduction <add>, %190, %cst_79 [1] : vector<16x256xf32> to vector<16xf32>
    %196 = vector.shape_cast %195 : vector<16xf32> to vector<16x1xf32>
    %cst_80 = arith.constant 2.560000e+02 : f32
    %197 = vector.broadcast %cst_80 : f32 to vector<16x1xf32>
    %198 = arith.divf %196, %197 : vector<16x1xf32>
    %199 = vector.broadcast %198 : vector<16x1xf32> to vector<16x256xf32>
    %200 = arith.subf %190, %199 : vector<16x256xf32>
    %201 = arith.mulf %200, %200 : vector<16x256xf32>
    %cst_81 = arith.constant dense<0.000000e+00> : vector<16xf32>
    %202 = vector.multi_reduction <add>, %201, %cst_81 [1] : vector<16x256xf32> to vector<16xf32>
    %203 = vector.shape_cast %202 : vector<16xf32> to vector<16x1xf32>
    %cst_82 = arith.constant 2.560000e+02 : f32
    %204 = vector.broadcast %cst_82 : f32 to vector<16x1xf32>
    %205 = arith.divf %203, %204 : vector<16x1xf32>
    %206 = vector.broadcast %198 : vector<16x1xf32> to vector<16x256xf32>
    %207 = arith.subf %190, %206 : vector<16x256xf32>
    %cst_83 = arith.constant 9.99999974E-6 : f32
    %208 = vector.broadcast %cst_83 : f32 to vector<16x1xf32>
    %209 = arith.addf %205, %208 : vector<16x1xf32>
    %210 = math.rsqrt %209 : vector<16x1xf32>
    %211 = vector.broadcast %210 : vector<16x1xf32> to vector<16x256xf32>
    %212 = arith.mulf %207, %211 : vector<16x256xf32>
    %213 = vector.broadcast %192 : vector<1x256xf32> to vector<16x256xf32>
    %214 = arith.mulf %212, %213 : vector<16x256xf32>
    %215 = vector.broadcast %194 : vector<1x256xf32> to vector<16x256xf32>
    %216 = arith.addf %214, %215 : vector<16x256xf32>
    %c0_84 = arith.constant 0 : index
    %c0_85 = arith.constant 0 : index
    %217 = vector.load %arg10[%c0_84, %c0_85] : memref<16x256xf32, #tpu.memory_space<vmem>>, vector<16x256xf32>
    tpu.vector_store %arg10[%c0_84, %c0_85], %216 {strides = array<i32>} : memref<16x256xf32, #tpu.memory_space<vmem>>, vector<16x256xf32>,
    %c1_i32 = arith.constant 1 : i32
    %218 = arith.cmpi eq, %arg1, %c1_i32 : i32
    %219 = arith.extui %218 : i1 to i32
    %c0_i32_86 = arith.constant 0 : i32
    %220 = arith.cmpi ne, %219, %c0_i32_86 : i32
    scf.if %220 {
      %221 = arith.truncf %216 : vector<16x256xf32> to vector<16x256xbf16>
      %c0_87 = arith.constant 0 : index
      %c0_88 = arith.constant 0 : index
      %222 = vector.load %arg7[%c0_87, %c0_88] : memref<256x256xbf16, #tpu.memory_space<vmem>>, vector<256x256xbf16>
      %cst_89 = arith.constant dense<0.000000e+00> : vector<16x256xf32>
      %223 = tpu.matmul %221, %222, %cst_89 {dimension_numbers = #tpu.dot_dimension_numbers<[1], [0], [0], [1], [0, 0, 1, 1], [], []>} : vector<16x256xbf16>, vector<256x256xbf16>, vector<16x256xf32> -> vector<16x256xf32>
      %c0_90 = arith.constant 0 : index
      %c0_91 = arith.constant 0 : index
      %224 = vector.load %arg8[%c0_90, %c0_91] : memref<1x256xf32, #tpu.memory_space<vmem>>, vector<1x256xf32>
      %225 = vector.broadcast %224 : vector<1x256xf32> to vector<16x256xf32>
      %226 = arith.addf %223, %225 : vector<16x256xf32>
      %c0_92 = arith.constant 0 : index
      %c0_93 = arith.constant 0 : index
      %c0_94 = arith.constant 0 : index
      %227 = vector.load %arg9[%c0_92, %c0_93, %c0_94] : memref<1x16x256xf32, #tpu.memory_space<vmem>>, vector<1x16x256xf32>
      %228 = vector.shape_cast %227 : vector<1x16x256xf32> to vector<16x256xf32>
      %229 = vector.shape_cast %226 : vector<16x256xf32> to vector<1x16x256xf32>
      tpu.vector_store %arg9[%c0_92, %c0_93, %c0_94], %229 {strides = array<i32>} : memref<1x16x256xf32, #tpu.memory_space<vmem>>, vector<1x16x256xf32>,
    } else {
    }
    return
  }
  func.func @transform_0(%arg0: i32, %arg1: i32) -> (i32, i32, i32) {
    %c0_i32 = arith.constant 0 : i32
    %c0_i32_0 = arith.constant 0 : i32
    %c0_i32_1 = arith.constant 0 : i32
    return %arg0, %c0_i32, %c0_i32_0 : i32, i32, i32
  }
  func.func @transform_1(%arg0: i32, %arg1: i32) -> (i32, i32, i32) {
    %c0_i32 = arith.constant 0 : i32
    %c0_i32_0 = arith.constant 0 : i32
    %c0_i32_1 = arith.constant 0 : i32
    return %arg0, %c0_i32, %c0_i32_0 : i32, i32, i32
  }
  func.func @transform_2(%arg0: i32, %arg1: i32) -> (i32, i32, i32) {
    %c0_i32 = arith.constant 0 : i32
    %c0_i32_0 = arith.constant 0 : i32
    %c0_i32_1 = arith.constant 0 : i32
    return %arg1, %c0_i32, %c0_i32_0 : i32, i32, i32
  }
  func.func @transform_3(%arg0: i32, %arg1: i32) -> (i32, i32, i32) {
    %c0_i32 = arith.constant 0 : i32
    %c0_i32_0 = arith.constant 0 : i32
    %c0_i32_1 = arith.constant 0 : i32
    return %arg1, %c0_i32, %c0_i32_0 : i32, i32, i32
  }
  func.func @transform_4(%arg0: i32, %arg1: i32) -> (i32, i32, i32) {
    %c0_i32 = arith.constant 0 : i32
    %c0_i32_0 = arith.constant 0 : i32
    %c0_i32_1 = arith.constant 0 : i32
    return %arg1, %c0_i32, %c0_i32_0 : i32, i32, i32
  }
  func.func @transform_5(%arg0: i32, %arg1: i32) -> (i32, i32) {
    %c0_i32 = arith.constant 0 : i32
    %c0_i32_0 = arith.constant 0 : i32
    %c0_i32_1 = arith.constant 0 : i32
    return %c0_i32, %c0_i32_0 : i32, i32
  }
  func.func @transform_6(%arg0: i32, %arg1: i32) -> (i32, i32) {
    %c0_i32 = arith.constant 0 : i32
    %c0_i32_0 = arith.constant 0 : i32
    %c0_i32_1 = arith.constant 0 : i32
    return %c0_i32, %c0_i32_0 : i32, i32
  }
  func.func @transform_7(%arg0: i32, %arg1: i32) -> (i32, i32, i32) {
    %c0_i32 = arith.constant 0 : i32
    %c0_i32_0 = arith.constant 0 : i32
    %c0_i32_1 = arith.constant 0 : i32
    return %arg0, %c0_i32, %c0_i32_0 : i32, i32, i32
  }
}

</mosaic_0001>

<llo_original>
// kernel: tpu_custom_call.1
$region0: #{tpu_custom_call.1}
  #allocation0 [shape = 'u32[]', space=smem, size = 0x4, offset = 0x4, fixed_abs, tag = 'smem constant byte address 0x4 - core index']
  #allocation1 [shape = 'u32[144,128]{1,0:T(1,128)}', space=vmem, size = 0x12000, scoped, tag = 'internal scratch']
  #allocation2 [shape = 'f32[16,256]{1,0:T(8,128)}', space=vmem, size = 0x4000, scoped, tag = 'scratch operand']
  %s0 = inlined_call_operand.hbm [shape: bf16[1,16,256], index: 0, kind: input, shape index: {}]
  %s1 = inlined_call_operand.hbm [shape: bf16[1,16,256], index: 1, kind: input, shape index: {}]
  %s2 = inlined_call_operand.hbm [shape: bf16[2,256,2560], index: 2, kind: input, shape index: {}]
  %s3 = inlined_call_operand.hbm [shape: bf16[2,512,256], index: 3, kind: input, shape index: {}]
  %s4 = inlined_call_operand.hbm [shape: f32[2,1,4352], index: 4, kind: input, shape index: {}]
  %s5 = inlined_call_operand.hbm [shape: bf16[256,256], index: 5, kind: input, shape index: {}]
  %s6 = inlined_call_operand.hbm [shape: f32[1,256], index: 6, kind: input, shape index: {}]
  %s7 = inlined_call_operand.hbm [shape: f32[1,16,256], index: 7, kind: output, shape index: {}]
  %s8 = sld [smem:[#allocation0]]
  $region97: #{tpu_custom_call.1} parent=0
    _
  %s10 = ssub.s32 1, %s8
  %s11 = scalar_select 0, %s10, %s8
  $region1: #{tpu_custom_call.1} parent=0
    #allocation3 [shape = 'u8[8192]{0}', space=vmem, size = 0x2000, scoped, tag = 'input window, operand 0, single buffered']
    #allocation4 [shape = 's32[2]{0}', space=sflag, size = 0x8, scoped, tag = 'scoped memory for tpu_custom_call.1']
    #allocation5 [shape = 's32[2]{0}', space=sflag, size = 0x8, scoped, tag = 'scoped memory for tpu_custom_call.1']
    #allocation6 [shape = 'u8[8192]{0}', space=vmem, size = 0x2000, scoped, tag = 'input window, operand 1, single buffered']
    #allocation7 [shape = 's32[1]{0}', space=sflag, size = 0x4, scoped, tag = 'scoped memory for tpu_custom_call.1']
    #allocation8 [shape = 'u8[2621440]{0}', space=vmem, size = 0x280000, scoped, tag = 'input window, operand 2']
    #allocation9 [shape = 'u8[524288]{0}', space=vmem, size = 0x80000, scoped, tag = 'input window, operand 3']
    #allocation10 [shape = 'u8[34816]{0}', space=vmem, size = 0x8800, scoped, tag = 'input window, operand 4']
    #allocation11 [shape = 'u8[131072]{0}', space=vmem, size = 0x20000, scoped, tag = 'input window, operand 5, single buffered']
    #allocation12 [shape = 'u8[1024]{0}', space=vmem, size = 0x400, scoped, tag = 'input window, operand 6, single buffered']
    #allocation13 [shape = 's32[1]{0}', space=sflag, size = 0x4, scoped, tag = 'scoped memory for tpu_custom_call.1']
    #allocation14 [shape = 'u8[16384]{0}', space=vmem, size = 0x4000, scoped, tag = 'output window, operand 0, single buffered']
    %12 = vsyncpa [#allocation4], 0
    %13 = vsyncpa [#allocation7], 0
    %14 = vsyncpa [#allocation13], 0
    %15 = vsyncpa [#allocation5], 0
    loop: start=0, step=1, limit=4
    $region2: #{tpu_custom_call.1} parent=1 // loop_pre_header
      _
    $region3: #{tpu_custom_call.1} parent=1 // loop_header
      %s17 = sphi 0, %s21
      %p18 = scmp.ge.s32.totalorder %s17, 4
      %s24 = sphi 0, %s36
      %s25 = sphi 0, %s32
      %s26 = sphi 0, %s24
      %s27 = sphi 0, %s25
      %s28 = sphi 0, %s26
      %s29 = sphi 0, %s27
      %s39 = sphi 0, %s41
      %s42 = sphi 0, %s39
      %s43 = sphi 0, %s42
      %s59 = sphi 0, %s43
      %s65 = sphi 0, %s67
      %s68 = sphi 0, %s65
      %s69 = sphi 0, %s68
      %s85 = sphi 0, %s69
      %s91 = sphi 0, %s93
      %s94 = sphi 0, %s91
      %s95 = sphi 0, %s94
      %s111 = sphi 0, %s95
      %s117 = sphi 0, %s119
      %s120 = sphi 0, %s117
      %s121 = sphi 0, %s120
      %s137 = sphi 0, %s121
      %s143 = sphi 0, %s145
      %s146 = sphi 0, %s143
      %s147 = sphi 0, %s146
      %s163 = sphi 0, %s147
      %s167 = sphi 0, %s167
      %s169 = sphi 0, %s167
      %s170 = sphi 0, %s169
      %s184 = sphi 0, %s170
      %s188 = sphi 0, %s188
      %s190 = sphi 0, %s188
      %s191 = sphi 0, %s190
      %s205 = sphi 0, %s191
      %s211 = sphi 0, %s213
      %s214 = sphi 0, %s211
      %s215 = sphi 0, %s214
      %s231 = sphi 0, %s215
    $region4: #{tpu_custom_call.1} parent=1 // loop_header_branch
      %20 = sbr.rel (%p18) target = $region8
    $region5: #{tpu_custom_call.1} parent=1 // loop_body
      %s22 = ssub.s32 %s17, 1
      %s23 = ssub.s32 %s17, 2
      %s30 = sadd.s32 1, %s25
      %p31 = scmp.ge.s32.totalorder %s30, 2
      %s32 = scalar_select %p31, 0, %s30
      %s33 = sadd.s32 1, %s24
      %s34 = scalar_select %p31, %s33, %s24
      %p35 = scmp.ge.s32.totalorder %s34, 1
      %s36 = scalar_select %p35, 0, %s34
      %s37 = ssub.s32 %s24, %s36
      %p38 = scmp.eq.s32.totalorder %s37, 0
      %s40 = sadd.s32 %s39, 1
      %s41 = scalar_select %p38, %s39, %s40
      %p44 = pneg %p38
      %p45 = scmp.eq.s32.totalorder %s17, 1
      %p46 = por %p44, %p45
      %p47 = scmp.ne.s32.totalorder %s39, %s42
      %p48 = scmp.eq.s32.totalorder %s17, 0
      %p49 = por %p47, %p48
      %p50 = scmp.ne.s32.totalorder %s39, %s42
      %p51 = scmp.eq.s32.totalorder %s22, 1
      %p52 = por %p50, %p51
      %p53 = scmp.ne.s32.totalorder %s42, %s43
      %p54 = scmp.eq.s32.totalorder %s22, 0
      %p55 = por %p53, %p54
      %p56 = scmp.ne.s32.totalorder %s42, %s43
      %p57 = scmp.eq.s32.totalorder %s23, 1
      %p58 = por %p56, %p57
      %p60 = scmp.ne.s32.totalorder %s43, %s59
      %p61 = scmp.eq.s32.totalorder %s23, 0
      %p62 = por %p60, %p61
      %s63 = ssub.s32 %s24, %s36
      %p64 = scmp.eq.s32.totalorder %s63, 0
      %s66 = sadd.s32 %s65, 1
      %s67 = scalar_select %p64, %s65, %s66
      %p70 = pneg %p64
      %p71 = scmp.eq.s32.totalorder %s17, 1
      %p72 = por %p70, %p71
      %p73 = scmp.ne.s32.totalorder %s65, %s68
      %p74 = scmp.eq.s32.totalorder %s17, 0
      %p75 = por %p73, %p74
      %p76 = scmp.ne.s32.totalorder %s65, %s68
      %p77 = scmp.eq.s32.totalorder %s22, 1
      %p78 = por %p76, %p77
      %p79 = scmp.ne.s32.totalorder %s68, %s69
      %p80 = scmp.eq.s32.totalorder %s22, 0
      %p81 = por %p79, %p80
      %p82 = scmp.ne.s32.totalorder %s68, %s69
      %p83 = scmp.eq.s32.totalorder %s23, 1
      %p84 = por %p82, %p83
      %p86 = scmp.ne.s32.totalorder %s69, %s85
      %p87 = scmp.eq.s32.totalorder %s23, 0
      %p88 = por %p86, %p87
      %s89 = ssub.s32 %s25, %s32
      %p90 = scmp.eq.s32.totalorder %s89, 0
      %s92 = sadd.s32 %s91, 1
      %s93 = scalar_select %p90, %s91, %s92
      %p96 = pneg %p90
      %p97 = scmp.eq.s32.totalorder %s17, 1
      %p98 = por %p96, %p97
      %p99 = scmp.ne.s32.totalorder %s91, %s94
      %p100 = scmp.eq.s32.totalorder %s17, 0
      %p101 = por %p99, %p100
      %p102 = scmp.ne.s32.totalorder %s91, %s94
      %p103 = scmp.eq.s32.totalorder %s22, 1
      %p104 = por %p102, %p103
      %p105 = scmp.ne.s32.totalorder %s94, %s95
      %p106 = scmp.eq.s32.totalorder %s22, 0
      %p107 = por %p105, %p106
      %p108 = scmp.ne.s32.totalorder %s94, %s95
      %p109 = scmp.eq.s32.totalorder %s23, 1
      %p110 = por %p108, %p109
      %p112 = scmp.ne.s32.totalorder %s95, %s111
      %p113 = scmp.eq.s32.totalorder %s23, 0
      %p114 = por %p112, %p113
      %s115 = ssub.s32 %s25, %s32
      %p116 = scmp.eq.s32.totalorder %s115, 0
      %s118 = sadd.s32 %s117, 1
      %s119 = scalar_select %p116, %s117, %s118
      %p122 = pneg %p116
      %p123 = scmp.eq.s32.totalorder %s17, 1
      %p124 = por %p122, %p123
      %p125 = scmp.ne.s32.totalorder %s117, %s120
      %p126 = scmp.eq.s32.totalorder %s17, 0
      %p127 = por %p125, %p126
      %p128 = scmp.ne.s32.totalorder %s117, %s120
      %p129 = scmp.eq.s32.totalorder %s22, 1
      %p130 = por %p128, %p129
      %p131 = scmp.ne.s32.totalorder %s120, %s121
      %p132 = scmp.eq.s32.totalorder %s22, 0
      %p133 = por %p131, %p132
      %p134 = scmp.ne.s32.totalorder %s120, %s121
      %p135 = scmp.eq.s32.totalorder %s23, 1
      %p136 = por %p134, %p135
      %p138 = scmp.ne.s32.totalorder %s121, %s137
      %p139 = scmp.eq.s32.totalorder %s23, 0
      %p140 = por %p138, %p139
      %s141 = ssub.s32 %s25, %s32
      %p142 = scmp.eq.s32.totalorder %s141, 0
      %s144 = sadd.s32 %s143, 1
      %s145 = scalar_select %p142, %s143, %s144
      %p148 = pneg %p142
      %p149 = scmp.eq.s32.totalorder %s17, 1
      %p150 = por %p148, %p149
      %p151 = scmp.ne.s32.totalorder %s143, %s146
      %p152 = scmp.eq.s32.totalorder %s17, 0
      %p153 = por %p151, %p152
      %p154 = scmp.ne.s32.totalorder %s143, %s146
      %p155 = scmp.eq.s32.totalorder %s22, 1
      %p156 = por %p154, %p155
      %p157 = scmp.ne.s32.totalorder %s146, %s147
      %p158 = scmp.eq.s32.totalorder %s22, 0
      %p159 = por %p157, %p158
      %p160 = scmp.ne.s32.totalorder %s146, %s147
      %p161 = scmp.eq.s32.totalorder %s23, 1
      %p162 = por %p160, %p161
      %p164 = scmp.ne.s32.totalorder %s147, %s163
      %p165 = scmp.eq.s32.totalorder %s23, 0
      %p166 = por %p164, %p165
      %s168 = sadd.s32 %s167, 1
      %p171 = scmp.eq.s32.totalorder %s17, 1
      %p172 = scmp.ne.s32.totalorder %s167, %s169
      %p173 = scmp.eq.s32.totalorder %s17, 0
      %p174 = por %p172, %p173
      %p175 = scmp.ne.s32.totalorder %s167, %s169
      %p176 = scmp.eq.s32.totalorder %s22, 1
      %p177 = por %p175, %p176
      %p178 = scmp.ne.s32.totalorder %s169, %s170
      %p179 = scmp.eq.s32.totalorder %s22, 0
      %p180 = por %p178, %p179
      %p181 = scmp.ne.s32.totalorder %s169, %s170
      %p182 = scmp.eq.s32.totalorder %s23, 1
      %p183 = por %p181, %p182
      %p185 = scmp.ne.s32.totalorder %s170, %s184
      %p186 = scmp.eq.s32.totalorder %s23, 0
      %p187 = por %p185, %p186
      %s189 = sadd.s32 %s188, 1
      %p192 = scmp.eq.s32.totalorder %s17, 1
      %p193 = scmp.ne.s32.totalorder %s188, %s190
      %p194 = scmp.eq.s32.totalorder %s17, 0
      %p195 = por %p193, %p194
      %p196 = scmp.ne.s32.totalorder %s188, %s190
      %p197 = scmp.eq.s32.totalorder %s22, 1
      %p198 = por %p196, %p197
      %p199 = scmp.ne.s32.totalorder %s190, %s191
      %p200 = scmp.eq.s32.totalorder %s22, 0
      %p201 = por %p199, %p200
      %p202 = scmp.ne.s32.totalorder %s190, %s191
      %p203 = scmp.eq.s32.totalorder %s23, 1
      %p204 = por %p202, %p203
      %p206 = scmp.ne.s32.totalorder %s191, %s205
      %p207 = scmp.eq.s32.totalorder %s23, 0
      %p208 = por %p206, %p207
      %s209 = ssub.s32 %s24, %s36
      %p210 = scmp.eq.s32.totalorder %s209, 0
      %s212 = sadd.s32 %s211, 1
      %s213 = scalar_select %p210, %s211, %s212
      %p216 = pneg %p210
      %p217 = scmp.eq.s32.totalorder %s17, 1
      %p218 = por %p216, %p217
      %p219 = scmp.ne.s32.totalorder %s211, %s214
      %p220 = scmp.eq.s32.totalorder %s17, 0
      %p221 = por %p219, %p220
      %p222 = scmp.ne.s32.totalorder %s211, %s214
      %p223 = scmp.eq.s32.totalorder %s22, 1
      %p224 = por %p222, %p223
      %p225 = scmp.ne.s32.totalorder %s214, %s215
      %p226 = scmp.eq.s32.totalorder %s22, 0
      %p227 = por %p225, %p226
      %p228 = scmp.ne.s32.totalorder %s214, %s215
      %p229 = scmp.eq.s32.totalorder %s23, 1
      %p230 = por %p228, %p229
      %p232 = scmp.ne.s32.totalorder %s215, %s231
      %p233 = scmp.eq.s32.totalorder %s23, 0
      %p234 = por %p232, %p233
      %p235 = scmp.le.s32.totalorder 1, %s17
      %p236 = scmp.lt.s32.totalorder %s17, 3
      %p237 = pnand %p235, %p236
      %p238 = pneg %p237
      // Predicated region
      $region9: #{tpu_custom_call.1} parent=5 // pred_check
        _
      $region10: #{tpu_custom_call.1} parent=5 // pred_check_branch
        %240 = sbr.rel (%p237) target = $region12
      $region11: #{tpu_custom_call.1} parent=5 // pred_region
        %s241 = ssub.s32 %s17, 1
        // Predicated region
        $region13: #{tpu_custom_call.1} parent=11 // pred_check
          %p242 = pneg %p55
        $region14: #{tpu_custom_call.1} parent=11 // pred_check_branch
          %244 = sbr.rel (%p242) target = $region16
        $region15: #{tpu_custom_call.1} parent=11 // pred_region
          %s246 = ssub.s32 256, 256
          %247 = vsyncadd [#allocation4], %s246
          %s248 = smul.addr %s26, 4
          %s249 = smul.addr %s248, 64
          %s250 = scalar_lea.hbm %s0, %s249
          %s251 = sshll.u32 [#allocation3], 4
          %s252 = int_to_ptr.vmem [resolvable:$true] %s251
          %257 = dma.hbm_to_vmem [thread:$0]  %s250, 256, %s252, [#allocation4], 128, 128, 8
        $region16: #{tpu_custom_call.1} parent=11 // pred_fallthru
          _
        // Predicated region
        $region17: #{tpu_custom_call.1} parent=11 // pred_check
          %p258 = pneg %p81
        $region18: #{tpu_custom_call.1} parent=11 // pred_check_branch
          %260 = sbr.rel (%p258) target = $region20
        $region19: #{tpu_custom_call.1} parent=11 // pred_region
          %s262 = ssub.s32 256, 256
          %263 = vsyncadd [#allocation7], %s262
          %s264 = smul.addr %s26, 4
          %s265 = smul.addr %s264, 64
          %s266 = scalar_lea.hbm %s1, %s265
          %s267 = sshll.u32 [#allocation6], 4
          %s268 = int_to_ptr.vmem [resolvable:$true] %s267
          %273 = dma.hbm_to_vmem [thread:$0]  %s266, 256, %s268, [#allocation7], 128, 128, 8
        $region20: #{tpu_custom_call.1} parent=11 // pred_fallthru
          _
        // Predicated region
        $region21: #{tpu_custom_call.1} parent=11 // pred_check
          %p274 = pneg %p180
        $region22: #{tpu_custom_call.1} parent=11 // pred_check_branch
          %276 = sbr.rel (%p274) target = $region24
        $region23: #{tpu_custom_call.1} parent=11 // pred_region
          %s278 = ssub.s32 4096, 4096
          %279 = vsyncadd [#allocation7], %s278
          %s280 = sshll.u32 [#allocation11], 4
          %s281 = int_to_ptr.vmem [resolvable:$true] %s280
          %286 = dma.hbm_to_vmem [thread:$0]  %s5, 4096, %s281, [#allocation7], 128, 128, 8
        $region24: #{tpu_custom_call.1} parent=11 // pred_fallthru
          _
        // Predicated region
        $region25: #{tpu_custom_call.1} parent=11 // pred_check
          %p287 = pneg %p201
        $region26: #{tpu_custom_call.1} parent=11 // pred_check_branch
          %289 = sbr.rel (%p287) target = $region28
        $region27: #{tpu_custom_call.1} parent=11 // pred_region
          %s291 = ssub.s32 32, 32
          %292 = vsyncadd [#allocation13], %s291
          %s294 = sshll.u32 [#allocation12], 4
          %s295 = int_to_ptr.vmem [resolvable:$true] %s294
          %297 = dma.hbm_to_vmem [thread:$0]  %s6, 32, %s295, [#allocation13]
        $region28: #{tpu_custom_call.1} parent=11 // pred_fallthru
          _
      $region12: #{tpu_custom_call.1} parent=5 // pred_fallthru
        _
      %p298 = scmp.lt.s32.totalorder %s17, 2
      // Predicated region
      $region29: #{tpu_custom_call.1} parent=5 // pred_check
        %p299 = pneg %p298
      $region30: #{tpu_custom_call.1} parent=5 // pred_check_branch
        %301 = sbr.rel (%p299) target = $region32
      $region31: #{tpu_custom_call.1} parent=5 // pred_region
        // Predicated region
        $region33: #{tpu_custom_call.1} parent=31 // pred_check
          %p302 = pneg %p101
        $region34: #{tpu_custom_call.1} parent=31 // pred_check_branch
          %304 = sbr.rel (%p302) target = $region36
        $region35: #{tpu_custom_call.1} parent=31 // pred_region
          %s305 = sand.u32 %s17, 1
          %s306 = scalar_lea.sflag [#allocation4], %s305
          %s307 = sand.u32 %s91, 1
          %s308 = smul.addr %s307, 2560
          %s309 = scalar_lea.vmem [#allocation8], %s308
          %s311 = ssub.s32 40960, 40960
          %312 = vsyncadd %s306, %s311
          %s313 = smul.addr %s25, 640
          %s314 = smul.addr %s313, 64
          %s315 = scalar_lea.hbm %s2, %s314
          %s316 = sshll.u32 %s309, 4
          %s317 = int_to_ptr.vmem [resolvable:$true] %s316
          %322 = dma.hbm_to_vmem [thread:$0]  %s315, 40960, %s317, %s306, 1280, 1280, 80
        $region36: #{tpu_custom_call.1} parent=31 // pred_fallthru
          _
        // Predicated region
        $region37: #{tpu_custom_call.1} parent=31 // pred_check
          %p323 = pneg %p127
        $region38: #{tpu_custom_call.1} parent=31 // pred_check_branch
          %325 = sbr.rel (%p323) target = $region40
        $region39: #{tpu_custom_call.1} parent=31 // pred_region
          %s326 = sand.u32 %s17, 1
          %s327 = scalar_lea.sflag [#allocation4], %s326
          %s328 = sand.u32 %s117, 1
          %s329 = smul.addr %s328, 512
          %s330 = scalar_lea.vmem [#allocation9], %s329
          %s332 = ssub.s32 8192, 8192
          %333 = vsyncadd %s327, %s332
          %s334 = smul.addr %s25, 128
          %s335 = smul.addr %s334, 64
          %s336 = scalar_lea.hbm %s3, %s335
          %s337 = sshll.u32 %s330, 4
          %s338 = int_to_ptr.vmem [resolvable:$true] %s337
          %343 = dma.hbm_to_vmem [thread:$0]  %s336, 8192, %s338, %s327, 128, 128, 8
        $region40: #{tpu_custom_call.1} parent=31 // pred_fallthru
          _
        // Predicated region
        $region41: #{tpu_custom_call.1} parent=31 // pred_check
          %p344 = pneg %p153
        $region42: #{tpu_custom_call.1} parent=31 // pred_check_branch
          %346 = sbr.rel (%p344) target = $region44
        $region43: #{tpu_custom_call.1} parent=31 // pred_region
          %s347 = sand.u32 %s17, 1
          %s348 = scalar_lea.sflag [#allocation4], %s347
          %s349 = sand.u32 %s143, 1
          %s350 = smul.addr %s349, 34
          %s351 = scalar_lea.vmem [#allocation10], %s350
          %s353 = ssub.s32 544, 544
          %354 = vsyncadd %s348, %s353
          %s355 = smul.addr %s25, 34
          %s356 = smul.addr %s355, 16
          %s357 = scalar_lea.hbm %s4, %s356
          %s359 = sshll.u32 %s351, 4
          %s360 = int_to_ptr.vmem [resolvable:$true] %s359
          %362 = dma.hbm_to_vmem [thread:$0]  %s357, 544, %s360, %s348
        $region44: #{tpu_custom_call.1} parent=31 // pred_fallthru
          _
      $region32: #{tpu_custom_call.1} parent=5 // pred_fallthru
        _
      %p363 = scmp.le.s32.totalorder 1, %s17
      %p364 = scmp.lt.s32.totalorder %s17, 3
      %p365 = pnand %p363, %p364
      %p366 = pneg %p365
      // Predicated region
      $region45: #{tpu_custom_call.1} parent=5 // pred_check
        _
      $region46: #{tpu_custom_call.1} parent=5 // pred_check_branch
        %368 = sbr.rel (%p365) target = $region48
      $region47: #{tpu_custom_call.1} parent=5 // pred_region
        %s369 = ssub.s32 %s17, 1
        // Predicated region
        $region49: #{tpu_custom_call.1} parent=47 // pred_check
          %p370 = pneg %p55
        $region50: #{tpu_custom_call.1} parent=47 // pred_check_branch
          %372 = sbr.rel (%p370) target = $region52
        $region51: #{tpu_custom_call.1} parent=47 // pred_region
          %373 = dma.done [#allocation4], 256
        $region52: #{tpu_custom_call.1} parent=47 // pred_fallthru
          _
        // Predicated region
        $region53: #{tpu_custom_call.1} parent=47 // pred_check
          %p374 = pneg %p81
        $region54: #{tpu_custom_call.1} parent=47 // pred_check_branch
          %376 = sbr.rel (%p374) target = $region56
        $region55: #{tpu_custom_call.1} parent=47 // pred_region
          %377 = dma.done [#allocation7], 256
        $region56: #{tpu_custom_call.1} parent=47 // pred_fallthru
          _
        %s378 = sand.u32 %s22, 1
        %s379 = scalar_lea.sflag [#allocation4], %s378
        %s380 = sand.u32 %s94, 1
        %s381 = smul.addr %s380, 2560
        %s382 = scalar_lea.vmem [#allocation8], %s381
        // Predicated region
        $region57: #{tpu_custom_call.1} parent=47 // pred_check
          %p383 = pneg %p107
        $region58: #{tpu_custom_call.1} parent=47 // pred_check_branch
          %385 = sbr.rel (%p383) target = $region60
        $region59: #{tpu_custom_call.1} parent=47 // pred_region
          %386 = dma.done %s379, 40960
        $region60: #{tpu_custom_call.1} parent=47 // pred_fallthru
          _
        %s387 = sand.u32 %s22, 1
        %s388 = scalar_lea.sflag [#allocation4], %s387
        %s389 = sand.u32 %s120, 1
        %s390 = smul.addr %s389, 512
        %s391 = scalar_lea.vmem [#allocation9], %s390
        // Predicated region
        $region61: #{tpu_custom_call.1} parent=47 // pred_check
          %p392 = pneg %p133
        $region62: #{tpu_custom_call.1} parent=47 // pred_check_branch
          %394 = sbr.rel (%p392) target = $region64
        $region63: #{tpu_custom_call.1} parent=47 // pred_region
          %395 = dma.done %s388, 8192
        $region64: #{tpu_custom_call.1} parent=47 // pred_fallthru
          _
        %s396 = sand.u32 %s22, 1
        %s397 = scalar_lea.sflag [#allocation4], %s396
        %s398 = sand.u32 %s146, 1
        %s399 = smul.addr %s398, 34
        %s400 = scalar_lea.vmem [#allocation10], %s399
        // Predicated region
        $region65: #{tpu_custom_call.1} parent=47 // pred_check
          %p401 = pneg %p159
        $region66: #{tpu_custom_call.1} parent=47 // pred_check_branch
          %403 = sbr.rel (%p401) target = $region68
        $region67: #{tpu_custom_call.1} parent=47 // pred_region
          %404 = dma.done %s397, 544
        $region68: #{tpu_custom_call.1} parent=47 // pred_fallthru
          _
        // Predicated region
        $region69: #{tpu_custom_call.1} parent=47 // pred_check
          %p405 = pneg %p180
        $region70: #{tpu_custom_call.1} parent=47 // pred_check_branch
          %407 = sbr.rel (%p405) target = $region72
        $region71: #{tpu_custom_call.1} parent=47 // pred_region
          %408 = dma.done [#allocation7], 4096
        $region72: #{tpu_custom_call.1} parent=47 // pred_fallthru
          _
        // Predicated region
        $region73: #{tpu_custom_call.1} parent=47 // pred_check
          %p409 = pneg %p201
        $region74: #{tpu_custom_call.1} parent=47 // pred_check_branch
          %411 = sbr.rel (%p409) target = $region76
        $region75: #{tpu_custom_call.1} parent=47 // pred_region
          %412 = dma.done [#allocation13], 32
        $region76: #{tpu_custom_call.1} parent=47 // pred_fallthru
          _
        %p413 = pneg %p55
        %p414 = pneg %p52
        %p415 = pneg %p81
        %p416 = pneg %p78
        %s417 = sand.u32 %s22, 1
        %s418 = scalar_lea.sflag [#allocation4], %s417
        %s419 = sand.u32 %s94, 1
        %s420 = smul.addr %s419, 2560
        %s421 = scalar_lea.vmem [#allocation8], %s420
        %p422 = pneg %p107
        %p423 = pneg %p104
        %s424 = sand.u32 %s22, 1
        %s425 = scalar_lea.sflag [#allocation4], %s424
        %s426 = sand.u32 %s120, 1
        %s427 = smul.addr %s426, 512
        %s428 = scalar_lea.vmem [#allocation9], %s427
        %p429 = pneg %p133
        %p430 = pneg %p130
        %s431 = sand.u32 %s22, 1
        %s432 = scalar_lea.sflag [#allocation4], %s431
        %s433 = sand.u32 %s146, 1
        %s434 = smul.addr %s433, 34
        %s435 = scalar_lea.vmem [#allocation10], %s434
        %p436 = pneg %p159
        %p437 = pneg %p156
        %p438 = pneg %p180
        %p439 = pneg %p177
        %p440 = pneg %p201
        %p441 = pneg %p198
        %p442 = pneg %p227
        %p443 = pneg %p224
        %p445 = scmp.eq.s32.totalorder %s27, 0
        // Predicated region
        $region77: #{tpu_custom_call.1} parent=47 // pred_check
          %p446 = pneg %p445
        $region78: #{tpu_custom_call.1} parent=47 // pred_check_branch
          %448 = sbr.rel (%p446) target = $region80
        $region79: #{tpu_custom_call.1} parent=47 // pred_region
          %v449 = vld [vmem:[#allocation3] sm:$0xff]
          %v450 = vld [vmem:[#allocation3 + $0x8] sm:$0xff]
          %v451 = vunpack.c.l.bf16 %v449
          %v452 = vunpack.c.h.bf16 %v449
          %v453 = vunpack.c.l.bf16 %v450
          %v454 = vunpack.c.h.bf16 %v450
          %455 = vst [vmem:[#allocation2] sm:$0xff] %v451
          %456 = vst [vmem:[#allocation2 + $0x8] sm:$0xff] %v452
          %457 = vst [vmem:[#allocation2 + $0x10] sm:$0xff] %v453
          %458 = vst [vmem:[#allocation2 + $0x18] sm:$0xff] %v454
        $region80: #{tpu_custom_call.1} parent=47 // pred_fallthru
          _
        %v459 = vld [vmem:[#allocation2] sm:$0xff]
        %v460 = vld [vmem:[#allocation2 + $0x8] sm:$0xff]
        %v461 = vld [vmem:[#allocation2 + $0x10] sm:$0xff]
        %v462 = vld [vmem:[#allocation2 + $0x18] sm:$0xff]
        %v463 = vpack.c.bf16 %v461, %v459
        %v464 = vpack.c.bf16 %v462, %v460
        %v465 = vld [vmem:[#allocation6] sm:$0xff]
        %v466 = vld [vmem:[#allocation6 + $0x8] sm:$0xff]
        %v467 = vld [vmem:[%s382] sm:$0xff]
        %v468 = vld [vmem:[%s382 + $0x8] sm:$0xff]
        %v469 = vld [vmem:[%s382 + $0x10] sm:$0xff]
        %v470 = vld [vmem:[%s382 + $0x50] sm:$0xff]
        %v471 = vld [vmem:[%s382 + $0x58] sm:$0xff]
        %v472 = vld [vmem:[%s382 + $0x60] sm:$0xff]
        %v473 = vld [vmem:[%s382 + $0xa0] sm:$0xff]
        %v474 = vld [vmem:[%s382 + $0xa8] sm:$0xff]
        %v475 = vld [vmem:[%s382 + $0xb0] sm:$0xff]
        %v476 = vld [vmem:[%s382 + $0xf0] sm:$0xff]
        %v477 = vld [vmem:[%s382 + $0xf8] sm:$0xff]
        %v478 = vld [vmem:[%s382 + $0x100] sm:$0xff]
        %v479 = vld [vmem:[%s382 + $0x140] sm:$0xff]
        %v480 = vld [vmem:[%s382 + $0x148] sm:$0xff]
        %v481 = vld [vmem:[%s382 + $0x150] sm:$0xff]
        %v482 = vld [vmem:[%s382 + $0x190] sm:$0xff]
        %v483 = vld [vmem:[%s382 + $0x198] sm:$0xff]
        %v484 = vld [vmem:[%s382 + $0x1a0] sm:$0xff]
        %v485 = vld [vmem:[%s382 + $0x1e0] sm:$0xff]
        %v486 = vld [vmem:[%s382 + $0x1e8] sm:$0xff]
        %v487 = vld [vmem:[%s382 + $0x1f0] sm:$0xff]
        %v488 = vld [vmem:[%s382 + $0x230] sm:$0xff]
        %v489 = vld [vmem:[%s382 + $0x238] sm:$0xff]
        %v490 = vld [vmem:[%s382 + $0x240] sm:$0xff]
        %v491 = vld [vmem:[%s382 + $0x280] sm:$0xff]
        %v492 = vld [vmem:[%s382 + $0x288] sm:$0xff]
        %v493 = vld [vmem:[%s382 + $0x290] sm:$0xff]
        %v494 = vld [vmem:[%s382 + $0x2d0] sm:$0xff]
        %v495 = vld [vmem:[%s382 + $0x2d8] sm:$0xff]
        %v496 = vld [vmem:[%s382 + $0x2e0] sm:$0xff]
        %v497 = vld [vmem:[%s382 + $0x320] sm:$0xff]
        %v498 = vld [vmem:[%s382 + $0x328] sm:$0xff]
        %v499 = vld [vmem:[%s382 + $0x330] sm:$0xff]
        %v500 = vld [vmem:[%s382 + $0x370] sm:$0xff]
        %v501 = vld [vmem:[%s382 + $0x378] sm:$0xff]
        %v502 = vld [vmem:[%s382 + $0x380] sm:$0xff]
        %v503 = vld [vmem:[%s382 + $0x3c0] sm:$0xff]
        %v504 = vld [vmem:[%s382 + $0x3c8] sm:$0xff]
        %v505 = vld [vmem:[%s382 + $0x3d0] sm:$0xff]
        %v506 = vld [vmem:[%s382 + $0x410] sm:$0xff]
        %v507 = vld [vmem:[%s382 + $0x418] sm:$0xff]
        %v508 = vld [vmem:[%s382 + $0x420] sm:$0xff]
        %v509 = vld [vmem:[%s382 + $0x460] sm:$0xff]
        %v510 = vld [vmem:[%s382 + $0x468] sm:$0xff]
        %v511 = vld [vmem:[%s382 + $0x470] sm:$0xff]
        %v512 = vld [vmem:[%s382 + $0x4b0] sm:$0xff]
        %v513 = vld [vmem:[%s382 + $0x4b8] sm:$0xff]
        %v514 = vld [vmem:[%s382 + $0x4c0] sm:$0xff]
        %v515 = vld [vmem:[%s382 + $0x500] sm:$0xff]
        %v516 = vld [vmem:[%s382 + $0x508] sm:$0xff]
        %v517 = vld [vmem:[%s382 + $0x510] sm:$0xff]
        %v518 = vld [vmem:[%s382 + $0x550] sm:$0xff]
        %v519 = vld [vmem:[%s382 + $0x558] sm:$0xff]
        %v520 = vld [vmem:[%s382 + $0x560] sm:$0xff]
        %v521 = vld [vmem:[%s382 + $0x5a0] sm:$0xff]
        %v522 = vld [vmem:[%s382 + $0x5a8] sm:$0xff]
        %v523 = vld [vmem:[%s382 + $0x5b0] sm:$0xff]
        %v524 = vld [vmem:[%s382 + $0x5f0] sm:$0xff]
        %v525 = vld [vmem:[%s382 + $0x5f8] sm:$0xff]
        %v526 = vld [vmem:[%s382 + $0x600] sm:$0xff]
        %v527 = vld [vmem:[%s382 + $0x640] sm:$0xff]
        %v528 = vld [vmem:[%s382 + $0x648] sm:$0xff]
        %v529 = vld [vmem:[%s382 + $0x650] sm:$0xff]
        %v530 = vld [vmem:[%s382 + $0x690] sm:$0xff]
        %v531 = vld [vmem:[%s382 + $0x698] sm:$0xff]
        %v532 = vld [vmem:[%s382 + $0x6a0] sm:$0xff]
        %v533 = vld [vmem:[%s382 + $0x6e0] sm:$0xff]
        %v534 = vld [vmem:[%s382 + $0x6e8] sm:$0xff]
        %v535 = vld [vmem:[%s382 + $0x6f0] sm:$0xff]
        %v536 = vld [vmem:[%s382 + $0x730] sm:$0xff]
        %v537 = vld [vmem:[%s382 + $0x738] sm:$0xff]
        %v538 = vld [vmem:[%s382 + $0x740] sm:$0xff]
        %v539 = vld [vmem:[%s382 + $0x780] sm:$0xff]
        %v540 = vld [vmem:[%s382 + $0x788] sm:$0xff]
        %v541 = vld [vmem:[%s382 + $0x790] sm:$0xff]
        %v542 = vld [vmem:[%s382 + $0x7d0] sm:$0xff]
        %v543 = vld [vmem:[%s382 + $0x7d8] sm:$0xff]
        %v544 = vld [vmem:[%s382 + $0x7e0] sm:$0xff]
        %v545 = vld [vmem:[%s382 + $0x820] sm:$0xff]
        %v546 = vld [vmem:[%s382 + $0x828] sm:$0xff]
        %v547 = vld [vmem:[%s382 + $0x830] sm:$0xff]
        %v548 = vld [vmem:[%s382 + $0x870] sm:$0xff]
        %v549 = vld [vmem:[%s382 + $0x878] sm:$0xff]
        %v550 = vld [vmem:[%s382 + $0x880] sm:$0xff]
        %v551 = vld [vmem:[%s382 + $0x8c0] sm:$0xff]
        %v552 = vld [vmem:[%s382 + $0x8c8] sm:$0xff]
        %v553 = vld [vmem:[%s382 + $0x8d0] sm:$0xff]
        %v554 = vld [vmem:[%s382 + $0x910] sm:$0xff]
        %v555 = vld [vmem:[%s382 + $0x918] sm:$0xff]
        %v556 = vld [vmem:[%s382 + $0x920] sm:$0xff]
        %v557 = vld [vmem:[%s382 + $0x960] sm:$0xff]
        %v558 = vld [vmem:[%s382 + $0x968] sm:$0xff]
        %v559 = vld [vmem:[%s382 + $0x970] sm:$0xff]
        %v560 = vld [vmem:[%s382 + $0x9b0] sm:$0xff]
        %v561 = vld [vmem:[%s382 + $0x9b8] sm:$0xff]
        %v562 = vld [vmem:[%s382 + $0x9c0] sm:$0xff]
        %v563 = vld [vmem:[%s400] sm:$0x3f]
        %v565 = vlaneseq
        %v566 = vshrl.u32 %v565, 7
        %v567 = vsub.s32 0, %v566
        %v568 = vrot.slane %v563, %v567
        %v569 = vlaneseq
        %v570 = vshrl.u32 %v569, 7
        %v571 = vsub.s32 1, %v570
        %v572 = vrot.slane %v563, %v571
        %v573 = vlaneseq
        %v574 = vshrl.u32 %v573, 7
        %v575 = vsub.s32 2, %v574
        %v576 = vrot.slane %v563, %v575
        %v577 = vlaneseq
        %v578 = vshrl.u32 %v577, 7
        %v579 = vsub.s32 3, %v578
        %v580 = vrot.slane %v563, %v579
        %v581 = vlaneseq
        %v582 = vshrl.u32 %v581, 7
        %v583 = vsub.s32 4, %v582
        %v584 = vrot.slane %v563, %v583
        %v585 = vlaneseq
        %v586 = vshrl.u32 %v585, 7
        %v587 = vsub.s32 5, %v586
        %v588 = vrot.slane %v563, %v587
        %v691 = vunpack.c.l.b16 %v467
        %v692 = vunpack.c.h.b16 %v467
        %v693 = vunpack.c.l.b16 %v468
        %v694 = vunpack.c.h.b16 %v468
        %v695 = vunpack.c.l.b16 %v469
        %v696 = vunpack.c.h.b16 %v469
        %v697 = vunpack.c.l.b16 %v470
        %v698 = vunpack.c.h.b16 %v470
        %v699 = vunpack.c.l.b16 %v471
        %v700 = vunpack.c.h.b16 %v471
        %v701 = vunpack.c.l.b16 %v472
        %v702 = vunpack.c.h.b16 %v472
        %v703 = vunpack.c.l.b16 %v473
        %v704 = vunpack.c.h.b16 %v473
        %v705 = vunpack.c.l.b16 %v474
        %v706 = vunpack.c.h.b16 %v474
        %v707 = vunpack.c.l.b16 %v475
        %v708 = vunpack.c.h.b16 %v475
        %v709 = vunpack.c.l.b16 %v476
        %v710 = vunpack.c.h.b16 %v476
        %v711 = vunpack.c.l.b16 %v477
        %v712 = vunpack.c.h.b16 %v477
        %v713 = vunpack.c.l.b16 %v478
        %v714 = vunpack.c.h.b16 %v478
        %v715 = vunpack.c.l.b16 %v479
        %v716 = vunpack.c.h.b16 %v479
        %v717 = vunpack.c.l.b16 %v480
        %v718 = vunpack.c.h.b16 %v480
        %v719 = vunpack.c.l.b16 %v481
        %v720 = vunpack.c.h.b16 %v481
        %v721 = vunpack.c.l.b16 %v482
        %v722 = vunpack.c.h.b16 %v482
        %v723 = vunpack.c.l.b16 %v483
        %v724 = vunpack.c.h.b16 %v483
        %v725 = vunpack.c.l.b16 %v484
        %v726 = vunpack.c.h.b16 %v484
        %v727 = vunpack.c.l.b16 %v485
        %v728 = vunpack.c.h.b16 %v485
        %v729 = vunpack.c.l.b16 %v486
        %v730 = vunpack.c.h.b16 %v486
        %v731 = vunpack.c.l.b16 %v487
        %v732 = vunpack.c.h.b16 %v487
        %v733 = vunpack.c.l.b16 %v488
        %v734 = vunpack.c.h.b16 %v488
        %v735 = vunpack.c.l.b16 %v489
        %v736 = vunpack.c.h.b16 %v489
        %v737 = vunpack.c.l.b16 %v490
        %v738 = vunpack.c.h.b16 %v490
        %v739 = vunpack.c.l.b16 %v491
        %v740 = vunpack.c.h.b16 %v491
        %v741 = vunpack.c.l.b16 %v492
        %v742 = vunpack.c.h.b16 %v492
        %v743 = vunpack.c.l.b16 %v493
        %v744 = vunpack.c.h.b16 %v493
        %v745 = vunpack.c.l.b16 %v494
        %v746 = vunpack.c.h.b16 %v494
        %v747 = vunpack.c.l.b16 %v495
        %v748 = vunpack.c.h.b16 %v495
        %v749 = vunpack.c.l.b16 %v496
        %v750 = vunpack.c.h.b16 %v496
        %v751 = vunpack.c.l.b16 %v497
        %v752 = vunpack.c.h.b16 %v497
        %v753 = vunpack.c.l.b16 %v498
        %v754 = vunpack.c.h.b16 %v498
        %v755 = vunpack.c.l.b16 %v499
        %v756 = vunpack.c.h.b16 %v499
        %v757 = vunpack.c.l.b16 %v500
        %v758 = vunpack.c.h.b16 %v500
        %v759 = vunpack.c.l.b16 %v501
        %v760 = vunpack.c.h.b16 %v501
        %v761 = vunpack.c.l.b16 %v502
        %v762 = vunpack.c.h.b16 %v502
        %v763 = vunpack.c.l.b16 %v503
        %v764 = vunpack.c.h.b16 %v503
        %v765 = vunpack.c.l.b16 %v504
        %v766 = vunpack.c.h.b16 %v504
        %v767 = vunpack.c.l.b16 %v505
        %v768 = vunpack.c.h.b16 %v505
        %v769 = vunpack.c.l.b16 %v506
        %v770 = vunpack.c.h.b16 %v506
        %v771 = vunpack.c.l.b16 %v507
        %v772 = vunpack.c.h.b16 %v507
        %v773 = vunpack.c.l.b16 %v508
        %v774 = vunpack.c.h.b16 %v508
        %v775 = vunpack.c.l.b16 %v509
        %v776 = vunpack.c.h.b16 %v509
        %v777 = vunpack.c.l.b16 %v510
        %v778 = vunpack.c.h.b16 %v510
        %v779 = vunpack.c.l.b16 %v511
        %v780 = vunpack.c.h.b16 %v511
        %v781 = vunpack.c.l.b16 %v512
        %v782 = vunpack.c.h.b16 %v512
        %v783 = vunpack.c.l.b16 %v513
        %v784 = vunpack.c.h.b16 %v513
        %v785 = vunpack.c.l.b16 %v514
        %v786 = vunpack.c.h.b16 %v514
        %v787 = vunpack.c.l.b16 %v515
        %v788 = vunpack.c.h.b16 %v515
        %v789 = vunpack.c.l.b16 %v516
        %v790 = vunpack.c.h.b16 %v516
        %v791 = vunpack.c.l.b16 %v517
        %v792 = vunpack.c.h.b16 %v517
        %v793 = vunpack.c.l.b16 %v518
        %v794 = vunpack.c.h.b16 %v518
        %v795 = vunpack.c.l.b16 %v519
        %v796 = vunpack.c.h.b16 %v519
        %v797 = vunpack.c.l.b16 %v520
        %v798 = vunpack.c.h.b16 %v520
        %v799 = vunpack.c.l.b16 %v521
        %v800 = vunpack.c.h.b16 %v521
        %v801 = vunpack.c.l.b16 %v522
        %v802 = vunpack.c.h.b16 %v522
        %v803 = vunpack.c.l.b16 %v523
        %v804 = vunpack.c.h.b16 %v523
        %v805 = vunpack.c.l.b16 %v524
        %v806 = vunpack.c.h.b16 %v524
        %v807 = vunpack.c.l.b16 %v525
        %v808 = vunpack.c.h.b16 %v525
        %v809 = vunpack.c.l.b16 %v526
        %v810 = vunpack.c.h.b16 %v526
        %v811 = vunpack.c.l.b16 %v527
        %v812 = vunpack.c.h.b16 %v527
        %v813 = vunpack.c.l.b16 %v528
        %v814 = vunpack.c.h.b16 %v528
        %v815 = vunpack.c.l.b16 %v529
        %v816 = vunpack.c.h.b16 %v529
        %v817 = vunpack.c.l.b16 %v530
        %v818 = vunpack.c.h.b16 %v530
        %v819 = vunpack.c.l.b16 %v531
        %v820 = vunpack.c.h.b16 %v531
        %v821 = vunpack.c.l.b16 %v532
        %v822 = vunpack.c.h.b16 %v532
        %v823 = vunpack.c.l.b16 %v533
        %v824 = vunpack.c.h.b16 %v533
        %v825 = vunpack.c.l.b16 %v534
        %v826 = vunpack.c.h.b16 %v534
        %v827 = vunpack.c.l.b16 %v535
        %v828 = vunpack.c.h.b16 %v535
        %v829 = vunpack.c.l.b16 %v536
        %v830 = vunpack.c.h.b16 %v536
        %v831 = vunpack.c.l.b16 %v537
        %v832 = vunpack.c.h.b16 %v537
        %v833 = vunpack.c.l.b16 %v538
        %v834 = vunpack.c.h.b16 %v538
        %v835 = vunpack.c.l.b16 %v539
        %v836 = vunpack.c.h.b16 %v539
        %v837 = vunpack.c.l.b16 %v540
        %v838 = vunpack.c.h.b16 %v540
        %v839 = vunpack.c.l.b16 %v541
        %v840 = vunpack.c.h.b16 %v541
        %v841 = vunpack.c.l.b16 %v542
        %v842 = vunpack.c.h.b16 %v542
        %v843 = vunpack.c.l.b16 %v543
        %v844 = vunpack.c.h.b16 %v543
        %v845 = vunpack.c.l.b16 %v544
        %v846 = vunpack.c.h.b16 %v544
        %v847 = vunpack.c.l.b16 %v545
        %v848 = vunpack.c.h.b16 %v545
        %v849 = vunpack.c.l.b16 %v546
        %v850 = vunpack.c.h.b16 %v546
        %v851 = vunpack.c.l.b16 %v547
        %v852 = vunpack.c.h.b16 %v547
        %v853 = vunpack.c.l.b16 %v548
        %v854 = vunpack.c.h.b16 %v548
        %v855 = vunpack.c.l.b16 %v549
        %v856 = vunpack.c.h.b16 %v549
        %v857 = vunpack.c.l.b16 %v550
        %v858 = vunpack.c.h.b16 %v550
        %v859 = vunpack.c.l.b16 %v551
        %v860 = vunpack.c.h.b16 %v551
        %v861 = vunpack.c.l.b16 %v552
        %v862 = vunpack.c.h.b16 %v552
        %v863 = vunpack.c.l.b16 %v553
        %v864 = vunpack.c.h.b16 %v553
        %v865 = vunpack.c.l.b16 %v554
        %v866 = vunpack.c.h.b16 %v554
        %v867 = vunpack.c.l.b16 %v555
        %v868 = vunpack.c.h.b16 %v555
        %v869 = vunpack.c.l.b16 %v556
        %v870 = vunpack.c.h.b16 %v556
        %v871 = vunpack.c.l.b16 %v557
        %v872 = vunpack.c.h.b16 %v557
        %v873 = vunpack.c.l.b16 %v558
        %v874 = vunpack.c.h.b16 %v558
        %v875 = vunpack.c.l.b16 %v559
        %v876 = vunpack.c.h.b16 %v559
        %v877 = vunpack.c.l.b16 %v560
        %v878 = vunpack.c.h.b16 %v560
        %v879 = vunpack.c.l.b16 %v561
        %v880 = vunpack.c.h.b16 %v561
        %v881 = vunpack.c.l.b16 %v562
        %v882 = vunpack.c.h.b16 %v562
        %v883 = vpack.c.b16 %v697, %v691
        %v884 = vpack.c.b16 %v698, %v692
        %v885 = vpack.c.b16 %v699, %v693
        %v886 = vpack.c.b16 %v700, %v694
        %v887 = vpack.c.b16 %v701, %v695
        %v888 = vpack.c.b16 %v702, %v696
        %v889 = vpack.c.b16 %v709, %v703
        %v890 = vpack.c.b16 %v710, %v704
        %v891 = vpack.c.b16 %v711, %v705
        %v892 = vpack.c.b16 %v712, %v706
        %v893 = vpack.c.b16 %v713, %v707
        %v894 = vpack.c.b16 %v714, %v708
        %v895 = vpack.c.b16 %v721, %v715
        %v896 = vpack.c.b16 %v722, %v716
        %v897 = vpack.c.b16 %v723, %v717
        %v898 = vpack.c.b16 %v724, %v718
        %v899 = vpack.c.b16 %v725, %v719
        %v900 = vpack.c.b16 %v726, %v720
        %v901 = vpack.c.b16 %v733, %v727
        %v902 = vpack.c.b16 %v734, %v728
        %v903 = vpack.c.b16 %v735, %v729
        %v904 = vpack.c.b16 %v736, %v730
        %v905 = vpack.c.b16 %v737, %v731
        %v906 = vpack.c.b16 %v738, %v732
        %v907 = vpack.c.b16 %v745, %v739
        %v908 = vpack.c.b16 %v746, %v740
        %v909 = vpack.c.b16 %v747, %v741
        %v910 = vpack.c.b16 %v748, %v742
        %v911 = vpack.c.b16 %v749, %v743
        %v912 = vpack.c.b16 %v750, %v744
        %v913 = vpack.c.b16 %v757, %v751
        %v914 = vpack.c.b16 %v758, %v752
        %v915 = vpack.c.b16 %v759, %v753
        %v916 = vpack.c.b16 %v760, %v754
        %v917 = vpack.c.b16 %v761, %v755
        %v918 = vpack.c.b16 %v762, %v756
        %v919 = vpack.c.b16 %v769, %v763
        %v920 = vpack.c.b16 %v770, %v764
        %v921 = vpack.c.b16 %v771, %v765
        %v922 = vpack.c.b16 %v772, %v766
        %v923 = vpack.c.b16 %v773, %v767
        %v924 = vpack.c.b16 %v774, %v768
        %v925 = vpack.c.b16 %v781, %v775
        %v926 = vpack.c.b16 %v782, %v776
        %v927 = vpack.c.b16 %v783, %v777
        %v928 = vpack.c.b16 %v784, %v778
        %v929 = vpack.c.b16 %v785, %v779
        %v930 = vpack.c.b16 %v786, %v780
        %v931 = vpack.c.b16 %v793, %v787
        %v932 = vpack.c.b16 %v794, %v788
        %v933 = vpack.c.b16 %v795, %v789
        %v934 = vpack.c.b16 %v796, %v790
        %v935 = vpack.c.b16 %v797, %v791
        %v936 = vpack.c.b16 %v798, %v792
        %v937 = vpack.c.b16 %v805, %v799
        %v938 = vpack.c.b16 %v806, %v800
        %v939 = vpack.c.b16 %v807, %v801
        %v940 = vpack.c.b16 %v808, %v802
        %v941 = vpack.c.b16 %v809, %v803
        %v942 = vpack.c.b16 %v810, %v804
        %v943 = vpack.c.b16 %v817, %v811
        %v944 = vpack.c.b16 %v818, %v812
        %v945 = vpack.c.b16 %v819, %v813
        %v946 = vpack.c.b16 %v820, %v814
        %v947 = vpack.c.b16 %v821, %v815
        %v948 = vpack.c.b16 %v822, %v816
        %v949 = vpack.c.b16 %v829, %v823
        %v950 = vpack.c.b16 %v830, %v824
        %v951 = vpack.c.b16 %v831, %v825
        %v952 = vpack.c.b16 %v832, %v826
        %v953 = vpack.c.b16 %v833, %v827
        %v954 = vpack.c.b16 %v834, %v828
        %v955 = vpack.c.b16 %v841, %v835
        %v956 = vpack.c.b16 %v842, %v836
        %v957 = vpack.c.b16 %v843, %v837
        %v958 = vpack.c.b16 %v844, %v838
        %v959 = vpack.c.b16 %v845, %v839
        %v960 = vpack.c.b16 %v846, %v840
        %v961 = vpack.c.b16 %v853, %v847
        %v962 = vpack.c.b16 %v854, %v848
        %v963 = vpack.c.b16 %v855, %v849
        %v964 = vpack.c.b16 %v856, %v850
        %v965 = vpack.c.b16 %v857, %v851
        %v966 = vpack.c.b16 %v858, %v852
        %v967 = vpack.c.b16 %v865, %v859
        %v968 = vpack.c.b16 %v866, %v860
        %v969 = vpack.c.b16 %v867, %v861
        %v970 = vpack.c.b16 %v868, %v862
        %v971 = vpack.c.b16 %v869, %v863
        %v972 = vpack.c.b16 %v870, %v864
        %v973 = vpack.c.b16 %v877, %v871
        %v974 = vpack.c.b16 %v878, %v872
        %v975 = vpack.c.b16 %v879, %v873
        %v976 = vpack.c.b16 %v880, %v874
        %v977 = vpack.c.b16 %v881, %v875
        %v978 = vpack.c.b16 %v882, %v876
        %1075 = vmatprep.subr.bf16.mxu0 %v884
        %1076 = vmatpush1.bf16.msra.mxu0 %v883
        %1077 = vmatprep.subr.bf16.mxu0 %v890
        %1078 = vmatpush1.bf16.msra.mxu0 %v889
        %1079 = vmatprep.subr.bf16.mxu0 %v896
        %1080 = vmatpush1.bf16.msra.mxu0 %v895
        %1081 = vmatprep.subr.bf16.mxu0 %v902
        %1082 = vmatpush1.bf16.msra.mxu0 %v901
        %1083 = vmatprep.subr.bf16.mxu0 %v908
        %1084 = vmatpush1.bf16.msra.mxu0 %v907
        %1085 = vmatprep.subr.bf16.mxu0 %v914
        %1086 = vmatpush1.bf16.msra.mxu0 %v913
        %1087 = vmatprep.subr.bf16.mxu0 %v920
        %1088 = vmatpush1.bf16.msra.mxu0 %v919
        %1089 = vmatprep.subr.bf16.mxu0 %v926
        %1090 = vmatpush1.bf16.msra.mxu0 %v925
        %1091 = vmatprep.subr.bf16.mxu0 %v932
        %1092 = vmatpush1.bf16.msra.mxu0 %v931
        %1093 = vmatprep.subr.bf16.mxu0 %v938
        %1094 = vmatpush1.bf16.msra.mxu0 %v937
        %1095 = vmatprep.subr.bf16.mxu0 %v944
        %1096 = vmatpush1.bf16.msra.mxu0 %v943
        %1097 = vmatprep.subr.bf16.mxu0 %v950
        %1098 = vmatpush1.bf16.msra.mxu0 %v949
        %1099 = vmatprep.subr.bf16.mxu0 %v956
        %1100 = vmatpush1.bf16.msra.mxu0 %v955
        %1101 = vmatprep.subr.bf16.mxu0 %v962
        %1102 = vmatpush1.bf16.msra.mxu0 %v961
        %1103 = vmatprep.subr.bf16.mxu0 %v968
        %1104 = vmatpush1.bf16.msra.mxu0 %v967
        %1105 = vmatprep.subr.bf16.mxu0 %v974
        %1106 = vmatpush1.bf16.msra.mxu0 %v973
        %1107 = vmatprep.mubr.bf16.mxu0 %v464
        %1108 = vmatmul.mubr.bf16.gmra.mrb[0].mxu0 %v463
        %v1109 = vpop.f32.mrb[0].mxu0
        %v1110 = vadd.f32 %v568, %v1109
        %v1111 = vpop.f32.mrb[0].mxu0
        %v1112 = vadd.f32 %v572, %v1111
        %v1113 = vpop.f32.mrb[0].mxu0
        %v1114 = vadd.f32 %v568, %v1113
        %v1115 = vpop.f32.mrb[0].mxu0
        %v1116 = vadd.f32 %v572, %v1115
        %1117 = vdwg.mxu0
        %1118 = vmatprep.subr.bf16.mxu0 %v886
        %1119 = vmatpush1.bf16.msra.mxu0 %v885
        %1120 = vmatprep.subr.bf16.mxu0 %v892
        %1121 = vmatpush1.bf16.msra.mxu0 %v891
        %1122 = vmatprep.subr.bf16.mxu0 %v898
        %1123 = vmatpush1.bf16.msra.mxu0 %v897
        %1124 = vmatprep.subr.bf16.mxu0 %v904
        %1125 = vmatpush1.bf16.msra.mxu0 %v903
        %1126 = vmatprep.subr.bf16.mxu0 %v910
        %1127 = vmatpush1.bf16.msra.mxu0 %v909
        %1128 = vmatprep.subr.bf16.mxu0 %v916
        %1129 = vmatpush1.bf16.msra.mxu0 %v915
        %1130 = vmatprep.subr.bf16.mxu0 %v922
        %1131 = vmatpush1.bf16.msra.mxu0 %v921
        %1132 = vmatprep.subr.bf16.mxu0 %v928
        %1133 = vmatpush1.bf16.msra.mxu0 %v927
        %1134 = vmatprep.subr.bf16.mxu0 %v934
        %1135 = vmatpush1.bf16.msra.mxu0 %v933
        %1136 = vmatprep.subr.bf16.mxu0 %v940
        %1137 = vmatpush1.bf16.msra.mxu0 %v939
        %1138 = vmatprep.subr.bf16.mxu0 %v946
        %1139 = vmatpush1.bf16.msra.mxu0 %v945
        %1140 = vmatprep.subr.bf16.mxu0 %v952
        %1141 = vmatpush1.bf16.msra.mxu0 %v951
        %1142 = vmatprep.subr.bf16.mxu0 %v958
        %1143 = vmatpush1.bf16.msra.mxu0 %v957
        %1144 = vmatprep.subr.bf16.mxu0 %v964
        %1145 = vmatpush1.bf16.msra.mxu0 %v963
        %1146 = vmatprep.subr.bf16.mxu0 %v970
        %1147 = vmatpush1.bf16.msra.mxu0 %v969
        %1148 = vmatprep.subr.bf16.mxu0 %v976
        %1149 = vmatpush1.bf16.msra.mxu0 %v975
        %1150 = vmatprep.mubr.bf16.mxu0 %v464
        %1151 = vmatmul.mubr.bf16.gmra.mrb[0].mxu0 %v463
        %v1152 = vpop.f32.mrb[0].mxu0
        %v1153 = vadd.f32 %v576, %v1152
        %v1154 = vpop.f32.mrb[0].mxu0
        %v1155 = vadd.f32 %v580, %v1154
        %v1156 = vpop.f32.mrb[0].mxu0
        %v1157 = vadd.f32 %v576, %v1156
        %v1158 = vpop.f32.mrb[0].mxu0
        %v1159 = vadd.f32 %v580, %v1158
        %1160 = vdwg.mxu0
        %1161 = vmatprep.subr.bf16.mxu0 %v888
        %1162 = vmatpush1.bf16.msra.mxu0 %v887
        %1163 = vmatprep.subr.bf16.mxu0 %v894
        %1164 = vmatpush1.bf16.msra.mxu0 %v893
        %1165 = vmatprep.subr.bf16.mxu0 %v900
        %1166 = vmatpush1.bf16.msra.mxu0 %v899
        %1167 = vmatprep.subr.bf16.mxu0 %v906
        %1168 = vmatpush1.bf16.msra.mxu0 %v905
        %1169 = vmatprep.subr.bf16.mxu0 %v912
        %1170 = vmatpush1.bf16.msra.mxu0 %v911
        %1171 = vmatprep.subr.bf16.mxu0 %v918
        %1172 = vmatpush1.bf16.msra.mxu0 %v917
        %1173 = vmatprep.subr.bf16.mxu0 %v924
        %1174 = vmatpush1.bf16.msra.mxu0 %v923
        %1175 = vmatprep.subr.bf16.mxu0 %v930
        %1176 = vmatpush1.bf16.msra.mxu0 %v929
        %1177 = vmatprep.subr.bf16.mxu0 %v936
        %1178 = vmatpush1.bf16.msra.mxu0 %v935
        %1179 = vmatprep.subr.bf16.mxu0 %v942
        %1180 = vmatpush1.bf16.msra.mxu0 %v941
        %1181 = vmatprep.subr.bf16.mxu0 %v948
        %1182 = vmatpush1.bf16.msra.mxu0 %v947
        %1183 = vmatprep.subr.bf16.mxu0 %v954
        %1184 = vmatpush1.bf16.msra.mxu0 %v953
        %1185 = vmatprep.subr.bf16.mxu0 %v960
        %1186 = vmatpush1.bf16.msra.mxu0 %v959
        %1187 = vmatprep.subr.bf16.mxu0 %v966
        %1188 = vmatpush1.bf16.msra.mxu0 %v965
        %1189 = vmatprep.subr.bf16.mxu0 %v972
        %1190 = vmatpush1.bf16.msra.mxu0 %v971
        %1191 = vmatprep.subr.bf16.mxu0 %v978
        %1192 = vmatpush1.bf16.msra.mxu0 %v977
        %1193 = vmatprep.mubr.bf16.mxu0 %v464
        %1194 = vmatmul.mubr.bf16.gmra.mrb[0].mxu0 %v463
        %v1195 = vpop.f32.mrb[0].mxu0
        %v1196 = vadd.f32 %v584, %v1195
        %v1197 = vpop.f32.mrb[0].mxu0
        %v1198 = vadd.f32 %v588, %v1197
        %v1199 = vpop.f32.mrb[0].mxu0
        %v1200 = vadd.f32 %v584, %v1199
        %v1201 = vpop.f32.mrb[0].mxu0
        %v1202 = vadd.f32 %v588, %v1201
        %1203 = vdwg.mxu0
        %v1204 = vmul.f32 %v1110, 0.088388346
        %v1205 = vmul.f32 %v1112, 0.088388346
        %v1206 = vmul.f32 %v1114, 0.088388346
        %v1207 = vmul.f32 %v1116, 0.088388346
        %v1208 = vpack.c.bf16 %v1206, %v1204
        %v1209 = vpack.c.bf16 %v1207, %v1205
        %v1212 = vunpack.c.l.b16 %v1208
        %v1213 = vunpack.c.l.b16 %v1209
        %v1214 = vunpack.c.h.b16 %v1208
        %v1215 = vunpack.c.h.b16 %v1209
        %v1216 = vpack.c.b16 %v1213, %v1212
        %v1217 = vpack.c.b16 %v1215, %v1214
        %v1220 = vrot.slane %v1216, 4
        %v1221 = vrot.slane %v1217, 4
        %v1224 = vpack.c.bf16 %v1157, %v1153
        %v1225 = vpack.c.bf16 %v1159, %v1155
        %v1228 = vunpack.c.l.b16 %v1224
        %v1229 = vunpack.c.l.b16 %v1225
        %v1230 = vunpack.c.h.b16 %v1224
        %v1231 = vunpack.c.h.b16 %v1225
        %v1232 = vpack.c.b16 %v1229, %v1228
        %v1233 = vpack.c.b16 %v1231, %v1230
        %v1236 = vrot.slane %v1232, 4
        %v1237 = vrot.slane %v1233, 4
        %v1240 = vpack.c.bf16 %v1200, %v1196
        %v1241 = vpack.c.bf16 %v1202, %v1198
        %v1244 = vunpack.c.l.b16 %v1240
        %v1245 = vunpack.c.l.b16 %v1241
        %v1246 = vunpack.c.h.b16 %v1240
        %v1247 = vunpack.c.h.b16 %v1241
        %v1248 = vpack.c.b16 %v1245, %v1244
        %v1249 = vpack.c.b16 %v1247, %v1246
        %v1250 = vrot.slane %v1248, 4
        %v1251 = vrot.slane %v1249, 4
        %1252 = vmatprep.subr.bf16.mxu0 0
        %1253 = vmatpush1.bf16.xpose.msra.mxu0 %v1232
        %1254 = vmatprep.subr.bf16.mxu0 0
        %1255 = vmatpush1.bf16.xpose.msra.mxu0 0
        %1256 = vmatprep.subr.bf16.mxu0 0
        %1257 = vmatpush1.bf16.xpose.msra.mxu0 0
        %1258 = vmatprep.subr.bf16.mxu0 0
        %1259 = vmatpush1.bf16.xpose.msra.mxu0 0
        %1260 = vmatprep.subr.bf16.mxu0 0
        %1261 = vmatpush1.bf16.xpose.msra.mxu0 0
        %1262 = vmatprep.subr.bf16.mxu0 0
        %1263 = vmatpush1.bf16.xpose.msra.mxu0 0
        %1264 = vmatprep.subr.bf16.mxu0 0
        %1265 = vmatpush1.bf16.xpose.msra.mxu0 0
        %1266 = vmatprep.subr.bf16.mxu0 0
        %1267 = vmatpush1.bf16.xpose.msra.mxu0 0
        %1268 = vmatprep.subr.bf16.mxu0 0
        %1269 = vmatpush1.bf16.xpose.msra.mxu0 0
        %1270 = vmatprep.subr.bf16.mxu0 0
        %1271 = vmatpush1.bf16.xpose.msra.mxu0 0
        %1272 = vmatprep.subr.bf16.mxu0 0
        %1273 = vmatpush1.bf16.xpose.msra.mxu0 0
        %1274 = vmatprep.subr.bf16.mxu0 0
        %1275 = vmatpush1.bf16.xpose.msra.mxu0 0
        %1276 = vmatprep.subr.bf16.mxu0 0
        %1277 = vmatpush1.bf16.xpose.msra.mxu0 0
        %1278 = vmatprep.subr.bf16.mxu0 0
        %1279 = vmatpush1.bf16.xpose.msra.mxu0 0
        %1280 = vmatprep.subr.bf16.mxu0 0
        %1281 = vmatpush1.bf16.xpose.msra.mxu0 0
        %1282 = vmatprep.subr.bf16.mxu0 0
        %1283 = vmatpush1.bf16.xpose.msra.mxu0 0
        %1284 = vmatprep.mubr.bf16.mxu0 0
        %1285 = vmatmul.mubr.bf16.gmra.mrb[0].mxu0 %v1216
        %v1286 = vpop.f32.mrb[0].mxu0
        %v1287 = vadd.f32 0.0, %v1286
        %v1288 = vpop.f32.mrb[0].mxu0
        %v1289 = vpop.f32.mrb[0].mxu0
        %v1290 = vpop.f32.mrb[0].mxu0
        %1291 = vdwg.mxu0
        %1292 = vmatprep.subr.bf16.mxu0 0
        %1293 = vmatpush1.bf16.xpose.msra.mxu0 %v1233
        %1294 = vmatprep.subr.bf16.mxu0 0
        %1295 = vmatpush1.bf16.xpose.msra.mxu0 0
        %1296 = vmatprep.subr.bf16.mxu0 0
        %1297 = vmatpush1.bf16.xpose.msra.mxu0 0
        %1298 = vmatprep.subr.bf16.mxu0 0
        %1299 = vmatpush1.bf16.xpose.msra.mxu0 0
        %1300 = vmatprep.subr.bf16.mxu0 0
        %1301 = vmatpush1.bf16.xpose.msra.mxu0 0
        %1302 = vmatprep.subr.bf16.mxu0 0
        %1303 = vmatpush1.bf16.xpose.msra.mxu0 0
        %1304 = vmatprep.subr.bf16.mxu0 0
        %1305 = vmatpush1.bf16.xpose.msra.mxu0 0
        %1306 = vmatprep.subr.bf16.mxu0 0
        %1307 = vmatpush1.bf16.xpose.msra.mxu0 0
        %1308 = vmatprep.subr.bf16.mxu0 0
        %1309 = vmatpush1.bf16.xpose.msra.mxu0 0
        %1310 = vmatprep.subr.bf16.mxu0 0
        %1311 = vmatpush1.bf16.xpose.msra.mxu0 0
        %1312 = vmatprep.subr.bf16.mxu0 0
        %1313 = vmatpush1.bf16.xpose.msra.mxu0 0
        %1314 = vmatprep.subr.bf16.mxu0 0
        %1315 = vmatpush1.bf16.xpose.msra.mxu0 0
        %1316 = vmatprep.subr.bf16.mxu0 0
        %1317 = vmatpush1.bf16.xpose.msra.mxu0 0
        %1318 = vmatprep.subr.bf16.mxu0 0
        %1319 = vmatpush1.bf16.xpose.msra.mxu0 0
        %1320 = vmatprep.subr.bf16.mxu0 0
        %1321 = vmatpush1.bf16.xpose.msra.mxu0 0
        %1322 = vmatprep.subr.bf16.mxu0 0
        %1323 = vmatpush1.bf16.xpose.msra.mxu0 0
        %1324 = vmatprep.mubr.bf16.mxu0 0
        %1325 = vmatmul.mubr.bf16.gmra.mrb[0].mxu0 %v1217
        %v1326 = vpop.f32.mrb[0].mxu0
        %v1327 = vadd.f32 0.0, %v1326
        %v1328 = vpop.f32.mrb[0].mxu0
        %v1329 = vpop.f32.mrb[0].mxu0
        %v1330 = vpop.f32.mrb[0].mxu0
        %1331 = vdwg.mxu0
        %1332 = vmatprep.subr.bf16.mxu0 0
        %1333 = vmatpush1.bf16.xpose.msra.mxu0 %v1236
        %1334 = vmatprep.subr.bf16.mxu0 0
        %1335 = vmatpush1.bf16.xpose.msra.mxu0 0
        %1336 = vmatprep.subr.bf16.mxu0 0
        %1337 = vmatpush1.bf16.xpose.msra.mxu0 0
        %1338 = vmatprep.subr.bf16.mxu0 0
        %1339 = vmatpush1.bf16.xpose.msra.mxu0 0
        %1340 = vmatprep.subr.bf16.mxu0 0
        %1341 = vmatpush1.bf16.xpose.msra.mxu0 0
        %1342 = vmatprep.subr.bf16.mxu0 0
        %1343 = vmatpush1.bf16.xpose.msra.mxu0 0
        %1344 = vmatprep.subr.bf16.mxu0 0
        %1345 = vmatpush1.bf16.xpose.msra.mxu0 0
        %1346 = vmatprep.subr.bf16.mxu0 0
        %1347 = vmatpush1.bf16.xpose.msra.mxu0 0
        %1348 = vmatprep.subr.bf16.mxu0 0
        %1349 = vmatpush1.bf16.xpose.msra.mxu0 0
        %1350 = vmatprep.subr.bf16.mxu0 0
        %1351 = vmatpush1.bf16.xpose.msra.mxu0 0
        %1352 = vmatprep.subr.bf16.mxu0 0
        %1353 = vmatpush1.bf16.xpose.msra.mxu0 0
        %1354 = vmatprep.subr.bf16.mxu0 0
        %1355 = vmatpush1.bf16.xpose.msra.mxu0 0
        %1356 = vmatprep.subr.bf16.mxu0 0
        %1357 = vmatpush1.bf16.xpose.msra.mxu0 0
        %1358 = vmatprep.subr.bf16.mxu0 0
        %1359 = vmatpush1.bf16.xpose.msra.mxu0 0
        %1360 = vmatprep.subr.bf16.mxu0 0
        %1361 = vmatpush1.bf16.xpose.msra.mxu0 0
        %1362 = vmatprep.subr.bf16.mxu0 0
        %1363 = vmatpush1.bf16.xpose.msra.mxu0 0
        %1364 = vmatprep.mubr.bf16.mxu0 0
        %1365 = vmatmul.mubr.bf16.gmra.mrb[0].mxu0 %v1220
        %v1366 = vpop.f32.mrb[0].mxu0
        %v1367 = vadd.f32 0.0, %v1366
        %v1368 = vpop.f32.mrb[0].mxu0
        %v1369 = vpop.f32.mrb[0].mxu0
        %v1370 = vpop.f32.mrb[0].mxu0
        %1371 = vdwg.mxu0
        %1372 = vmatprep.subr.bf16.mxu0 0
        %1373 = vmatpush1.bf16.xpose.msra.mxu0 %v1237
        %1374 = vmatprep.subr.bf16.mxu0 0
        %1375 = vmatpush1.bf16.xpose.msra.mxu0 0
        %1376 = vmatprep.subr.bf16.mxu0 0
        %1377 = vmatpush1.bf16.xpose.msra.mxu0 0
        %1378 = vmatprep.subr.bf16.mxu0 0
        %1379 = vmatpush1.bf16.xpose.msra.mxu0 0
        %1380 = vmatprep.subr.bf16.mxu0 0
        %1381 = vmatpush1.bf16.xpose.msra.mxu0 0
        %1382 = vmatprep.subr.bf16.mxu0 0
        %1383 = vmatpush1.bf16.xpose.msra.mxu0 0
        %1384 = vmatprep.subr.bf16.mxu0 0
        %1385 = vmatpush1.bf16.xpose.msra.mxu0 0
        %1386 = vmatprep.subr.bf16.mxu0 0
        %1387 = vmatpush1.bf16.xpose.msra.mxu0 0
        %1388 = vmatprep.subr.bf16.mxu0 0
        %1389 = vmatpush1.bf16.xpose.msra.mxu0 0
        %1390 = vmatprep.subr.bf16.mxu0 0
        %1391 = vmatpush1.bf16.xpose.msra.mxu0 0
        %1392 = vmatprep.subr.bf16.mxu0 0
        %1393 = vmatpush1.bf16.xpose.msra.mxu0 0
        %1394 = vmatprep.subr.bf16.mxu0 0
        %1395 = vmatpush1.bf16.xpose.msra.mxu0 0
        %1396 = vmatprep.subr.bf16.mxu0 0
        %1397 = vmatpush1.bf16.xpose.msra.mxu0 0
        %1398 = vmatprep.subr.bf16.mxu0 0
        %1399 = vmatpush1.bf16.xpose.msra.mxu0 0
        %1400 = vmatprep.subr.bf16.mxu0 0
        %1401 = vmatpush1.bf16.xpose.msra.mxu0 0
        %1402 = vmatprep.subr.bf16.mxu0 0
        %1403 = vmatpush1.bf16.xpose.msra.mxu0 0
        %1404 = vmatprep.mubr.bf16.mxu0 0
        %1405 = vmatmul.mubr.bf16.gmra.mrb[0].mxu0 %v1221
        %v1406 = vpop.f32.mrb[0].mxu0
        %v1407 = vadd.f32 0.0, %v1406
        %v1408 = vpop.f32.mrb[0].mxu0
        %v1409 = vpop.f32.mrb[0].mxu0
        %v1410 = vpop.f32.mrb[0].mxu0
        %1411 = vdwg.mxu0
        %vm1412 = vcmask 64512
        %v1413 = vsel %vm1412, %v1287, -inf
        %1414 = vmax.xlane.f32.xlu0 %v1413
        %v1415 = vpop.xlane.xlu0 %1414
        %v1416 = vsel %vm1412, %v1327, -inf
        %1417 = vmax.xlane.f32.xlu0 %v1416
        %v1418 = vpop.xlane.xlu0 %1417
        %v1419 = vsel %vm1412, %v1367, -inf
        %1420 = vmax.xlane.f32.xlu0 %v1419
        %v1421 = vpop.xlane.xlu0 %1420
        %v1422 = vsel %vm1412, %v1407, -inf
        %1423 = vmax.xlane.f32.xlu0 %v1422
        %v1424 = vpop.xlane.xlu0 %1423
        %v1425 = vsub.f32 %v1287, %v1415
        %v1426 = vsub.f32 %v1327, %v1418
        %v1427 = vsub.f32 %v1367, %v1421
        %v1428 = vsub.f32 %v1407, %v1424
        %v1429 = vmul.f32 %v1425, 1.442695
        %v1430 = vpow.pop %v1429
        %v1431 = vmul.f32 %v1426, 1.442695
        %v1432 = vpow.pop %v1431
        %v1433 = vmul.f32 %v1427, 1.442695
        %v1434 = vpow.pop %v1433
        %v1435 = vmul.f32 %v1428, 1.442695
        %v1436 = vpow.pop %v1435
        %v1437 = vsel %vm1412, %v1430, 0.0
        %1438 = vadd.xlane.f32.xlu0 %v1437
        %v1439 = vpop.xlane.xlu0 %1438
        %v1440 = vsel %vm1412, %v1432, 0.0
        %1441 = vadd.xlane.f32.xlu0 %v1440
        %v1442 = vpop.xlane.xlu0 %1441
        %v1443 = vsel %vm1412, %v1434, 0.0
        %1444 = vadd.xlane.f32.xlu0 %v1443
        %v1445 = vpop.xlane.xlu0 %1444
        %v1446 = vsel %vm1412, %v1436, 0.0
        %1447 = vadd.xlane.f32.xlu0 %v1446
        %v1448 = vpop.xlane.xlu0 %1447
        %v1449 = vrcp.pop %v1439
        %v1450 = vrcp.pop %v1442
        %v1451 = vrcp.pop %v1445
        %v1452 = vrcp.pop %v1448
        %v1453 = vmul.f32 %v1430, %v1449
        %v1454 = vmul.f32 %v1432, %v1450
        %v1455 = vmul.f32 %v1434, %v1451
        %v1456 = vmul.f32 %v1436, %v1452
        %v1457 = vpack.c.bf16 %v1453, %v1453
        %v1458 = vpack.c.bf16 %v1454, %v1454
        %v1459 = vpack.c.bf16 %v1455, %v1455
        %v1460 = vpack.c.bf16 %v1456, %v1456
        %v1462 = vsel %vm1412, %v1457, 0
        %vm1464 = vcmask 1043456
        %v1466 = vsel %vm1464, %v1248, 0
        %1468 = vmatprep.subr.bf16.mxu0 0
        %1469 = vmatpush1.bf16.msra.mxu0 %v1466
        %1470 = vmatprep.subr.bf16.mxu0 0
        %1471 = vmatpush1.bf16.msra.mxu0 0
        %1472 = vmatprep.subr.bf16.mxu0 0
        %1473 = vmatpush1.bf16.msra.mxu0 0
        %1474 = vmatprep.subr.bf16.mxu0 0
        %1475 = vmatpush1.bf16.msra.mxu0 0
        %1476 = vmatprep.subr.bf16.mxu0 0
        %1477 = vmatpush1.bf16.msra.mxu0 0
        %1478 = vmatprep.subr.bf16.mxu0 0
        %1479 = vmatpush1.bf16.msra.mxu0 0
        %1480 = vmatprep.subr.bf16.mxu0 0
        %1481 = vmatpush1.bf16.msra.mxu0 0
        %1482 = vmatprep.subr.bf16.mxu0 0
        %1483 = vmatpush1.bf16.msra.mxu0 0
        %1484 = vmatprep.subr.bf16.mxu0 0
        %1485 = vmatpush1.bf16.msra.mxu0 0
        %1486 = vmatprep.subr.bf16.mxu0 0
        %1487 = vmatpush1.bf16.msra.mxu0 0
        %1488 = vmatprep.subr.bf16.mxu0 0
        %1489 = vmatpush1.bf16.msra.mxu0 0
        %1490 = vmatprep.subr.bf16.mxu0 0
        %1491 = vmatpush1.bf16.msra.mxu0 0
        %1492 = vmatprep.subr.bf16.mxu0 0
        %1493 = vmatpush1.bf16.msra.mxu0 0
        %1494 = vmatprep.subr.bf16.mxu0 0
        %1495 = vmatpush1.bf16.msra.mxu0 0
        %1496 = vmatprep.subr.bf16.mxu0 0
        %1497 = vmatpush1.bf16.msra.mxu0 0
        %1498 = vmatprep.subr.bf16.mxu0 0
        %1499 = vmatpush1.bf16.msra.mxu0 0
        %1500 = vmatprep.mubr.bf16.mxu0 0
        %1501 = vmatmul.mubr.bf16.gmra.mrb[0].mxu0 %v1462
        %v1502 = vpop.f32.mrb[0].mxu0
        %v1503 = vadd.f32 0.0, %v1502
        %v1504 = vpop.f32.mrb[0].mxu0
        %v1505 = vpop.f32.mrb[0].mxu0
        %v1506 = vpop.f32.mrb[0].mxu0
        %1507 = vdwg.mxu0
        %v1509 = vsel %vm1412, %v1458, 0
        %v1512 = vsel %vm1464, %v1249, 0
        %1514 = vmatprep.subr.bf16.mxu0 0
        %1515 = vmatpush1.bf16.msra.mxu0 %v1512
        %1516 = vmatprep.subr.bf16.mxu0 0
        %1517 = vmatpush1.bf16.msra.mxu0 0
        %1518 = vmatprep.subr.bf16.mxu0 0
        %1519 = vmatpush1.bf16.msra.mxu0 0
        %1520 = vmatprep.subr.bf16.mxu0 0
        %1521 = vmatpush1.bf16.msra.mxu0 0
        %1522 = vmatprep.subr.bf16.mxu0 0
        %1523 = vmatpush1.bf16.msra.mxu0 0
        %1524 = vmatprep.subr.bf16.mxu0 0
        %1525 = vmatpush1.bf16.msra.mxu0 0
        %1526 = vmatprep.subr.bf16.mxu0 0
        %1527 = vmatpush1.bf16.msra.mxu0 0
        %1528 = vmatprep.subr.bf16.mxu0 0
        %1529 = vmatpush1.bf16.msra.mxu0 0
        %1530 = vmatprep.subr.bf16.mxu0 0
        %1531 = vmatpush1.bf16.msra.mxu0 0
        %1532 = vmatprep.subr.bf16.mxu0 0
        %1533 = vmatpush1.bf16.msra.mxu0 0
        %1534 = vmatprep.subr.bf16.mxu0 0
        %1535 = vmatpush1.bf16.msra.mxu0 0
        %1536 = vmatprep.subr.bf16.mxu0 0
        %1537 = vmatpush1.bf16.msra.mxu0 0
        %1538 = vmatprep.subr.bf16.mxu0 0
        %1539 = vmatpush1.bf16.msra.mxu0 0
        %1540 = vmatprep.subr.bf16.mxu0 0
        %1541 = vmatpush1.bf16.msra.mxu0 0
        %1542 = vmatprep.subr.bf16.mxu0 0
        %1543 = vmatpush1.bf16.msra.mxu0 0
        %1544 = vmatprep.subr.bf16.mxu0 0
        %1545 = vmatpush1.bf16.msra.mxu0 0
        %1546 = vmatprep.mubr.bf16.mxu0 0
        %1547 = vmatmul.mubr.bf16.gmra.mrb[0].mxu0 %v1509
        %v1548 = vpop.f32.mrb[0].mxu0
        %v1549 = vadd.f32 0.0, %v1548
        %v1550 = vpop.f32.mrb[0].mxu0
        %v1551 = vpop.f32.mrb[0].mxu0
        %v1552 = vpop.f32.mrb[0].mxu0
        %1553 = vdwg.mxu0
        %v1555 = vsel %vm1412, %v1459, 0
        %v1558 = vsel %vm1464, %v1250, 0
        %1560 = vmatprep.subr.bf16.mxu0 0
        %1561 = vmatpush1.bf16.msra.mxu0 %v1558
        %1562 = vmatprep.subr.bf16.mxu0 0
        %1563 = vmatpush1.bf16.msra.mxu0 0
        %1564 = vmatprep.subr.bf16.mxu0 0
        %1565 = vmatpush1.bf16.msra.mxu0 0
        %1566 = vmatprep.subr.bf16.mxu0 0
        %1567 = vmatpush1.bf16.msra.mxu0 0
        %1568 = vmatprep.subr.bf16.mxu0 0
        %1569 = vmatpush1.bf16.msra.mxu0 0
        %1570 = vmatprep.subr.bf16.mxu0 0
        %1571 = vmatpush1.bf16.msra.mxu0 0
        %1572 = vmatprep.subr.bf16.mxu0 0
        %1573 = vmatpush1.bf16.msra.mxu0 0
        %1574 = vmatprep.subr.bf16.mxu0 0
        %1575 = vmatpush1.bf16.msra.mxu0 0
        %1576 = vmatprep.subr.bf16.mxu0 0
        %1577 = vmatpush1.bf16.msra.mxu0 0
        %1578 = vmatprep.subr.bf16.mxu0 0
        %1579 = vmatpush1.bf16.msra.mxu0 0
        %1580 = vmatprep.subr.bf16.mxu0 0
        %1581 = vmatpush1.bf16.msra.mxu0 0
        %1582 = vmatprep.subr.bf16.mxu0 0
        %1583 = vmatpush1.bf16.msra.mxu0 0
        %1584 = vmatprep.subr.bf16.mxu0 0
        %1585 = vmatpush1.bf16.msra.mxu0 0
        %1586 = vmatprep.subr.bf16.mxu0 0
        %1587 = vmatpush1.bf16.msra.mxu0 0
        %1588 = vmatprep.subr.bf16.mxu0 0
        %1589 = vmatpush1.bf16.msra.mxu0 0
        %1590 = vmatprep.subr.bf16.mxu0 0
        %1591 = vmatpush1.bf16.msra.mxu0 0
        %1592 = vmatprep.mubr.bf16.mxu0 0
        %1593 = vmatmul.mubr.bf16.gmra.mrb[0].mxu0 %v1555
        %v1594 = vpop.f32.mrb[0].mxu0
        %v1595 = vadd.f32 0.0, %v1594
        %v1596 = vpop.f32.mrb[0].mxu0
        %v1597 = vpop.f32.mrb[0].mxu0
        %v1598 = vpop.f32.mrb[0].mxu0
        %1599 = vdwg.mxu0
        %v1601 = vsel %vm1412, %v1460, 0
        %v1604 = vsel %vm1464, %v1251, 0
        %1606 = vmatprep.subr.bf16.mxu0 0
        %1607 = vmatpush1.bf16.msra.mxu0 %v1604
        %1608 = vmatprep.subr.bf16.mxu0 0
        %1609 = vmatpush1.bf16.msra.mxu0 0
        %1610 = vmatprep.subr.bf16.mxu0 0
        %1611 = vmatpush1.bf16.msra.mxu0 0
        %1612 = vmatprep.subr.bf16.mxu0 0
        %1613 = vmatpush1.bf16.msra.mxu0 0
        %1614 = vmatprep.subr.bf16.mxu0 0
        %1615 = vmatpush1.bf16.msra.mxu0 0
        %1616 = vmatprep.subr.bf16.mxu0 0
        %1617 = vmatpush1.bf16.msra.mxu0 0
        %1618 = vmatprep.subr.bf16.mxu0 0
        %1619 = vmatpush1.bf16.msra.mxu0 0
        %1620 = vmatprep.subr.bf16.mxu0 0
        %1621 = vmatpush1.bf16.msra.mxu0 0
        %1622 = vmatprep.subr.bf16.mxu0 0
        %1623 = vmatpush1.bf16.msra.mxu0 0
        %1624 = vmatprep.subr.bf16.mxu0 0
        %1625 = vmatpush1.bf16.msra.mxu0 0
        %1626 = vmatprep.subr.bf16.mxu0 0
        %1627 = vmatpush1.bf16.msra.mxu0 0
        %1628 = vmatprep.subr.bf16.mxu0 0
        %1629 = vmatpush1.bf16.msra.mxu0 0
        %1630 = vmatprep.subr.bf16.mxu0 0
        %1631 = vmatpush1.bf16.msra.mxu0 0
        %1632 = vmatprep.subr.bf16.mxu0 0
        %1633 = vmatpush1.bf16.msra.mxu0 0
        %1634 = vmatprep.subr.bf16.mxu0 0
        %1635 = vmatpush1.bf16.msra.mxu0 0
        %1636 = vmatprep.subr.bf16.mxu0 0
        %1637 = vmatpush1.bf16.msra.mxu0 0
        %1638 = vmatprep.mubr.bf16.mxu0 0
        %1639 = vmatmul.mubr.bf16.gmra.mrb[0].mxu0 %v1601
        %v1640 = vpop.f32.mrb[0].mxu0
        %v1641 = vadd.f32 0.0, %v1640
        %v1642 = vpop.f32.mrb[0].mxu0
        %v1643 = vpop.f32.mrb[0].mxu0
        %v1644 = vpop.f32.mrb[0].mxu0
        %1645 = vdwg.mxu0
        %v1646 = vpack.c.bf16 %v1549, %v1503
        %v1647 = vpack.c.bf16 %v1641, %v1595
        %v1648 = vld [vmem:[%s382 + $0x18] sm:$0xff]
        %v1649 = vld [vmem:[%s382 + $0x68] sm:$0xff]
        %v1650 = vld [vmem:[%s382 + $0xb8] sm:$0xff]
        %v1651 = vld [vmem:[%s382 + $0x108] sm:$0xff]
        %v1652 = vld [vmem:[%s382 + $0x158] sm:$0xff]
        %v1653 = vld [vmem:[%s382 + $0x1a8] sm:$0xff]
        %v1654 = vld [vmem:[%s382 + $0x1f8] sm:$0xff]
        %v1655 = vld [vmem:[%s382 + $0x248] sm:$0xff]
        %v1656 = vld [vmem:[%s382 + $0x298] sm:$0xff]
        %v1657 = vld [vmem:[%s382 + $0x2e8] sm:$0xff]
        %v1658 = vld [vmem:[%s382 + $0x338] sm:$0xff]
        %v1659 = vld [vmem:[%s382 + $0x388] sm:$0xff]
        %v1660 = vld [vmem:[%s382 + $0x3d8] sm:$0xff]
        %v1661 = vld [vmem:[%s382 + $0x428] sm:$0xff]
        %v1662 = vld [vmem:[%s382 + $0x478] sm:$0xff]
        %v1663 = vld [vmem:[%s382 + $0x4c8] sm:$0xff]
        %v1664 = vld [vmem:[%s382 + $0x518] sm:$0xff]
        %v1665 = vld [vmem:[%s382 + $0x568] sm:$0xff]
        %v1666 = vld [vmem:[%s382 + $0x5b8] sm:$0xff]
        %v1667 = vld [vmem:[%s382 + $0x608] sm:$0xff]
        %v1668 = vld [vmem:[%s382 + $0x658] sm:$0xff]
        %v1669 = vld [vmem:[%s382 + $0x6a8] sm:$0xff]
        %v1670 = vld [vmem:[%s382 + $0x6f8] sm:$0xff]
        %v1671 = vld [vmem:[%s382 + $0x748] sm:$0xff]
        %v1672 = vld [vmem:[%s382 + $0x798] sm:$0xff]
        %v1673 = vld [vmem:[%s382 + $0x7e8] sm:$0xff]
        %v1674 = vld [vmem:[%s382 + $0x838] sm:$0xff]
        %v1675 = vld [vmem:[%s382 + $0x888] sm:$0xff]
        %v1676 = vld [vmem:[%s382 + $0x8d8] sm:$0xff]
        %v1677 = vld [vmem:[%s382 + $0x928] sm:$0xff]
        %v1678 = vld [vmem:[%s382 + $0x978] sm:$0xff]
        %v1679 = vld [vmem:[%s382 + $0x9c8] sm:$0xff]
        %v1680 = vld [vmem:[%s400 + $0x6] sm:$0x3]
        %v1682 = vlaneseq
        %v1683 = vshrl.u32 %v1682, 7
        %v1684 = vsub.s32 0, %v1683
        %v1685 = vrot.slane %v1680, %v1684
        %v1686 = vlaneseq
        %v1687 = vshrl.u32 %v1686, 7
        %v1688 = vsub.s32 1, %v1687
        %v1689 = vrot.slane %v1680, %v1688
        %v1724 = vunpack.c.l.b16 %v1648
        %v1725 = vunpack.c.h.b16 %v1648
        %v1726 = vunpack.c.l.b16 %v1649
        %v1727 = vunpack.c.h.b16 %v1649
        %v1728 = vunpack.c.l.b16 %v1650
        %v1729 = vunpack.c.h.b16 %v1650
        %v1730 = vunpack.c.l.b16 %v1651
        %v1731 = vunpack.c.h.b16 %v1651
        %v1732 = vunpack.c.l.b16 %v1652
        %v1733 = vunpack.c.h.b16 %v1652
        %v1734 = vunpack.c.l.b16 %v1653
        %v1735 = vunpack.c.h.b16 %v1653
        %v1736 = vunpack.c.l.b16 %v1654
        %v1737 = vunpack.c.h.b16 %v1654
        %v1738 = vunpack.c.l.b16 %v1655
        %v1739 = vunpack.c.h.b16 %v1655
        %v1740 = vunpack.c.l.b16 %v1656
        %v1741 = vunpack.c.h.b16 %v1656
        %v1742 = vunpack.c.l.b16 %v1657
        %v1743 = vunpack.c.h.b16 %v1657
        %v1744 = vunpack.c.l.b16 %v1658
        %v1745 = vunpack.c.h.b16 %v1658
        %v1746 = vunpack.c.l.b16 %v1659
        %v1747 = vunpack.c.h.b16 %v1659
        %v1748 = vunpack.c.l.b16 %v1660
        %v1749 = vunpack.c.h.b16 %v1660
        %v1750 = vunpack.c.l.b16 %v1661
        %v1751 = vunpack.c.h.b16 %v1661
        %v1752 = vunpack.c.l.b16 %v1662
        %v1753 = vunpack.c.h.b16 %v1662
        %v1754 = vunpack.c.l.b16 %v1663
        %v1755 = vunpack.c.h.b16 %v1663
        %v1756 = vunpack.c.l.b16 %v1664
        %v1757 = vunpack.c.h.b16 %v1664
        %v1758 = vunpack.c.l.b16 %v1665
        %v1759 = vunpack.c.h.b16 %v1665
        %v1760 = vunpack.c.l.b16 %v1666
        %v1761 = vunpack.c.h.b16 %v1666
        %v1762 = vunpack.c.l.b16 %v1667
        %v1763 = vunpack.c.h.b16 %v1667
        %v1764 = vunpack.c.l.b16 %v1668
        %v1765 = vunpack.c.h.b16 %v1668
        %v1766 = vunpack.c.l.b16 %v1669
        %v1767 = vunpack.c.h.b16 %v1669
        %v1768 = vunpack.c.l.b16 %v1670
        %v1769 = vunpack.c.h.b16 %v1670
        %v1770 = vunpack.c.l.b16 %v1671
        %v1771 = vunpack.c.h.b16 %v1671
        %v1772 = vunpack.c.l.b16 %v1672
        %v1773 = vunpack.c.h.b16 %v1672
        %v1774 = vunpack.c.l.b16 %v1673
        %v1775 = vunpack.c.h.b16 %v1673
        %v1776 = vunpack.c.l.b16 %v1674
        %v1777 = vunpack.c.h.b16 %v1674
        %v1778 = vunpack.c.l.b16 %v1675
        %v1779 = vunpack.c.h.b16 %v1675
        %v1780 = vunpack.c.l.b16 %v1676
        %v1781 = vunpack.c.h.b16 %v1676
        %v1782 = vunpack.c.l.b16 %v1677
        %v1783 = vunpack.c.h.b16 %v1677
        %v1784 = vunpack.c.l.b16 %v1678
        %v1785 = vunpack.c.h.b16 %v1678
        %v1786 = vunpack.c.l.b16 %v1679
        %v1787 = vunpack.c.h.b16 %v1679
        %v1788 = vpack.c.b16 %v1726, %v1724
        %v1789 = vpack.c.b16 %v1727, %v1725
        %v1790 = vpack.c.b16 %v1730, %v1728
        %v1791 = vpack.c.b16 %v1731, %v1729
        %v1792 = vpack.c.b16 %v1734, %v1732
        %v1793 = vpack.c.b16 %v1735, %v1733
        %v1794 = vpack.c.b16 %v1738, %v1736
        %v1795 = vpack.c.b16 %v1739, %v1737
        %v1796 = vpack.c.b16 %v1742, %v1740
        %v1797 = vpack.c.b16 %v1743, %v1741
        %v1798 = vpack.c.b16 %v1746, %v1744
        %v1799 = vpack.c.b16 %v1747, %v1745
        %v1800 = vpack.c.b16 %v1750, %v1748
        %v1801 = vpack.c.b16 %v1751, %v1749
        %v1802 = vpack.c.b16 %v1754, %v1752
        %v1803 = vpack.c.b16 %v1755, %v1753
        %v1804 = vpack.c.b16 %v1758, %v1756
        %v1805 = vpack.c.b16 %v1759, %v1757
        %v1806 = vpack.c.b16 %v1762, %v1760
        %v1807 = vpack.c.b16 %v1763, %v1761
        %v1808 = vpack.c.b16 %v1766, %v1764
        %v1809 = vpack.c.b16 %v1767, %v1765
        %v1810 = vpack.c.b16 %v1770, %v1768
        %v1811 = vpack.c.b16 %v1771, %v1769
        %v1812 = vpack.c.b16 %v1774, %v1772
        %v1813 = vpack.c.b16 %v1775, %v1773
        %v1814 = vpack.c.b16 %v1778, %v1776
        %v1815 = vpack.c.b16 %v1779, %v1777
        %v1816 = vpack.c.b16 %v1782, %v1780
        %v1817 = vpack.c.b16 %v1783, %v1781
        %v1818 = vpack.c.b16 %v1786, %v1784
        %v1819 = vpack.c.b16 %v1787, %v1785
        %1852 = vmatprep.subr.bf16.mxu0 %v1789
        %1853 = vmatpush1.bf16.msra.mxu0 %v1788
        %1854 = vmatprep.subr.bf16.mxu0 %v1791
        %1855 = vmatpush1.bf16.msra.mxu0 %v1790
        %1856 = vmatprep.subr.bf16.mxu0 %v1793
        %1857 = vmatpush1.bf16.msra.mxu0 %v1792
        %1858 = vmatprep.subr.bf16.mxu0 %v1795
        %1859 = vmatpush1.bf16.msra.mxu0 %v1794
        %1860 = vmatprep.subr.bf16.mxu0 %v1797
        %1861 = vmatpush1.bf16.msra.mxu0 %v1796
        %1862 = vmatprep.subr.bf16.mxu0 %v1799
        %1863 = vmatpush1.bf16.msra.mxu0 %v1798
        %1864 = vmatprep.subr.bf16.mxu0 %v1801
        %1865 = vmatpush1.bf16.msra.mxu0 %v1800
        %1866 = vmatprep.subr.bf16.mxu0 %v1803
        %1867 = vmatpush1.bf16.msra.mxu0 %v1802
        %1868 = vmatprep.subr.bf16.mxu0 %v1805
        %1869 = vmatpush1.bf16.msra.mxu0 %v1804
        %1870 = vmatprep.subr.bf16.mxu0 %v1807
        %1871 = vmatpush1.bf16.msra.mxu0 %v1806
        %1872 = vmatprep.subr.bf16.mxu0 %v1809
        %1873 = vmatpush1.bf16.msra.mxu0 %v1808
        %1874 = vmatprep.subr.bf16.mxu0 %v1811
        %1875 = vmatpush1.bf16.msra.mxu0 %v1810
        %1876 = vmatprep.subr.bf16.mxu0 %v1813
        %1877 = vmatpush1.bf16.msra.mxu0 %v1812
        %1878 = vmatprep.subr.bf16.mxu0 %v1815
        %1879 = vmatpush1.bf16.msra.mxu0 %v1814
        %1880 = vmatprep.subr.bf16.mxu0 %v1817
        %1881 = vmatpush1.bf16.msra.mxu0 %v1816
        %1882 = vmatprep.subr.bf16.mxu0 %v1819
        %1883 = vmatpush1.bf16.msra.mxu0 %v1818
        %1884 = vmatprep.mubr.bf16.mxu0 %v1647
        %1885 = vmatmul.mubr.bf16.gmra.mrb[0].mxu0 %v1646
        %v1886 = vpop.f32.mrb[0].mxu0
        %v1887 = vadd.f32 %v1685, %v1886
        %v1888 = vpop.f32.mrb[0].mxu0
        %v1889 = vadd.f32 %v1689, %v1888
        %v1890 = vpop.f32.mrb[0].mxu0
        %v1891 = vadd.f32 %v1685, %v1890
        %v1892 = vpop.f32.mrb[0].mxu0
        %v1893 = vadd.f32 %v1689, %v1892
        %1894 = vdwg.mxu0
        %v1895 = vadd.f32 %v459, %v1887
        %v1896 = vadd.f32 %v460, %v1889
        %v1897 = vadd.f32 %v461, %v1891
        %v1898 = vadd.f32 %v462, %v1893
        %v1899 = vld [vmem:[%s400 + $0x8] sm:$0x3]
        %v1900 = vld [vmem:[%s400 + $0xa] sm:$0x3]
        %v1901 = vadd.f32 %v1895, %v1896
        %1902 = vadd.xlane.f32.xlu0 %v1901
        %v1903 = vpop.xlane.xlu0 %1902
        %v1904 = vadd.f32 %v1897, %v1898
        %1905 = vadd.xlane.f32.xlu0 %v1904
        %v1906 = vpop.xlane.xlu0 %1905
        %v1907 = vrcp.pop 256.0
        %v1908 = vmul.f32 %v1903, %v1907
        %v1909 = vmul.f32 %v1906, %v1907
        %v1910 = vsub.f32 %v1895, %v1908
        %v1911 = vsub.f32 %v1896, %v1908
        %v1912 = vsub.f32 %v1897, %v1909
        %v1913 = vsub.f32 %v1898, %v1909
        %v1914 = vmul.f32 %v1910, %v1910
        %v1915 = vmul.f32 %v1911, %v1911
        %v1916 = vmul.f32 %v1912, %v1912
        %v1917 = vmul.f32 %v1913, %v1913
        %v1918 = vadd.f32 %v1914, %v1915
        %1919 = vadd.xlane.f32.xlu0 %v1918
        %v1920 = vpop.xlane.xlu0 %1919
        %v1921 = vadd.f32 %v1916, %v1917
        %1922 = vadd.xlane.f32.xlu0 %v1921
        %v1923 = vpop.xlane.xlu0 %1922
        %v1924 = vmul.f32 %v1920, %v1907
        %v1925 = vmul.f32 %v1923, %v1907
        %v1926 = vadd.f32 %v1924, 1e-05
        %v1927 = vadd.f32 %v1925, 1e-05
        %v1928 = vrsqrt.pop %v1926
        %v1929 = vrsqrt.pop %v1927
        %v1930 = vmul.f32 %v1910, %v1928
        %v1931 = vmul.f32 %v1911, %v1928
        %v1932 = vmul.f32 %v1912, %v1929
        %v1933 = vmul.f32 %v1913, %v1929
        %v1935 = vlaneseq
        %v1936 = vshrl.u32 %v1935, 7
        %v1937 = vsub.s32 0, %v1936
        %v1938 = vrot.slane %v1899, %v1937
        %v1939 = vlaneseq
        %v1940 = vshrl.u32 %v1939, 7
        %v1941 = vsub.s32 1, %v1940
        %v1942 = vrot.slane %v1899, %v1941
        %v1945 = vmul.f32 %v1930, %v1938
        %v1946 = vmul.f32 %v1931, %v1942
        %v1947 = vmul.f32 %v1932, %v1938
        %v1948 = vmul.f32 %v1933, %v1942
        %v1950 = vlaneseq
        %v1951 = vshrl.u32 %v1950, 7
        %v1952 = vsub.s32 0, %v1951
        %v1953 = vrot.slane %v1900, %v1952
        %v1954 = vlaneseq
        %v1955 = vshrl.u32 %v1954, 7
        %v1956 = vsub.s32 1, %v1955
        %v1957 = vrot.slane %v1900, %v1956
        %v1960 = vadd.f32 %v1945, %v1953
        %v1961 = vadd.f32 %v1946, %v1957
        %v1962 = vadd.f32 %v1947, %v1953
        %v1963 = vadd.f32 %v1948, %v1957
        %v1964 = vpack.c.bf16 %v1962, %v1960
        %v1965 = vpack.c.bf16 %v1963, %v1961
        %v1966 = vld [vmem:[%s382 + $0x20] sm:$0xff]
        %v1967 = vld [vmem:[%s382 + $0x70] sm:$0xff]
        %v1968 = vld [vmem:[%s382 + $0xc0] sm:$0xff]
        %v1969 = vld [vmem:[%s382 + $0x110] sm:$0xff]
        %v1970 = vld [vmem:[%s382 + $0x160] sm:$0xff]
        %v1971 = vld [vmem:[%s382 + $0x1b0] sm:$0xff]
        %v1972 = vld [vmem:[%s382 + $0x200] sm:$0xff]
        %v1973 = vld [vmem:[%s382 + $0x250] sm:$0xff]
        %v1974 = vld [vmem:[%s382 + $0x2a0] sm:$0xff]
        %v1975 = vld [vmem:[%s382 + $0x2f0] sm:$0xff]
        %v1976 = vld [vmem:[%s382 + $0x340] sm:$0xff]
        %v1977 = vld [vmem:[%s382 + $0x390] sm:$0xff]
        %v1978 = vld [vmem:[%s382 + $0x3e0] sm:$0xff]
        %v1979 = vld [vmem:[%s382 + $0x430] sm:$0xff]
        %v1980 = vld [vmem:[%s382 + $0x480] sm:$0xff]
        %v1981 = vld [vmem:[%s382 + $0x4d0] sm:$0xff]
        %v1982 = vld [vmem:[%s382 + $0x520] sm:$0xff]
        %v1983 = vld [vmem:[%s382 + $0x570] sm:$0xff]
        %v1984 = vld [vmem:[%s382 + $0x5c0] sm:$0xff]
        %v1985 = vld [vmem:[%s382 + $0x610] sm:$0xff]
        %v1986 = vld [vmem:[%s382 + $0x660] sm:$0xff]
        %v1987 = vld [vmem:[%s382 + $0x6b0] sm:$0xff]
        %v1988 = vld [vmem:[%s382 + $0x700] sm:$0xff]
        %v1989 = vld [vmem:[%s382 + $0x750] sm:$0xff]
        %v1990 = vld [vmem:[%s382 + $0x7a0] sm:$0xff]
        %v1991 = vld [vmem:[%s382 + $0x7f0] sm:$0xff]
        %v1992 = vld [vmem:[%s382 + $0x840] sm:$0xff]
        %v1993 = vld [vmem:[%s382 + $0x890] sm:$0xff]
        %v1994 = vld [vmem:[%s382 + $0x8e0] sm:$0xff]
        %v1995 = vld [vmem:[%s382 + $0x930] sm:$0xff]
        %v1996 = vld [vmem:[%s382 + $0x980] sm:$0xff]
        %v1997 = vld [vmem:[%s382 + $0x9d0] sm:$0xff]
        %v1998 = vld [vmem:[%s400 + $0xc] sm:$0x3]
        %v2000 = vlaneseq
        %v2001 = vshrl.u32 %v2000, 7
        %v2002 = vsub.s32 0, %v2001
        %v2003 = vrot.slane %v1998, %v2002
        %v2004 = vlaneseq
        %v2005 = vshrl.u32 %v2004, 7
        %v2006 = vsub.s32 1, %v2005
        %v2007 = vrot.slane %v1998, %v2006
        %v2042 = vunpack.c.l.b16 %v1966
        %v2043 = vunpack.c.h.b16 %v1966
        %v2044 = vunpack.c.l.b16 %v1967
        %v2045 = vunpack.c.h.b16 %v1967
        %v2046 = vunpack.c.l.b16 %v1968
        %v2047 = vunpack.c.h.b16 %v1968
        %v2048 = vunpack.c.l.b16 %v1969
        %v2049 = vunpack.c.h.b16 %v1969
        %v2050 = vunpack.c.l.b16 %v1970
        %v2051 = vunpack.c.h.b16 %v1970
        %v2052 = vunpack.c.l.b16 %v1971
        %v2053 = vunpack.c.h.b16 %v1971
        %v2054 = vunpack.c.l.b16 %v1972
        %v2055 = vunpack.c.h.b16 %v1972
        %v2056 = vunpack.c.l.b16 %v1973
        %v2057 = vunpack.c.h.b16 %v1973
        %v2058 = vunpack.c.l.b16 %v1974
        %v2059 = vunpack.c.h.b16 %v1974
        %v2060 = vunpack.c.l.b16 %v1975
        %v2061 = vunpack.c.h.b16 %v1975
        %v2062 = vunpack.c.l.b16 %v1976
        %v2063 = vunpack.c.h.b16 %v1976
        %v2064 = vunpack.c.l.b16 %v1977
        %v2065 = vunpack.c.h.b16 %v1977
        %v2066 = vunpack.c.l.b16 %v1978
        %v2067 = vunpack.c.h.b16 %v1978
        %v2068 = vunpack.c.l.b16 %v1979
        %v2069 = vunpack.c.h.b16 %v1979
        %v2070 = vunpack.c.l.b16 %v1980
        %v2071 = vunpack.c.h.b16 %v1980
        %v2072 = vunpack.c.l.b16 %v1981
        %v2073 = vunpack.c.h.b16 %v1981
        %v2074 = vunpack.c.l.b16 %v1982
        %v2075 = vunpack.c.h.b16 %v1982
        %v2076 = vunpack.c.l.b16 %v1983
        %v2077 = vunpack.c.h.b16 %v1983
        %v2078 = vunpack.c.l.b16 %v1984
        %v2079 = vunpack.c.h.b16 %v1984
        %v2080 = vunpack.c.l.b16 %v1985
        %v2081 = vunpack.c.h.b16 %v1985
        %v2082 = vunpack.c.l.b16 %v1986
        %v2083 = vunpack.c.h.b16 %v1986
        %v2084 = vunpack.c.l.b16 %v1987
        %v2085 = vunpack.c.h.b16 %v1987
        %v2086 = vunpack.c.l.b16 %v1988
        %v2087 = vunpack.c.h.b16 %v1988
        %v2088 = vunpack.c.l.b16 %v1989
        %v2089 = vunpack.c.h.b16 %v1989
        %v2090 = vunpack.c.l.b16 %v1990
        %v2091 = vunpack.c.h.b16 %v1990
        %v2092 = vunpack.c.l.b16 %v1991
        %v2093 = vunpack.c.h.b16 %v1991
        %v2094 = vunpack.c.l.b16 %v1992
        %v2095 = vunpack.c.h.b16 %v1992
        %v2096 = vunpack.c.l.b16 %v1993
        %v2097 = vunpack.c.h.b16 %v1993
        %v2098 = vunpack.c.l.b16 %v1994
        %v2099 = vunpack.c.h.b16 %v1994
        %v2100 = vunpack.c.l.b16 %v1995
        %v2101 = vunpack.c.h.b16 %v1995
        %v2102 = vunpack.c.l.b16 %v1996
        %v2103 = vunpack.c.h.b16 %v1996
        %v2104 = vunpack.c.l.b16 %v1997
        %v2105 = vunpack.c.h.b16 %v1997
        %v2106 = vpack.c.b16 %v2044, %v2042
        %v2107 = vpack.c.b16 %v2045, %v2043
        %v2108 = vpack.c.b16 %v2048, %v2046
        %v2109 = vpack.c.b16 %v2049, %v2047
        %v2110 = vpack.c.b16 %v2052, %v2050
        %v2111 = vpack.c.b16 %v2053, %v2051
        %v2112 = vpack.c.b16 %v2056, %v2054
        %v2113 = vpack.c.b16 %v2057, %v2055
        %v2114 = vpack.c.b16 %v2060, %v2058
        %v2115 = vpack.c.b16 %v2061, %v2059
        %v2116 = vpack.c.b16 %v2064, %v2062
        %v2117 = vpack.c.b16 %v2065, %v2063
        %v2118 = vpack.c.b16 %v2068, %v2066
        %v2119 = vpack.c.b16 %v2069, %v2067
        %v2120 = vpack.c.b16 %v2072, %v2070
        %v2121 = vpack.c.b16 %v2073, %v2071
        %v2122 = vpack.c.b16 %v2076, %v2074
        %v2123 = vpack.c.b16 %v2077, %v2075
        %v2124 = vpack.c.b16 %v2080, %v2078
        %v2125 = vpack.c.b16 %v2081, %v2079
        %v2126 = vpack.c.b16 %v2084, %v2082
        %v2127 = vpack.c.b16 %v2085, %v2083
        %v2128 = vpack.c.b16 %v2088, %v2086
        %v2129 = vpack.c.b16 %v2089, %v2087
        %v2130 = vpack.c.b16 %v2092, %v2090
        %v2131 = vpack.c.b16 %v2093, %v2091
        %v2132 = vpack.c.b16 %v2096, %v2094
        %v2133 = vpack.c.b16 %v2097, %v2095
        %v2134 = vpack.c.b16 %v2100, %v2098
        %v2135 = vpack.c.b16 %v2101, %v2099
        %v2136 = vpack.c.b16 %v2104, %v2102
        %v2137 = vpack.c.b16 %v2105, %v2103
        %2170 = vmatprep.subr.bf16.mxu0 %v2107
        %2171 = vmatpush1.bf16.msra.mxu0 %v2106
        %2172 = vmatprep.subr.bf16.mxu0 %v2109
        %2173 = vmatpush1.bf16.msra.mxu0 %v2108
        %2174 = vmatprep.subr.bf16.mxu0 %v2111
        %2175 = vmatpush1.bf16.msra.mxu0 %v2110
        %2176 = vmatprep.subr.bf16.mxu0 %v2113
        %2177 = vmatpush1.bf16.msra.mxu0 %v2112
        %2178 = vmatprep.subr.bf16.mxu0 %v2115
        %2179 = vmatpush1.bf16.msra.mxu0 %v2114
        %2180 = vmatprep.subr.bf16.mxu0 %v2117
        %2181 = vmatpush1.bf16.msra.mxu0 %v2116
        %2182 = vmatprep.subr.bf16.mxu0 %v2119
        %2183 = vmatpush1.bf16.msra.mxu0 %v2118
        %2184 = vmatprep.subr.bf16.mxu0 %v2121
        %2185 = vmatpush1.bf16.msra.mxu0 %v2120
        %2186 = vmatprep.subr.bf16.mxu0 %v2123
        %2187 = vmatpush1.bf16.msra.mxu0 %v2122
        %2188 = vmatprep.subr.bf16.mxu0 %v2125
        %2189 = vmatpush1.bf16.msra.mxu0 %v2124
        %2190 = vmatprep.subr.bf16.mxu0 %v2127
        %2191 = vmatpush1.bf16.msra.mxu0 %v2126
        %2192 = vmatprep.subr.bf16.mxu0 %v2129
        %2193 = vmatpush1.bf16.msra.mxu0 %v2128
        %2194 = vmatprep.subr.bf16.mxu0 %v2131
        %2195 = vmatpush1.bf16.msra.mxu0 %v2130
        %2196 = vmatprep.subr.bf16.mxu0 %v2133
        %2197 = vmatpush1.bf16.msra.mxu0 %v2132
        %2198 = vmatprep.subr.bf16.mxu0 %v2135
        %2199 = vmatpush1.bf16.msra.mxu0 %v2134
        %2200 = vmatprep.subr.bf16.mxu0 %v2137
        %2201 = vmatpush1.bf16.msra.mxu0 %v2136
        %2202 = vmatprep.mubr.bf16.mxu0 %v1965
        %2203 = vmatmul.mubr.bf16.gmra.mrb[0].mxu0 %v1964
        %v2204 = vpop.f32.mrb[0].mxu0
        %v2205 = vadd.f32 %v2003, %v2204
        %v2206 = vpop.f32.mrb[0].mxu0
        %v2207 = vadd.f32 %v2007, %v2206
        %v2208 = vpop.f32.mrb[0].mxu0
        %v2209 = vadd.f32 %v2003, %v2208
        %v2210 = vpop.f32.mrb[0].mxu0
        %v2211 = vadd.f32 %v2007, %v2210
        %2212 = vdwg.mxu0
        %v2213 = vld [vmem:[%s382 + $0x28] sm:$0xff]
        %v2214 = vld [vmem:[%s382 + $0x30] sm:$0xff]
        %v2215 = vld [vmem:[%s382 + $0x78] sm:$0xff]
        %v2216 = vld [vmem:[%s382 + $0x80] sm:$0xff]
        %v2217 = vld [vmem:[%s382 + $0xc8] sm:$0xff]
        %v2218 = vld [vmem:[%s382 + $0xd0] sm:$0xff]
        %v2219 = vld [vmem:[%s382 + $0x118] sm:$0xff]
        %v2220 = vld [vmem:[%s382 + $0x120] sm:$0xff]
        %v2221 = vld [vmem:[%s382 + $0x168] sm:$0xff]
        %v2222 = vld [vmem:[%s382 + $0x170] sm:$0xff]
        %v2223 = vld [vmem:[%s382 + $0x1b8] sm:$0xff]
        %v2224 = vld [vmem:[%s382 + $0x1c0] sm:$0xff]
        %v2225 = vld [vmem:[%s382 + $0x208] sm:$0xff]
        %v2226 = vld [vmem:[%s382 + $0x210] sm:$0xff]
        %v2227 = vld [vmem:[%s382 + $0x258] sm:$0xff]
        %v2228 = vld [vmem:[%s382 + $0x260] sm:$0xff]
        %v2229 = vld [vmem:[%s382 + $0x2a8] sm:$0xff]
        %v2230 = vld [vmem:[%s382 + $0x2b0] sm:$0xff]
        %v2231 = vld [vmem:[%s382 + $0x2f8] sm:$0xff]
        %v2232 = vld [vmem:[%s382 + $0x300] sm:$0xff]
        %v2233 = vld [vmem:[%s382 + $0x348] sm:$0xff]
        %v2234 = vld [vmem:[%s382 + $0x350] sm:$0xff]
        %v2235 = vld [vmem:[%s382 + $0x398] sm:$0xff]
        %v2236 = vld [vmem:[%s382 + $0x3a0] sm:$0xff]
        %v2237 = vld [vmem:[%s382 + $0x3e8] sm:$0xff]
        %v2238 = vld [vmem:[%s382 + $0x3f0] sm:$0xff]
        %v2239 = vld [vmem:[%s382 + $0x438] sm:$0xff]
        %v2240 = vld [vmem:[%s382 + $0x440] sm:$0xff]
        %v2241 = vld [vmem:[%s382 + $0x488] sm:$0xff]
        %v2242 = vld [vmem:[%s382 + $0x490] sm:$0xff]
        %v2243 = vld [vmem:[%s382 + $0x4d8] sm:$0xff]
        %v2244 = vld [vmem:[%s382 + $0x4e0] sm:$0xff]
        %v2245 = vld [vmem:[%s382 + $0x528] sm:$0xff]
        %v2246 = vld [vmem:[%s382 + $0x530] sm:$0xff]
        %v2247 = vld [vmem:[%s382 + $0x578] sm:$0xff]
        %v2248 = vld [vmem:[%s382 + $0x580] sm:$0xff]
        %v2249 = vld [vmem:[%s382 + $0x5c8] sm:$0xff]
        %v2250 = vld [vmem:[%s382 + $0x5d0] sm:$0xff]
        %v2251 = vld [vmem:[%s382 + $0x618] sm:$0xff]
        %v2252 = vld [vmem:[%s382 + $0x620] sm:$0xff]
        %v2253 = vld [vmem:[%s382 + $0x668] sm:$0xff]
        %v2254 = vld [vmem:[%s382 + $0x670] sm:$0xff]
        %v2255 = vld [vmem:[%s382 + $0x6b8] sm:$0xff]
        %v2256 = vld [vmem:[%s382 + $0x6c0] sm:$0xff]
        %v2257 = vld [vmem:[%s382 + $0x708] sm:$0xff]
        %v2258 = vld [vmem:[%s382 + $0x710] sm:$0xff]
        %v2259 = vld [vmem:[%s382 + $0x758] sm:$0xff]
        %v2260 = vld [vmem:[%s382 + $0x760] sm:$0xff]
        %v2261 = vld [vmem:[%s382 + $0x7a8] sm:$0xff]
        %v2262 = vld [vmem:[%s382 + $0x7b0] sm:$0xff]
        %v2263 = vld [vmem:[%s382 + $0x7f8] sm:$0xff]
        %v2264 = vld [vmem:[%s382 + $0x800] sm:$0xff]
        %v2265 = vld [vmem:[%s382 + $0x848] sm:$0xff]
        %v2266 = vld [vmem:[%s382 + $0x850] sm:$0xff]
        %v2267 = vld [vmem:[%s382 + $0x898] sm:$0xff]
        %v2268 = vld [vmem:[%s382 + $0x8a0] sm:$0xff]
        %v2269 = vld [vmem:[%s382 + $0x8e8] sm:$0xff]
        %v2270 = vld [vmem:[%s382 + $0x8f0] sm:$0xff]
        %v2271 = vld [vmem:[%s382 + $0x938] sm:$0xff]
        %v2272 = vld [vmem:[%s382 + $0x940] sm:$0xff]
        %v2273 = vld [vmem:[%s382 + $0x988] sm:$0xff]
        %v2274 = vld [vmem:[%s382 + $0x990] sm:$0xff]
        %v2275 = vld [vmem:[%s382 + $0x9d8] sm:$0xff]
        %v2276 = vld [vmem:[%s382 + $0x9e0] sm:$0xff]
        %v2277 = vld [vmem:[%s400 + $0xe] sm:$0xf]
        %v2279 = vlaneseq
        %v2280 = vshrl.u32 %v2279, 7
        %v2281 = vsub.s32 0, %v2280
        %v2282 = vrot.slane %v2277, %v2281
        %v2283 = vlaneseq
        %v2284 = vshrl.u32 %v2283, 7
        %v2285 = vsub.s32 1, %v2284
        %v2286 = vrot.slane %v2277, %v2285
        %v2287 = vlaneseq
        %v2288 = vshrl.u32 %v2287, 7
        %v2289 = vsub.s32 2, %v2288
        %v2290 = vrot.slane %v2277, %v2289
        %v2291 = vlaneseq
        %v2292 = vshrl.u32 %v2291, 7
        %v2293 = vsub.s32 3, %v2292
        %v2294 = vrot.slane %v2277, %v2293
        %v2301 = vunpack.c.l.b16 %v465
        %v2302 = vunpack.c.h.b16 %v465
        %v2303 = vunpack.c.l.b16 %v466
        %v2304 = vunpack.c.h.b16 %v466
        %v2305 = vpack.c.b16 %v2303, %v2301
        %v2306 = vpack.c.b16 %v2304, %v2302
        %v2373 = vunpack.c.l.b16 %v2213
        %v2374 = vunpack.c.h.b16 %v2213
        %v2375 = vunpack.c.l.b16 %v2214
        %v2376 = vunpack.c.h.b16 %v2214
        %v2377 = vunpack.c.l.b16 %v2215
        %v2378 = vunpack.c.h.b16 %v2215
        %v2379 = vunpack.c.l.b16 %v2216
        %v2380 = vunpack.c.h.b16 %v2216
        %v2381 = vunpack.c.l.b16 %v2217
        %v2382 = vunpack.c.h.b16 %v2217
        %v2383 = vunpack.c.l.b16 %v2218
        %v2384 = vunpack.c.h.b16 %v2218
        %v2385 = vunpack.c.l.b16 %v2219
        %v2386 = vunpack.c.h.b16 %v2219
        %v2387 = vunpack.c.l.b16 %v2220
        %v2388 = vunpack.c.h.b16 %v2220
        %v2389 = vunpack.c.l.b16 %v2221
        %v2390 = vunpack.c.h.b16 %v2221
        %v2391 = vunpack.c.l.b16 %v2222
        %v2392 = vunpack.c.h.b16 %v2222
        %v2393 = vunpack.c.l.b16 %v2223
        %v2394 = vunpack.c.h.b16 %v2223
        %v2395 = vunpack.c.l.b16 %v2224
        %v2396 = vunpack.c.h.b16 %v2224
        %v2397 = vunpack.c.l.b16 %v2225
        %v2398 = vunpack.c.h.b16 %v2225
        %v2399 = vunpack.c.l.b16 %v2226
        %v2400 = vunpack.c.h.b16 %v2226
        %v2401 = vunpack.c.l.b16 %v2227
        %v2402 = vunpack.c.h.b16 %v2227
        %v2403 = vunpack.c.l.b16 %v2228
        %v2404 = vunpack.c.h.b16 %v2228
        %v2405 = vunpack.c.l.b16 %v2229
        %v2406 = vunpack.c.h.b16 %v2229
        %v2407 = vunpack.c.l.b16 %v2230
        %v2408 = vunpack.c.h.b16 %v2230
        %v2409 = vunpack.c.l.b16 %v2231
        %v2410 = vunpack.c.h.b16 %v2231
        %v2411 = vunpack.c.l.b16 %v2232
        %v2412 = vunpack.c.h.b16 %v2232
        %v2413 = vunpack.c.l.b16 %v2233
        %v2414 = vunpack.c.h.b16 %v2233
        %v2415 = vunpack.c.l.b16 %v2234
        %v2416 = vunpack.c.h.b16 %v2234
        %v2417 = vunpack.c.l.b16 %v2235
        %v2418 = vunpack.c.h.b16 %v2235
        %v2419 = vunpack.c.l.b16 %v2236
        %v2420 = vunpack.c.h.b16 %v2236
        %v2421 = vunpack.c.l.b16 %v2237
        %v2422 = vunpack.c.h.b16 %v2237
        %v2423 = vunpack.c.l.b16 %v2238
        %v2424 = vunpack.c.h.b16 %v2238
        %v2425 = vunpack.c.l.b16 %v2239
        %v2426 = vunpack.c.h.b16 %v2239
        %v2427 = vunpack.c.l.b16 %v2240
        %v2428 = vunpack.c.h.b16 %v2240
        %v2429 = vunpack.c.l.b16 %v2241
        %v2430 = vunpack.c.h.b16 %v2241
        %v2431 = vunpack.c.l.b16 %v2242
        %v2432 = vunpack.c.h.b16 %v2242
        %v2433 = vunpack.c.l.b16 %v2243
        %v2434 = vunpack.c.h.b16 %v2243
        %v2435 = vunpack.c.l.b16 %v2244
        %v2436 = vunpack.c.h.b16 %v2244
        %v2437 = vunpack.c.l.b16 %v2245
        %v2438 = vunpack.c.h.b16 %v2245
        %v2439 = vunpack.c.l.b16 %v2246
        %v2440 = vunpack.c.h.b16 %v2246
        %v2441 = vunpack.c.l.b16 %v2247
        %v2442 = vunpack.c.h.b16 %v2247
        %v2443 = vunpack.c.l.b16 %v2248
        %v2444 = vunpack.c.h.b16 %v2248
        %v2445 = vunpack.c.l.b16 %v2249
        %v2446 = vunpack.c.h.b16 %v2249
        %v2447 = vunpack.c.l.b16 %v2250
        %v2448 = vunpack.c.h.b16 %v2250
        %v2449 = vunpack.c.l.b16 %v2251
        %v2450 = vunpack.c.h.b16 %v2251
        %v2451 = vunpack.c.l.b16 %v2252
        %v2452 = vunpack.c.h.b16 %v2252
        %v2453 = vunpack.c.l.b16 %v2253
        %v2454 = vunpack.c.h.b16 %v2253
        %v2455 = vunpack.c.l.b16 %v2254
        %v2456 = vunpack.c.h.b16 %v2254
        %v2457 = vunpack.c.l.b16 %v2255
        %v2458 = vunpack.c.h.b16 %v2255
        %v2459 = vunpack.c.l.b16 %v2256
        %v2460 = vunpack.c.h.b16 %v2256
        %v2461 = vunpack.c.l.b16 %v2257
        %v2462 = vunpack.c.h.b16 %v2257
        %v2463 = vunpack.c.l.b16 %v2258
        %v2464 = vunpack.c.h.b16 %v2258
        %v2465 = vunpack.c.l.b16 %v2259
        %v2466 = vunpack.c.h.b16 %v2259
        %v2467 = vunpack.c.l.b16 %v2260
        %v2468 = vunpack.c.h.b16 %v2260
        %v2469 = vunpack.c.l.b16 %v2261
        %v2470 = vunpack.c.h.b16 %v2261
        %v2471 = vunpack.c.l.b16 %v2262
        %v2472 = vunpack.c.h.b16 %v2262
        %v2473 = vunpack.c.l.b16 %v2263
        %v2474 = vunpack.c.h.b16 %v2263
        %v2475 = vunpack.c.l.b16 %v2264
        %v2476 = vunpack.c.h.b16 %v2264
        %v2477 = vunpack.c.l.b16 %v2265
        %v2478 = vunpack.c.h.b16 %v2265
        %v2479 = vunpack.c.l.b16 %v2266
        %v2480 = vunpack.c.h.b16 %v2266
        %v2481 = vunpack.c.l.b16 %v2267
        %v2482 = vunpack.c.h.b16 %v2267
        %v2483 = vunpack.c.l.b16 %v2268
        %v2484 = vunpack.c.h.b16 %v2268
        %v2485 = vunpack.c.l.b16 %v2269
        %v2486 = vunpack.c.h.b16 %v2269
        %v2487 = vunpack.c.l.b16 %v2270
        %v2488 = vunpack.c.h.b16 %v2270
        %v2489 = vunpack.c.l.b16 %v2271
        %v2490 = vunpack.c.h.b16 %v2271
        %v2491 = vunpack.c.l.b16 %v2272
        %v2492 = vunpack.c.h.b16 %v2272
        %v2493 = vunpack.c.l.b16 %v2273
        %v2494 = vunpack.c.h.b16 %v2273
        %v2495 = vunpack.c.l.b16 %v2274
        %v2496 = vunpack.c.h.b16 %v2274
        %v2497 = vunpack.c.l.b16 %v2275
        %v2498 = vunpack.c.h.b16 %v2275
        %v2499 = vunpack.c.l.b16 %v2276
        %v2500 = vunpack.c.h.b16 %v2276
        %v2501 = vpack.c.b16 %v2377, %v2373
        %v2502 = vpack.c.b16 %v2378, %v2374
        %v2503 = vpack.c.b16 %v2379, %v2375
        %v2504 = vpack.c.b16 %v2380, %v2376
        %v2505 = vpack.c.b16 %v2385, %v2381
        %v2506 = vpack.c.b16 %v2386, %v2382
        %v2507 = vpack.c.b16 %v2387, %v2383
        %v2508 = vpack.c.b16 %v2388, %v2384
        %v2509 = vpack.c.b16 %v2393, %v2389
        %v2510 = vpack.c.b16 %v2394, %v2390
        %v2511 = vpack.c.b16 %v2395, %v2391
        %v2512 = vpack.c.b16 %v2396, %v2392
        %v2513 = vpack.c.b16 %v2401, %v2397
        %v2514 = vpack.c.b16 %v2402, %v2398
        %v2515 = vpack.c.b16 %v2403, %v2399
        %v2516 = vpack.c.b16 %v2404, %v2400
        %v2517 = vpack.c.b16 %v2409, %v2405
        %v2518 = vpack.c.b16 %v2410, %v2406
        %v2519 = vpack.c.b16 %v2411, %v2407
        %v2520 = vpack.c.b16 %v2412, %v2408
        %v2521 = vpack.c.b16 %v2417, %v2413
        %v2522 = vpack.c.b16 %v2418, %v2414
        %v2523 = vpack.c.b16 %v2419, %v2415
        %v2524 = vpack.c.b16 %v2420, %v2416
        %v2525 = vpack.c.b16 %v2425, %v2421
        %v2526 = vpack.c.b16 %v2426, %v2422
        %v2527 = vpack.c.b16 %v2427, %v2423
        %v2528 = vpack.c.b16 %v2428, %v2424
        %v2529 = vpack.c.b16 %v2433, %v2429
        %v2530 = vpack.c.b16 %v2434, %v2430
        %v2531 = vpack.c.b16 %v2435, %v2431
        %v2532 = vpack.c.b16 %v2436, %v2432
        %v2533 = vpack.c.b16 %v2441, %v2437
        %v2534 = vpack.c.b16 %v2442, %v2438
        %v2535 = vpack.c.b16 %v2443, %v2439
        %v2536 = vpack.c.b16 %v2444, %v2440
        %v2537 = vpack.c.b16 %v2449, %v2445
        %v2538 = vpack.c.b16 %v2450, %v2446
        %v2539 = vpack.c.b16 %v2451, %v2447
        %v2540 = vpack.c.b16 %v2452, %v2448
        %v2541 = vpack.c.b16 %v2457, %v2453
        %v2542 = vpack.c.b16 %v2458, %v2454
        %v2543 = vpack.c.b16 %v2459, %v2455
        %v2544 = vpack.c.b16 %v2460, %v2456
        %v2545 = vpack.c.b16 %v2465, %v2461
        %v2546 = vpack.c.b16 %v2466, %v2462
        %v2547 = vpack.c.b16 %v2467, %v2463
        %v2548 = vpack.c.b16 %v2468, %v2464
        %v2549 = vpack.c.b16 %v2473, %v2469
        %v2550 = vpack.c.b16 %v2474, %v2470
        %v2551 = vpack.c.b16 %v2475, %v2471
        %v2552 = vpack.c.b16 %v2476, %v2472
        %v2553 = vpack.c.b16 %v2481, %v2477
        %v2554 = vpack.c.b16 %v2482, %v2478
        %v2555 = vpack.c.b16 %v2483, %v2479
        %v2556 = vpack.c.b16 %v2484, %v2480
        %v2557 = vpack.c.b16 %v2489, %v2485
        %v2558 = vpack.c.b16 %v2490, %v2486
        %v2559 = vpack.c.b16 %v2491, %v2487
        %v2560 = vpack.c.b16 %v2492, %v2488
        %v2561 = vpack.c.b16 %v2497, %v2493
        %v2562 = vpack.c.b16 %v2498, %v2494
        %v2563 = vpack.c.b16 %v2499, %v2495
        %v2564 = vpack.c.b16 %v2500, %v2496
        %2629 = vmatprep.subr.bf16.mxu0 %v2502
        %2630 = vmatpush1.bf16.msra.mxu0 %v2501
        %2631 = vmatprep.subr.bf16.mxu0 %v2506
        %2632 = vmatpush1.bf16.msra.mxu0 %v2505
        %2633 = vmatprep.subr.bf16.mxu0 %v2510
        %2634 = vmatpush1.bf16.msra.mxu0 %v2509
        %2635 = vmatprep.subr.bf16.mxu0 %v2514
        %2636 = vmatpush1.bf16.msra.mxu0 %v2513
        %2637 = vmatprep.subr.bf16.mxu0 %v2518
        %2638 = vmatpush1.bf16.msra.mxu0 %v2517
        %2639 = vmatprep.subr.bf16.mxu0 %v2522
        %2640 = vmatpush1.bf16.msra.mxu0 %v2521
        %2641 = vmatprep.subr.bf16.mxu0 %v2526
        %2642 = vmatpush1.bf16.msra.mxu0 %v2525
        %2643 = vmatprep.subr.bf16.mxu0 %v2530
        %2644 = vmatpush1.bf16.msra.mxu0 %v2529
        %2645 = vmatprep.subr.bf16.mxu0 %v2534
        %2646 = vmatpush1.bf16.msra.mxu0 %v2533
        %2647 = vmatprep.subr.bf16.mxu0 %v2538
        %2648 = vmatpush1.bf16.msra.mxu0 %v2537
        %2649 = vmatprep.subr.bf16.mxu0 %v2542
        %2650 = vmatpush1.bf16.msra.mxu0 %v2541
        %2651 = vmatprep.subr.bf16.mxu0 %v2546
        %2652 = vmatpush1.bf16.msra.mxu0 %v2545
        %2653 = vmatprep.subr.bf16.mxu0 %v2550
        %2654 = vmatpush1.bf16.msra.mxu0 %v2549
        %2655 = vmatprep.subr.bf16.mxu0 %v2554
        %2656 = vmatpush1.bf16.msra.mxu0 %v2553
        %2657 = vmatprep.subr.bf16.mxu0 %v2558
        %2658 = vmatpush1.bf16.msra.mxu0 %v2557
        %2659 = vmatprep.subr.bf16.mxu0 %v2562
        %2660 = vmatpush1.bf16.msra.mxu0 %v2561
        %2661 = vmatprep.mubr.bf16.mxu0 %v2306
        %2662 = vmatmul.mubr.bf16.gmra.mrb[0].mxu0 %v2305
        %v2663 = vpop.f32.mrb[0].mxu0
        %v2664 = vadd.f32 %v2282, %v2663
        %v2665 = vpop.f32.mrb[0].mxu0
        %v2666 = vadd.f32 %v2286, %v2665
        %v2667 = vpop.f32.mrb[0].mxu0
        %v2668 = vadd.f32 %v2282, %v2667
        %v2669 = vpop.f32.mrb[0].mxu0
        %v2670 = vadd.f32 %v2286, %v2669
        %2671 = vdwg.mxu0
        %2672 = vmatprep.subr.bf16.mxu0 %v2504
        %2673 = vmatpush1.bf16.msra.mxu0 %v2503
        %2674 = vmatprep.subr.bf16.mxu0 %v2508
        %2675 = vmatpush1.bf16.msra.mxu0 %v2507
        %2676 = vmatprep.subr.bf16.mxu0 %v2512
        %2677 = vmatpush1.bf16.msra.mxu0 %v2511
        %2678 = vmatprep.subr.bf16.mxu0 %v2516
        %2679 = vmatpush1.bf16.msra.mxu0 %v2515
        %2680 = vmatprep.subr.bf16.mxu0 %v2520
        %2681 = vmatpush1.bf16.msra.mxu0 %v2519
        %2682 = vmatprep.subr.bf16.mxu0 %v2524
        %2683 = vmatpush1.bf16.msra.mxu0 %v2523
        %2684 = vmatprep.subr.bf16.mxu0 %v2528
        %2685 = vmatpush1.bf16.msra.mxu0 %v2527
        %2686 = vmatprep.subr.bf16.mxu0 %v2532
        %2687 = vmatpush1.bf16.msra.mxu0 %v2531
        %2688 = vmatprep.subr.bf16.mxu0 %v2536
        %2689 = vmatpush1.bf16.msra.mxu0 %v2535
        %2690 = vmatprep.subr.bf16.mxu0 %v2540
        %2691 = vmatpush1.bf16.msra.mxu0 %v2539
        %2692 = vmatprep.subr.bf16.mxu0 %v2544
        %2693 = vmatpush1.bf16.msra.mxu0 %v2543
        %2694 = vmatprep.subr.bf16.mxu0 %v2548
        %2695 = vmatpush1.bf16.msra.mxu0 %v2547
        %2696 = vmatprep.subr.bf16.mxu0 %v2552
        %2697 = vmatpush1.bf16.msra.mxu0 %v2551
        %2698 = vmatprep.subr.bf16.mxu0 %v2556
        %2699 = vmatpush1.bf16.msra.mxu0 %v2555
        %2700 = vmatprep.subr.bf16.mxu0 %v2560
        %2701 = vmatpush1.bf16.msra.mxu0 %v2559
        %2702 = vmatprep.subr.bf16.mxu0 %v2564
        %2703 = vmatpush1.bf16.msra.mxu0 %v2563
        %2704 = vmatprep.mubr.bf16.mxu0 %v2306
        %2705 = vmatmul.mubr.bf16.gmra.mrb[0].mxu0 %v2305
        %v2706 = vpop.f32.mrb[0].mxu0
        %v2707 = vadd.f32 %v2290, %v2706
        %v2708 = vpop.f32.mrb[0].mxu0
        %v2709 = vadd.f32 %v2294, %v2708
        %v2710 = vpop.f32.mrb[0].mxu0
        %v2711 = vadd.f32 %v2290, %v2710
        %v2712 = vpop.f32.mrb[0].mxu0
        %v2713 = vadd.f32 %v2294, %v2712
        %2714 = vdwg.mxu0
        %v2715 = vmul.f32 %v2205, 0.088388346
        %v2716 = vmul.f32 %v2207, 0.088388346
        %v2717 = vmul.f32 %v2209, 0.088388346
        %v2718 = vmul.f32 %v2211, 0.088388346
        %v2719 = vpack.c.bf16 %v2717, %v2715
        %v2720 = vpack.c.bf16 %v2718, %v2716
        %v2723 = vunpack.c.l.b16 %v2719
        %v2724 = vunpack.c.l.b16 %v2720
        %v2725 = vunpack.c.h.b16 %v2719
        %v2726 = vunpack.c.h.b16 %v2720
        %v2727 = vpack.c.b16 %v2724, %v2723
        %v2728 = vpack.c.b16 %v2726, %v2725
        %v2731 = vrot.slane %v2727, 4
        %v2732 = vrot.slane %v2728, 4
        %v2735 = vpack.c.bf16 %v2668, %v2664
        %v2736 = vpack.c.bf16 %v2670, %v2666
        %v2739 = vunpack.c.l.b16 %v2735
        %v2740 = vunpack.c.l.b16 %v2736
        %v2741 = vunpack.c.h.b16 %v2735
        %v2742 = vunpack.c.h.b16 %v2736
        %v2743 = vpack.c.b16 %v2740, %v2739
        %v2744 = vpack.c.b16 %v2742, %v2741
        %v2747 = vrot.slane %v2743, 4
        %v2748 = vrot.slane %v2744, 4
        %v2751 = vpack.c.bf16 %v2711, %v2707
        %v2752 = vpack.c.bf16 %v2713, %v2709
        %v2755 = vunpack.c.l.b16 %v2751
        %v2756 = vunpack.c.l.b16 %v2752
        %v2757 = vunpack.c.h.b16 %v2751
        %v2758 = vunpack.c.h.b16 %v2752
        %v2759 = vpack.c.b16 %v2756, %v2755
        %v2760 = vpack.c.b16 %v2758, %v2757
        %v2761 = vrot.slane %v2759, 4
        %v2762 = vrot.slane %v2760, 4
        %2763 = vmatprep.subr.bf16.mxu0 0
        %2764 = vmatpush1.bf16.xpose.msra.mxu0 %v2743
        %2765 = vmatprep.subr.bf16.mxu0 0
        %2766 = vmatpush1.bf16.xpose.msra.mxu0 0
        %2767 = vmatprep.subr.bf16.mxu0 0
        %2768 = vmatpush1.bf16.xpose.msra.mxu0 0
        %2769 = vmatprep.subr.bf16.mxu0 0
        %2770 = vmatpush1.bf16.xpose.msra.mxu0 0
        %2771 = vmatprep.subr.bf16.mxu0 0
        %2772 = vmatpush1.bf16.xpose.msra.mxu0 0
        %2773 = vmatprep.subr.bf16.mxu0 0
        %2774 = vmatpush1.bf16.xpose.msra.mxu0 0
        %2775 = vmatprep.subr.bf16.mxu0 0
        %2776 = vmatpush1.bf16.xpose.msra.mxu0 0
        %2777 = vmatprep.subr.bf16.mxu0 0
        %2778 = vmatpush1.bf16.xpose.msra.mxu0 0
        %2779 = vmatprep.subr.bf16.mxu0 0
        %2780 = vmatpush1.bf16.xpose.msra.mxu0 0
        %2781 = vmatprep.subr.bf16.mxu0 0
        %2782 = vmatpush1.bf16.xpose.msra.mxu0 0
        %2783 = vmatprep.subr.bf16.mxu0 0
        %2784 = vmatpush1.bf16.xpose.msra.mxu0 0
        %2785 = vmatprep.subr.bf16.mxu0 0
        %2786 = vmatpush1.bf16.xpose.msra.mxu0 0
        %2787 = vmatprep.subr.bf16.mxu0 0
        %2788 = vmatpush1.bf16.xpose.msra.mxu0 0
        %2789 = vmatprep.subr.bf16.mxu0 0
        %2790 = vmatpush1.bf16.xpose.msra.mxu0 0
        %2791 = vmatprep.subr.bf16.mxu0 0
        %2792 = vmatpush1.bf16.xpose.msra.mxu0 0
        %2793 = vmatprep.subr.bf16.mxu0 0
        %2794 = vmatpush1.bf16.xpose.msra.mxu0 0
        %2795 = vmatprep.mubr.bf16.mxu0 0
        %2796 = vmatmul.mubr.bf16.gmra.mrb[0].mxu0 %v2727
        %v2797 = vpop.f32.mrb[0].mxu0
        %v2798 = vadd.f32 0.0, %v2797
        %v2799 = vpop.f32.mrb[0].mxu0
        %v2800 = vpop.f32.mrb[0].mxu0
        %v2801 = vpop.f32.mrb[0].mxu0
        %2802 = vdwg.mxu0
        %2803 = vmatprep.subr.bf16.mxu0 0
        %2804 = vmatpush1.bf16.xpose.msra.mxu0 %v2744
        %2805 = vmatprep.subr.bf16.mxu0 0
        %2806 = vmatpush1.bf16.xpose.msra.mxu0 0
        %2807 = vmatprep.subr.bf16.mxu0 0
        %2808 = vmatpush1.bf16.xpose.msra.mxu0 0
        %2809 = vmatprep.subr.bf16.mxu0 0
        %2810 = vmatpush1.bf16.xpose.msra.mxu0 0
        %2811 = vmatprep.subr.bf16.mxu0 0
        %2812 = vmatpush1.bf16.xpose.msra.mxu0 0
        %2813 = vmatprep.subr.bf16.mxu0 0
        %2814 = vmatpush1.bf16.xpose.msra.mxu0 0
        %2815 = vmatprep.subr.bf16.mxu0 0
        %2816 = vmatpush1.bf16.xpose.msra.mxu0 0
        %2817 = vmatprep.subr.bf16.mxu0 0
        %2818 = vmatpush1.bf16.xpose.msra.mxu0 0
        %2819 = vmatprep.subr.bf16.mxu0 0
        %2820 = vmatpush1.bf16.xpose.msra.mxu0 0
        %2821 = vmatprep.subr.bf16.mxu0 0
        %2822 = vmatpush1.bf16.xpose.msra.mxu0 0
        %2823 = vmatprep.subr.bf16.mxu0 0
        %2824 = vmatpush1.bf16.xpose.msra.mxu0 0
        %2825 = vmatprep.subr.bf16.mxu0 0
        %2826 = vmatpush1.bf16.xpose.msra.mxu0 0
        %2827 = vmatprep.subr.bf16.mxu0 0
        %2828 = vmatpush1.bf16.xpose.msra.mxu0 0
        %2829 = vmatprep.subr.bf16.mxu0 0
        %2830 = vmatpush1.bf16.xpose.msra.mxu0 0
        %2831 = vmatprep.subr.bf16.mxu0 0
        %2832 = vmatpush1.bf16.xpose.msra.mxu0 0
        %2833 = vmatprep.subr.bf16.mxu0 0
        %2834 = vmatpush1.bf16.xpose.msra.mxu0 0
        %2835 = vmatprep.mubr.bf16.mxu0 0
        %2836 = vmatmul.mubr.bf16.gmra.mrb[0].mxu0 %v2728
        %v2837 = vpop.f32.mrb[0].mxu0
        %v2838 = vadd.f32 0.0, %v2837
        %v2839 = vpop.f32.mrb[0].mxu0
        %v2840 = vpop.f32.mrb[0].mxu0
        %v2841 = vpop.f32.mrb[0].mxu0
        %2842 = vdwg.mxu0
        %2843 = vmatprep.subr.bf16.mxu0 0
        %2844 = vmatpush1.bf16.xpose.msra.mxu0 %v2747
        %2845 = vmatprep.subr.bf16.mxu0 0
        %2846 = vmatpush1.bf16.xpose.msra.mxu0 0
        %2847 = vmatprep.subr.bf16.mxu0 0
        %2848 = vmatpush1.bf16.xpose.msra.mxu0 0
        %2849 = vmatprep.subr.bf16.mxu0 0
        %2850 = vmatpush1.bf16.xpose.msra.mxu0 0
        %2851 = vmatprep.subr.bf16.mxu0 0
        %2852 = vmatpush1.bf16.xpose.msra.mxu0 0
        %2853 = vmatprep.subr.bf16.mxu0 0
        %2854 = vmatpush1.bf16.xpose.msra.mxu0 0
        %2855 = vmatprep.subr.bf16.mxu0 0
        %2856 = vmatpush1.bf16.xpose.msra.mxu0 0
        %2857 = vmatprep.subr.bf16.mxu0 0
        %2858 = vmatpush1.bf16.xpose.msra.mxu0 0
        %2859 = vmatprep.subr.bf16.mxu0 0
        %2860 = vmatpush1.bf16.xpose.msra.mxu0 0
        %2861 = vmatprep.subr.bf16.mxu0 0
        %2862 = vmatpush1.bf16.xpose.msra.mxu0 0
        %2863 = vmatprep.subr.bf16.mxu0 0
        %2864 = vmatpush1.bf16.xpose.msra.mxu0 0
        %2865 = vmatprep.subr.bf16.mxu0 0
        %2866 = vmatpush1.bf16.xpose.msra.mxu0 0
        %2867 = vmatprep.subr.bf16.mxu0 0
        %2868 = vmatpush1.bf16.xpose.msra.mxu0 0
        %2869 = vmatprep.subr.bf16.mxu0 0
        %2870 = vmatpush1.bf16.xpose.msra.mxu0 0
        %2871 = vmatprep.subr.bf16.mxu0 0
        %2872 = vmatpush1.bf16.xpose.msra.mxu0 0
        %2873 = vmatprep.subr.bf16.mxu0 0
        %2874 = vmatpush1.bf16.xpose.msra.mxu0 0
        %2875 = vmatprep.mubr.bf16.mxu0 0
        %2876 = vmatmul.mubr.bf16.gmra.mrb[0].mxu0 %v2731
        %v2877 = vpop.f32.mrb[0].mxu0
        %v2878 = vadd.f32 0.0, %v2877
        %v2879 = vpop.f32.mrb[0].mxu0
        %v2880 = vpop.f32.mrb[0].mxu0
        %v2881 = vpop.f32.mrb[0].mxu0
        %2882 = vdwg.mxu0
        %2883 = vmatprep.subr.bf16.mxu0 0
        %2884 = vmatpush1.bf16.xpose.msra.mxu0 %v2748
        %2885 = vmatprep.subr.bf16.mxu0 0
        %2886 = vmatpush1.bf16.xpose.msra.mxu0 0
        %2887 = vmatprep.subr.bf16.mxu0 0
        %2888 = vmatpush1.bf16.xpose.msra.mxu0 0
        %2889 = vmatprep.subr.bf16.mxu0 0
        %2890 = vmatpush1.bf16.xpose.msra.mxu0 0
        %2891 = vmatprep.subr.bf16.mxu0 0
        %2892 = vmatpush1.bf16.xpose.msra.mxu0 0
        %2893 = vmatprep.subr.bf16.mxu0 0
        %2894 = vmatpush1.bf16.xpose.msra.mxu0 0
        %2895 = vmatprep.subr.bf16.mxu0 0
        %2896 = vmatpush1.bf16.xpose.msra.mxu0 0
        %2897 = vmatprep.subr.bf16.mxu0 0
        %2898 = vmatpush1.bf16.xpose.msra.mxu0 0
        %2899 = vmatprep.subr.bf16.mxu0 0
        %2900 = vmatpush1.bf16.xpose.msra.mxu0 0
        %2901 = vmatprep.subr.bf16.mxu0 0
        %2902 = vmatpush1.bf16.xpose.msra.mxu0 0
        %2903 = vmatprep.subr.bf16.mxu0 0
        %2904 = vmatpush1.bf16.xpose.msra.mxu0 0
        %2905 = vmatprep.subr.bf16.mxu0 0
        %2906 = vmatpush1.bf16.xpose.msra.mxu0 0
        %2907 = vmatprep.subr.bf16.mxu0 0
        %2908 = vmatpush1.bf16.xpose.msra.mxu0 0
        %2909 = vmatprep.subr.bf16.mxu0 0
        %2910 = vmatpush1.bf16.xpose.msra.mxu0 0
        %2911 = vmatprep.subr.bf16.mxu0 0
        %2912 = vmatpush1.bf16.xpose.msra.mxu0 0
        %2913 = vmatprep.subr.bf16.mxu0 0
        %2914 = vmatpush1.bf16.xpose.msra.mxu0 0
        %2915 = vmatprep.mubr.bf16.mxu0 0
        %2916 = vmatmul.mubr.bf16.gmra.mrb[0].mxu0 %v2732
        %v2917 = vpop.f32.mrb[0].mxu0
        %v2918 = vadd.f32 0.0, %v2917
        %v2919 = vpop.f32.mrb[0].mxu0
        %v2920 = vpop.f32.mrb[0].mxu0
        %v2921 = vpop.f32.mrb[0].mxu0
        %2922 = vdwg.mxu0
        %v2923 = vsel %vm1412, %v2798, -inf
        %2924 = vmax.xlane.f32.xlu0 %v2923
        %v2925 = vpop.xlane.xlu0 %2924
        %v2926 = vsel %vm1412, %v2838, -inf
        %2927 = vmax.xlane.f32.xlu0 %v2926
        %v2928 = vpop.xlane.xlu0 %2927
        %v2929 = vsel %vm1412, %v2878, -inf
        %2930 = vmax.xlane.f32.xlu0 %v2929
        %v2931 = vpop.xlane.xlu0 %2930
        %v2932 = vsel %vm1412, %v2918, -inf
        %2933 = vmax.xlane.f32.xlu0 %v2932
        %v2934 = vpop.xlane.xlu0 %2933
        %v2935 = vsub.f32 %v2798, %v2925
        %v2936 = vsub.f32 %v2838, %v2928
        %v2937 = vsub.f32 %v2878, %v2931
        %v2938 = vsub.f32 %v2918, %v2934
        %v2939 = vmul.f32 %v2935, 1.442695
        %v2940 = vpow.pop %v2939
        %v2941 = vmul.f32 %v2936, 1.442695
        %v2942 = vpow.pop %v2941
        %v2943 = vmul.f32 %v2937, 1.442695
        %v2944 = vpow.pop %v2943
        %v2945 = vmul.f32 %v2938, 1.442695
        %v2946 = vpow.pop %v2945
        %v2947 = vsel %vm1412, %v2940, 0.0
        %2948 = vadd.xlane.f32.xlu0 %v2947
        %v2949 = vpop.xlane.xlu0 %2948
        %v2950 = vsel %vm1412, %v2942, 0.0
        %2951 = vadd.xlane.f32.xlu0 %v2950
        %v2952 = vpop.xlane.xlu0 %2951
        %v2953 = vsel %vm1412, %v2944, 0.0
        %2954 = vadd.xlane.f32.xlu0 %v2953
        %v2955 = vpop.xlane.xlu0 %2954
        %v2956 = vsel %vm1412, %v2946, 0.0
        %2957 = vadd.xlane.f32.xlu0 %v2956
        %v2958 = vpop.xlane.xlu0 %2957
        %v2959 = vrcp.pop %v2949
        %v2960 = vrcp.pop %v2952
        %v2961 = vrcp.pop %v2955
        %v2962 = vrcp.pop %v2958
        %v2963 = vmul.f32 %v2940, %v2959
        %v2964 = vmul.f32 %v2942, %v2960
        %v2965 = vmul.f32 %v2944, %v2961
        %v2966 = vmul.f32 %v2946, %v2962
        %v2967 = vpack.c.bf16 %v2963, %v2963
        %v2968 = vpack.c.bf16 %v2964, %v2964
        %v2969 = vpack.c.bf16 %v2965, %v2965
        %v2970 = vpack.c.bf16 %v2966, %v2966
        %v2972 = vsel %vm1412, %v2967, 0
        %v2975 = vsel %vm1464, %v2759, 0
        %2977 = vmatprep.subr.bf16.mxu0 0
        %2978 = vmatpush1.bf16.msra.mxu0 %v2975
        %2979 = vmatprep.subr.bf16.mxu0 0
        %2980 = vmatpush1.bf16.msra.mxu0 0
        %2981 = vmatprep.subr.bf16.mxu0 0
        %2982 = vmatpush1.bf16.msra.mxu0 0
        %2983 = vmatprep.subr.bf16.mxu0 0
        %2984 = vmatpush1.bf16.msra.mxu0 0
        %2985 = vmatprep.subr.bf16.mxu0 0
        %2986 = vmatpush1.bf16.msra.mxu0 0
        %2987 = vmatprep.subr.bf16.mxu0 0
        %2988 = vmatpush1.bf16.msra.mxu0 0
        %2989 = vmatprep.subr.bf16.mxu0 0
        %2990 = vmatpush1.bf16.msra.mxu0 0
        %2991 = vmatprep.subr.bf16.mxu0 0
        %2992 = vmatpush1.bf16.msra.mxu0 0
        %2993 = vmatprep.subr.bf16.mxu0 0
        %2994 = vmatpush1.bf16.msra.mxu0 0
        %2995 = vmatprep.subr.bf16.mxu0 0
        %2996 = vmatpush1.bf16.msra.mxu0 0
        %2997 = vmatprep.subr.bf16.mxu0 0
        %2998 = vmatpush1.bf16.msra.mxu0 0
        %2999 = vmatprep.subr.bf16.mxu0 0
        %3000 = vmatpush1.bf16.msra.mxu0 0
        %3001 = vmatprep.subr.bf16.mxu0 0
        %3002 = vmatpush1.bf16.msra.mxu0 0
        %3003 = vmatprep.subr.bf16.mxu0 0
        %3004 = vmatpush1.bf16.msra.mxu0 0
        %3005 = vmatprep.subr.bf16.mxu0 0
        %3006 = vmatpush1.bf16.msra.mxu0 0
        %3007 = vmatprep.subr.bf16.mxu0 0
        %3008 = vmatpush1.bf16.msra.mxu0 0
        %3009 = vmatprep.mubr.bf16.mxu0 0
        %3010 = vmatmul.mubr.bf16.gmra.mrb[0].mxu0 %v2972
        %v3011 = vpop.f32.mrb[0].mxu0
        %v3012 = vadd.f32 0.0, %v3011
        %v3013 = vpop.f32.mrb[0].mxu0
        %v3014 = vpop.f32.mrb[0].mxu0
        %v3015 = vpop.f32.mrb[0].mxu0
        %3016 = vdwg.mxu0
        %v3018 = vsel %vm1412, %v2968, 0
        %v3021 = vsel %vm1464, %v2760, 0
        %3023 = vmatprep.subr.bf16.mxu0 0
        %3024 = vmatpush1.bf16.msra.mxu0 %v3021
        %3025 = vmatprep.subr.bf16.mxu0 0
        %3026 = vmatpush1.bf16.msra.mxu0 0
        %3027 = vmatprep.subr.bf16.mxu0 0
        %3028 = vmatpush1.bf16.msra.mxu0 0
        %3029 = vmatprep.subr.bf16.mxu0 0
        %3030 = vmatpush1.bf16.msra.mxu0 0
        %3031 = vmatprep.subr.bf16.mxu0 0
        %3032 = vmatpush1.bf16.msra.mxu0 0
        %3033 = vmatprep.subr.bf16.mxu0 0
        %3034 = vmatpush1.bf16.msra.mxu0 0
        %3035 = vmatprep.subr.bf16.mxu0 0
        %3036 = vmatpush1.bf16.msra.mxu0 0
        %3037 = vmatprep.subr.bf16.mxu0 0
        %3038 = vmatpush1.bf16.msra.mxu0 0
        %3039 = vmatprep.subr.bf16.mxu0 0
        %3040 = vmatpush1.bf16.msra.mxu0 0
        %3041 = vmatprep.subr.bf16.mxu0 0
        %3042 = vmatpush1.bf16.msra.mxu0 0
        %3043 = vmatprep.subr.bf16.mxu0 0
        %3044 = vmatpush1.bf16.msra.mxu0 0
        %3045 = vmatprep.subr.bf16.mxu0 0
        %3046 = vmatpush1.bf16.msra.mxu0 0
        %3047 = vmatprep.subr.bf16.mxu0 0
        %3048 = vmatpush1.bf16.msra.mxu0 0
        %3049 = vmatprep.subr.bf16.mxu0 0
        %3050 = vmatpush1.bf16.msra.mxu0 0
        %3051 = vmatprep.subr.bf16.mxu0 0
        %3052 = vmatpush1.bf16.msra.mxu0 0
        %3053 = vmatprep.subr.bf16.mxu0 0
        %3054 = vmatpush1.bf16.msra.mxu0 0
        %3055 = vmatprep.mubr.bf16.mxu0 0
        %3056 = vmatmul.mubr.bf16.gmra.mrb[0].mxu0 %v3018
        %v3057 = vpop.f32.mrb[0].mxu0
        %v3058 = vadd.f32 0.0, %v3057
        %v3059 = vpop.f32.mrb[0].mxu0
        %v3060 = vpop.f32.mrb[0].mxu0
        %v3061 = vpop.f32.mrb[0].mxu0
        %3062 = vdwg.mxu0
        %v3064 = vsel %vm1412, %v2969, 0
        %v3067 = vsel %vm1464, %v2761, 0
        %3069 = vmatprep.subr.bf16.mxu0 0
        %3070 = vmatpush1.bf16.msra.mxu0 %v3067
        %3071 = vmatprep.subr.bf16.mxu0 0
        %3072 = vmatpush1.bf16.msra.mxu0 0
        %3073 = vmatprep.subr.bf16.mxu0 0
        %3074 = vmatpush1.bf16.msra.mxu0 0
        %3075 = vmatprep.subr.bf16.mxu0 0
        %3076 = vmatpush1.bf16.msra.mxu0 0
        %3077 = vmatprep.subr.bf16.mxu0 0
        %3078 = vmatpush1.bf16.msra.mxu0 0
        %3079 = vmatprep.subr.bf16.mxu0 0
        %3080 = vmatpush1.bf16.msra.mxu0 0
        %3081 = vmatprep.subr.bf16.mxu0 0
        %3082 = vmatpush1.bf16.msra.mxu0 0
        %3083 = vmatprep.subr.bf16.mxu0 0
        %3084 = vmatpush1.bf16.msra.mxu0 0
        %3085 = vmatprep.subr.bf16.mxu0 0
        %3086 = vmatpush1.bf16.msra.mxu0 0
        %3087 = vmatprep.subr.bf16.mxu0 0
        %3088 = vmatpush1.bf16.msra.mxu0 0
        %3089 = vmatprep.subr.bf16.mxu0 0
        %3090 = vmatpush1.bf16.msra.mxu0 0
        %3091 = vmatprep.subr.bf16.mxu0 0
        %3092 = vmatpush1.bf16.msra.mxu0 0
        %3093 = vmatprep.subr.bf16.mxu0 0
        %3094 = vmatpush1.bf16.msra.mxu0 0
        %3095 = vmatprep.subr.bf16.mxu0 0
        %3096 = vmatpush1.bf16.msra.mxu0 0
        %3097 = vmatprep.subr.bf16.mxu0 0
        %3098 = vmatpush1.bf16.msra.mxu0 0
        %3099 = vmatprep.subr.bf16.mxu0 0
        %3100 = vmatpush1.bf16.msra.mxu0 0
        %3101 = vmatprep.mubr.bf16.mxu0 0
        %3102 = vmatmul.mubr.bf16.gmra.mrb[0].mxu0 %v3064
        %v3103 = vpop.f32.mrb[0].mxu0
        %v3104 = vadd.f32 0.0, %v3103
        %v3105 = vpop.f32.mrb[0].mxu0
        %v3106 = vpop.f32.mrb[0].mxu0
        %v3107 = vpop.f32.mrb[0].mxu0
        %3108 = vdwg.mxu0
        %v3110 = vsel %vm1412, %v2970, 0
        %v3113 = vsel %vm1464, %v2762, 0
        %3115 = vmatprep.subr.bf16.mxu0 0
        %3116 = vmatpush1.bf16.msra.mxu0 %v3113
        %3117 = vmatprep.subr.bf16.mxu0 0
        %3118 = vmatpush1.bf16.msra.mxu0 0
        %3119 = vmatprep.subr.bf16.mxu0 0
        %3120 = vmatpush1.bf16.msra.mxu0 0
        %3121 = vmatprep.subr.bf16.mxu0 0
        %3122 = vmatpush1.bf16.msra.mxu0 0
        %3123 = vmatprep.subr.bf16.mxu0 0
        %3124 = vmatpush1.bf16.msra.mxu0 0
        %3125 = vmatprep.subr.bf16.mxu0 0
        %3126 = vmatpush1.bf16.msra.mxu0 0
        %3127 = vmatprep.subr.bf16.mxu0 0
        %3128 = vmatpush1.bf16.msra.mxu0 0
        %3129 = vmatprep.subr.bf16.mxu0 0
        %3130 = vmatpush1.bf16.msra.mxu0 0
        %3131 = vmatprep.subr.bf16.mxu0 0
        %3132 = vmatpush1.bf16.msra.mxu0 0
        %3133 = vmatprep.subr.bf16.mxu0 0
        %3134 = vmatpush1.bf16.msra.mxu0 0
        %3135 = vmatprep.subr.bf16.mxu0 0
        %3136 = vmatpush1.bf16.msra.mxu0 0
        %3137 = vmatprep.subr.bf16.mxu0 0
        %3138 = vmatpush1.bf16.msra.mxu0 0
        %3139 = vmatprep.subr.bf16.mxu0 0
        %3140 = vmatpush1.bf16.msra.mxu0 0
        %3141 = vmatprep.subr.bf16.mxu0 0
        %3142 = vmatpush1.bf16.msra.mxu0 0
        %3143 = vmatprep.subr.bf16.mxu0 0
        %3144 = vmatpush1.bf16.msra.mxu0 0
        %3145 = vmatprep.subr.bf16.mxu0 0
        %3146 = vmatpush1.bf16.msra.mxu0 0
        %3147 = vmatprep.mubr.bf16.mxu0 0
        %3148 = vmatmul.mubr.bf16.gmra.mrb[0].mxu0 %v3110
        %v3149 = vpop.f32.mrb[0].mxu0
        %v3150 = vadd.f32 0.0, %v3149
        %v3151 = vpop.f32.mrb[0].mxu0
        %v3152 = vpop.f32.mrb[0].mxu0
        %v3153 = vpop.f32.mrb[0].mxu0
        %3154 = vdwg.mxu0
        %v3155 = vpack.c.bf16 %v3058, %v3012
        %v3156 = vpack.c.bf16 %v3150, %v3104
        %v3157 = vld [vmem:[%s382 + $0x38] sm:$0xff]
        %v3158 = vld [vmem:[%s382 + $0x88] sm:$0xff]
        %v3159 = vld [vmem:[%s382 + $0xd8] sm:$0xff]
        %v3160 = vld [vmem:[%s382 + $0x128] sm:$0xff]
        %v3161 = vld [vmem:[%s382 + $0x178] sm:$0xff]
        %v3162 = vld [vmem:[%s382 + $0x1c8] sm:$0xff]
        %v3163 = vld [vmem:[%s382 + $0x218] sm:$0xff]
        %v3164 = vld [vmem:[%s382 + $0x268] sm:$0xff]
        %v3165 = vld [vmem:[%s382 + $0x2b8] sm:$0xff]
        %v3166 = vld [vmem:[%s382 + $0x308] sm:$0xff]
        %v3167 = vld [vmem:[%s382 + $0x358] sm:$0xff]
        %v3168 = vld [vmem:[%s382 + $0x3a8] sm:$0xff]
        %v3169 = vld [vmem:[%s382 + $0x3f8] sm:$0xff]
        %v3170 = vld [vmem:[%s382 + $0x448] sm:$0xff]
        %v3171 = vld [vmem:[%s382 + $0x498] sm:$0xff]
        %v3172 = vld [vmem:[%s382 + $0x4e8] sm:$0xff]
        %v3173 = vld [vmem:[%s382 + $0x538] sm:$0xff]
        %v3174 = vld [vmem:[%s382 + $0x588] sm:$0xff]
        %v3175 = vld [vmem:[%s382 + $0x5d8] sm:$0xff]
        %v3176 = vld [vmem:[%s382 + $0x628] sm:$0xff]
        %v3177 = vld [vmem:[%s382 + $0x678] sm:$0xff]
        %v3178 = vld [vmem:[%s382 + $0x6c8] sm:$0xff]
        %v3179 = vld [vmem:[%s382 + $0x718] sm:$0xff]
        %v3180 = vld [vmem:[%s382 + $0x768] sm:$0xff]
        %v3181 = vld [vmem:[%s382 + $0x7b8] sm:$0xff]
        %v3182 = vld [vmem:[%s382 + $0x808] sm:$0xff]
        %v3183 = vld [vmem:[%s382 + $0x858] sm:$0xff]
        %v3184 = vld [vmem:[%s382 + $0x8a8] sm:$0xff]
        %v3185 = vld [vmem:[%s382 + $0x8f8] sm:$0xff]
        %v3186 = vld [vmem:[%s382 + $0x948] sm:$0xff]
        %v3187 = vld [vmem:[%s382 + $0x998] sm:$0xff]
        %v3188 = vld [vmem:[%s382 + $0x9e8] sm:$0xff]
        %v3189 = vld [vmem:[%s400 + $0x12] sm:$0x3]
        %v3191 = vlaneseq
        %v3192 = vshrl.u32 %v3191, 7
        %v3193 = vsub.s32 0, %v3192
        %v3194 = vrot.slane %v3189, %v3193
        %v3195 = vlaneseq
        %v3196 = vshrl.u32 %v3195, 7
        %v3197 = vsub.s32 1, %v3196
        %v3198 = vrot.slane %v3189, %v3197
        %v3233 = vunpack.c.l.b16 %v3157
        %v3234 = vunpack.c.h.b16 %v3157
        %v3235 = vunpack.c.l.b16 %v3158
        %v3236 = vunpack.c.h.b16 %v3158
        %v3237 = vunpack.c.l.b16 %v3159
        %v3238 = vunpack.c.h.b16 %v3159
        %v3239 = vunpack.c.l.b16 %v3160
        %v3240 = vunpack.c.h.b16 %v3160
        %v3241 = vunpack.c.l.b16 %v3161
        %v3242 = vunpack.c.h.b16 %v3161
        %v3243 = vunpack.c.l.b16 %v3162
        %v3244 = vunpack.c.h.b16 %v3162
        %v3245 = vunpack.c.l.b16 %v3163
        %v3246 = vunpack.c.h.b16 %v3163
        %v3247 = vunpack.c.l.b16 %v3164
        %v3248 = vunpack.c.h.b16 %v3164
        %v3249 = vunpack.c.l.b16 %v3165
        %v3250 = vunpack.c.h.b16 %v3165
        %v3251 = vunpack.c.l.b16 %v3166
        %v3252 = vunpack.c.h.b16 %v3166
        %v3253 = vunpack.c.l.b16 %v3167
        %v3254 = vunpack.c.h.b16 %v3167
        %v3255 = vunpack.c.l.b16 %v3168
        %v3256 = vunpack.c.h.b16 %v3168
        %v3257 = vunpack.c.l.b16 %v3169
        %v3258 = vunpack.c.h.b16 %v3169
        %v3259 = vunpack.c.l.b16 %v3170
        %v3260 = vunpack.c.h.b16 %v3170
        %v3261 = vunpack.c.l.b16 %v3171
        %v3262 = vunpack.c.h.b16 %v3171
        %v3263 = vunpack.c.l.b16 %v3172
        %v3264 = vunpack.c.h.b16 %v3172
        %v3265 = vunpack.c.l.b16 %v3173
        %v3266 = vunpack.c.h.b16 %v3173
        %v3267 = vunpack.c.l.b16 %v3174
        %v3268 = vunpack.c.h.b16 %v3174
        %v3269 = vunpack.c.l.b16 %v3175
        %v3270 = vunpack.c.h.b16 %v3175
        %v3271 = vunpack.c.l.b16 %v3176
        %v3272 = vunpack.c.h.b16 %v3176
        %v3273 = vunpack.c.l.b16 %v3177
        %v3274 = vunpack.c.h.b16 %v3177
        %v3275 = vunpack.c.l.b16 %v3178
        %v3276 = vunpack.c.h.b16 %v3178
        %v3277 = vunpack.c.l.b16 %v3179
        %v3278 = vunpack.c.h.b16 %v3179
        %v3279 = vunpack.c.l.b16 %v3180
        %v3280 = vunpack.c.h.b16 %v3180
        %v3281 = vunpack.c.l.b16 %v3181
        %v3282 = vunpack.c.h.b16 %v3181
        %v3283 = vunpack.c.l.b16 %v3182
        %v3284 = vunpack.c.h.b16 %v3182
        %v3285 = vunpack.c.l.b16 %v3183
        %v3286 = vunpack.c.h.b16 %v3183
        %v3287 = vunpack.c.l.b16 %v3184
        %v3288 = vunpack.c.h.b16 %v3184
        %v3289 = vunpack.c.l.b16 %v3185
        %v3290 = vunpack.c.h.b16 %v3185
        %v3291 = vunpack.c.l.b16 %v3186
        %v3292 = vunpack.c.h.b16 %v3186
        %v3293 = vunpack.c.l.b16 %v3187
        %v3294 = vunpack.c.h.b16 %v3187
        %v3295 = vunpack.c.l.b16 %v3188
        %v3296 = vunpack.c.h.b16 %v3188
        %v3297 = vpack.c.b16 %v3235, %v3233
        %v3298 = vpack.c.b16 %v3236, %v3234
        %v3299 = vpack.c.b16 %v3239, %v3237
        %v3300 = vpack.c.b16 %v3240, %v3238
        %v3301 = vpack.c.b16 %v3243, %v3241
        %v3302 = vpack.c.b16 %v3244, %v3242
        %v3303 = vpack.c.b16 %v3247, %v3245
        %v3304 = vpack.c.b16 %v3248, %v3246
        %v3305 = vpack.c.b16 %v3251, %v3249
        %v3306 = vpack.c.b16 %v3252, %v3250
        %v3307 = vpack.c.b16 %v3255, %v3253
        %v3308 = vpack.c.b16 %v3256, %v3254
        %v3309 = vpack.c.b16 %v3259, %v3257
        %v3310 = vpack.c.b16 %v3260, %v3258
        %v3311 = vpack.c.b16 %v3263, %v3261
        %v3312 = vpack.c.b16 %v3264, %v3262
        %v3313 = vpack.c.b16 %v3267, %v3265
        %v3314 = vpack.c.b16 %v3268, %v3266
        %v3315 = vpack.c.b16 %v3271, %v3269
        %v3316 = vpack.c.b16 %v3272, %v3270
        %v3317 = vpack.c.b16 %v3275, %v3273
        %v3318 = vpack.c.b16 %v3276, %v3274
        %v3319 = vpack.c.b16 %v3279, %v3277
        %v3320 = vpack.c.b16 %v3280, %v3278
        %v3321 = vpack.c.b16 %v3283, %v3281
        %v3322 = vpack.c.b16 %v3284, %v3282
        %v3323 = vpack.c.b16 %v3287, %v3285
        %v3324 = vpack.c.b16 %v3288, %v3286
        %v3325 = vpack.c.b16 %v3291, %v3289
        %v3326 = vpack.c.b16 %v3292, %v3290
        %v3327 = vpack.c.b16 %v3295, %v3293
        %v3328 = vpack.c.b16 %v3296, %v3294
        %3361 = vmatprep.subr.bf16.mxu0 %v3298
        %3362 = vmatpush1.bf16.msra.mxu0 %v3297
        %3363 = vmatprep.subr.bf16.mxu0 %v3300
        %3364 = vmatpush1.bf16.msra.mxu0 %v3299
        %3365 = vmatprep.subr.bf16.mxu0 %v3302
        %3366 = vmatpush1.bf16.msra.mxu0 %v3301
        %3367 = vmatprep.subr.bf16.mxu0 %v3304
        %3368 = vmatpush1.bf16.msra.mxu0 %v3303
        %3369 = vmatprep.subr.bf16.mxu0 %v3306
        %3370 = vmatpush1.bf16.msra.mxu0 %v3305
        %3371 = vmatprep.subr.bf16.mxu0 %v3308
        %3372 = vmatpush1.bf16.msra.mxu0 %v3307
        %3373 = vmatprep.subr.bf16.mxu0 %v3310
        %3374 = vmatpush1.bf16.msra.mxu0 %v3309
        %3375 = vmatprep.subr.bf16.mxu0 %v3312
        %3376 = vmatpush1.bf16.msra.mxu0 %v3311
        %3377 = vmatprep.subr.bf16.mxu0 %v3314
        %3378 = vmatpush1.bf16.msra.mxu0 %v3313
        %3379 = vmatprep.subr.bf16.mxu0 %v3316
        %3380 = vmatpush1.bf16.msra.mxu0 %v3315
        %3381 = vmatprep.subr.bf16.mxu0 %v3318
        %3382 = vmatpush1.bf16.msra.mxu0 %v3317
        %3383 = vmatprep.subr.bf16.mxu0 %v3320
        %3384 = vmatpush1.bf16.msra.mxu0 %v3319
        %3385 = vmatprep.subr.bf16.mxu0 %v3322
        %3386 = vmatpush1.bf16.msra.mxu0 %v3321
        %3387 = vmatprep.subr.bf16.mxu0 %v3324
        %3388 = vmatpush1.bf16.msra.mxu0 %v3323
        %3389 = vmatprep.subr.bf16.mxu0 %v3326
        %3390 = vmatpush1.bf16.msra.mxu0 %v3325
        %3391 = vmatprep.subr.bf16.mxu0 %v3328
        %3392 = vmatpush1.bf16.msra.mxu0 %v3327
        %3393 = vmatprep.mubr.bf16.mxu0 %v3156
        %3394 = vmatmul.mubr.bf16.gmra.mrb[0].mxu0 %v3155
        %v3395 = vpop.f32.mrb[0].mxu0
        %v3396 = vadd.f32 %v3194, %v3395
        %v3397 = vpop.f32.mrb[0].mxu0
        %v3398 = vadd.f32 %v3198, %v3397
        %v3399 = vpop.f32.mrb[0].mxu0
        %v3400 = vadd.f32 %v3194, %v3399
        %v3401 = vpop.f32.mrb[0].mxu0
        %v3402 = vadd.f32 %v3198, %v3401
        %3403 = vdwg.mxu0
        %v3404 = vadd.f32 %v1960, %v3396
        %v3405 = vadd.f32 %v1961, %v3398
        %v3406 = vadd.f32 %v1962, %v3400
        %v3407 = vadd.f32 %v1963, %v3402
        %v3408 = vld [vmem:[%s400 + $0x14] sm:$0x3]
        %v3409 = vld [vmem:[%s400 + $0x16] sm:$0x3]
        %v3410 = vadd.f32 %v3404, %v3405
        %3411 = vadd.xlane.f32.xlu0 %v3410
        %v3412 = vpop.xlane.xlu0 %3411
        %v3413 = vadd.f32 %v3406, %v3407
        %3414 = vadd.xlane.f32.xlu0 %v3413
        %v3415 = vpop.xlane.xlu0 %3414
        %v3416 = vmul.f32 %v3412, %v1907
        %v3417 = vmul.f32 %v3415, %v1907
        %v3418 = vsub.f32 %v3404, %v3416
        %v3419 = vsub.f32 %v3405, %v3416
        %v3420 = vsub.f32 %v3406, %v3417
        %v3421 = vsub.f32 %v3407, %v3417
        %v3422 = vmul.f32 %v3418, %v3418
        %v3423 = vmul.f32 %v3419, %v3419
        %v3424 = vmul.f32 %v3420, %v3420
        %v3425 = vmul.f32 %v3421, %v3421
        %v3426 = vadd.f32 %v3422, %v3423
        %3427 = vadd.xlane.f32.xlu0 %v3426
        %v3428 = vpop.xlane.xlu0 %3427
        %v3429 = vadd.f32 %v3424, %v3425
        %3430 = vadd.xlane.f32.xlu0 %v3429
        %v3431 = vpop.xlane.xlu0 %3430
        %v3432 = vmul.f32 %v3428, %v1907
        %v3433 = vmul.f32 %v3431, %v1907
        %v3434 = vadd.f32 %v3432, 1e-05
        %v3435 = vadd.f32 %v3433, 1e-05
        %v3436 = vrsqrt.pop %v3434
        %v3437 = vrsqrt.pop %v3435
        %v3438 = vmul.f32 %v3418, %v3436
        %v3439 = vmul.f32 %v3419, %v3436
        %v3440 = vmul.f32 %v3420, %v3437
        %v3441 = vmul.f32 %v3421, %v3437
        %v3443 = vlaneseq
        %v3444 = vshrl.u32 %v3443, 7
        %v3445 = vsub.s32 0, %v3444
        %v3446 = vrot.slane %v3408, %v3445
        %v3447 = vlaneseq
        %v3448 = vshrl.u32 %v3447, 7
        %v3449 = vsub.s32 1, %v3448
        %v3450 = vrot.slane %v3408, %v3449
        %v3453 = vmul.f32 %v3438, %v3446
        %v3454 = vmul.f32 %v3439, %v3450
        %v3455 = vmul.f32 %v3440, %v3446
        %v3456 = vmul.f32 %v3441, %v3450
        %v3458 = vlaneseq
        %v3459 = vshrl.u32 %v3458, 7
        %v3460 = vsub.s32 0, %v3459
        %v3461 = vrot.slane %v3409, %v3460
        %v3462 = vlaneseq
        %v3463 = vshrl.u32 %v3462, 7
        %v3464 = vsub.s32 1, %v3463
        %v3465 = vrot.slane %v3409, %v3464
        %v3468 = vadd.f32 %v3453, %v3461
        %v3469 = vadd.f32 %v3454, %v3465
        %v3470 = vadd.f32 %v3455, %v3461
        %v3471 = vadd.f32 %v3456, %v3465
        %v3472 = vpack.c.bf16 %v3470, %v3468
        %v3473 = vpack.c.bf16 %v3471, %v3469
        %v3474 = vld [vmem:[%s382 + $0x40] sm:$0xff]
        %v3475 = vld [vmem:[%s382 + $0x48] sm:$0xff]
        %v3476 = vld [vmem:[%s382 + $0x90] sm:$0xff]
        %v3477 = vld [vmem:[%s382 + $0x98] sm:$0xff]
        %v3478 = vld [vmem:[%s382 + $0xe0] sm:$0xff]
        %v3479 = vld [vmem:[%s382 + $0xe8] sm:$0xff]
        %v3480 = vld [vmem:[%s382 + $0x130] sm:$0xff]
        %v3481 = vld [vmem:[%s382 + $0x138] sm:$0xff]
        %v3482 = vld [vmem:[%s382 + $0x180] sm:$0xff]
        %v3483 = vld [vmem:[%s382 + $0x188] sm:$0xff]
        %v3484 = vld [vmem:[%s382 + $0x1d0] sm:$0xff]
        %v3485 = vld [vmem:[%s382 + $0x1d8] sm:$0xff]
        %v3486 = vld [vmem:[%s382 + $0x220] sm:$0xff]
        %v3487 = vld [vmem:[%s382 + $0x228] sm:$0xff]
        %v3488 = vld [vmem:[%s382 + $0x270] sm:$0xff]
        %v3489 = vld [vmem:[%s382 + $0x278] sm:$0xff]
        %v3490 = vld [vmem:[%s382 + $0x2c0] sm:$0xff]
        %v3491 = vld [vmem:[%s382 + $0x2c8] sm:$0xff]
        %v3492 = vld [vmem:[%s382 + $0x310] sm:$0xff]
        %v3493 = vld [vmem:[%s382 + $0x318] sm:$0xff]
        %v3494 = vld [vmem:[%s382 + $0x360] sm:$0xff]
        %v3495 = vld [vmem:[%s382 + $0x368] sm:$0xff]
        %v3496 = vld [vmem:[%s382 + $0x3b0] sm:$0xff]
        %v3497 = vld [vmem:[%s382 + $0x3b8] sm:$0xff]
        %v3498 = vld [vmem:[%s382 + $0x400] sm:$0xff]
        %v3499 = vld [vmem:[%s382 + $0x408] sm:$0xff]
        %v3500 = vld [vmem:[%s382 + $0x450] sm:$0xff]
        %v3501 = vld [vmem:[%s382 + $0x458] sm:$0xff]
        %v3502 = vld [vmem:[%s382 + $0x4a0] sm:$0xff]
        %v3503 = vld [vmem:[%s382 + $0x4a8] sm:$0xff]
        %v3504 = vld [vmem:[%s382 + $0x4f0] sm:$0xff]
        %v3505 = vld [vmem:[%s382 + $0x4f8] sm:$0xff]
        %v3506 = vld [vmem:[%s382 + $0x540] sm:$0xff]
        %v3507 = vld [vmem:[%s382 + $0x548] sm:$0xff]
        %v3508 = vld [vmem:[%s382 + $0x590] sm:$0xff]
        %v3509 = vld [vmem:[%s382 + $0x598] sm:$0xff]
        %v3510 = vld [vmem:[%s382 + $0x5e0] sm:$0xff]
        %v3511 = vld [vmem:[%s382 + $0x5e8] sm:$0xff]
        %v3512 = vld [vmem:[%s382 + $0x630] sm:$0xff]
        %v3513 = vld [vmem:[%s382 + $0x638] sm:$0xff]
        %v3514 = vld [vmem:[%s382 + $0x680] sm:$0xff]
        %v3515 = vld [vmem:[%s382 + $0x688] sm:$0xff]
        %v3516 = vld [vmem:[%s382 + $0x6d0] sm:$0xff]
        %v3517 = vld [vmem:[%s382 + $0x6d8] sm:$0xff]
        %v3518 = vld [vmem:[%s382 + $0x720] sm:$0xff]
        %v3519 = vld [vmem:[%s382 + $0x728] sm:$0xff]
        %v3520 = vld [vmem:[%s382 + $0x770] sm:$0xff]
        %v3521 = vld [vmem:[%s382 + $0x778] sm:$0xff]
        %v3522 = vld [vmem:[%s382 + $0x7c0] sm:$0xff]
        %v3523 = vld [vmem:[%s382 + $0x7c8] sm:$0xff]
        %v3524 = vld [vmem:[%s382 + $0x810] sm:$0xff]
        %v3525 = vld [vmem:[%s382 + $0x818] sm:$0xff]
        %v3526 = vld [vmem:[%s382 + $0x860] sm:$0xff]
        %v3527 = vld [vmem:[%s382 + $0x868] sm:$0xff]
        %v3528 = vld [vmem:[%s382 + $0x8b0] sm:$0xff]
        %v3529 = vld [vmem:[%s382 + $0x8b8] sm:$0xff]
        %v3530 = vld [vmem:[%s382 + $0x900] sm:$0xff]
        %v3531 = vld [vmem:[%s382 + $0x908] sm:$0xff]
        %v3532 = vld [vmem:[%s382 + $0x950] sm:$0xff]
        %v3533 = vld [vmem:[%s382 + $0x958] sm:$0xff]
        %v3534 = vld [vmem:[%s382 + $0x9a0] sm:$0xff]
        %v3535 = vld [vmem:[%s382 + $0x9a8] sm:$0xff]
        %v3536 = vld [vmem:[%s382 + $0x9f0] sm:$0xff]
        %v3537 = vld [vmem:[%s382 + $0x9f8] sm:$0xff]
        %v3538 = vld [vmem:[%s400 + $0x18] sm:$0xf]
        %v3540 = vlaneseq
        %v3541 = vshrl.u32 %v3540, 7
        %v3542 = vsub.s32 0, %v3541
        %v3543 = vrot.slane %v3538, %v3542
        %v3544 = vlaneseq
        %v3545 = vshrl.u32 %v3544, 7
        %v3546 = vsub.s32 1, %v3545
        %v3547 = vrot.slane %v3538, %v3546
        %v3548 = vlaneseq
        %v3549 = vshrl.u32 %v3548, 7
        %v3550 = vsub.s32 2, %v3549
        %v3551 = vrot.slane %v3538, %v3550
        %v3552 = vlaneseq
        %v3553 = vshrl.u32 %v3552, 7
        %v3554 = vsub.s32 3, %v3553
        %v3555 = vrot.slane %v3538, %v3554
        %v3624 = vunpack.c.l.b16 %v3474
        %v3625 = vunpack.c.h.b16 %v3474
        %v3626 = vunpack.c.l.b16 %v3475
        %v3627 = vunpack.c.h.b16 %v3475
        %v3628 = vunpack.c.l.b16 %v3476
        %v3629 = vunpack.c.h.b16 %v3476
        %v3630 = vunpack.c.l.b16 %v3477
        %v3631 = vunpack.c.h.b16 %v3477
        %v3632 = vunpack.c.l.b16 %v3478
        %v3633 = vunpack.c.h.b16 %v3478
        %v3634 = vunpack.c.l.b16 %v3479
        %v3635 = vunpack.c.h.b16 %v3479
        %v3636 = vunpack.c.l.b16 %v3480
        %v3637 = vunpack.c.h.b16 %v3480
        %v3638 = vunpack.c.l.b16 %v3481
        %v3639 = vunpack.c.h.b16 %v3481
        %v3640 = vunpack.c.l.b16 %v3482
        %v3641 = vunpack.c.h.b16 %v3482
        %v3642 = vunpack.c.l.b16 %v3483
        %v3643 = vunpack.c.h.b16 %v3483
        %v3644 = vunpack.c.l.b16 %v3484
        %v3645 = vunpack.c.h.b16 %v3484
        %v3646 = vunpack.c.l.b16 %v3485
        %v3647 = vunpack.c.h.b16 %v3485
        %v3648 = vunpack.c.l.b16 %v3486
        %v3649 = vunpack.c.h.b16 %v3486
        %v3650 = vunpack.c.l.b16 %v3487
        %v3651 = vunpack.c.h.b16 %v3487
        %v3652 = vunpack.c.l.b16 %v3488
        %v3653 = vunpack.c.h.b16 %v3488
        %v3654 = vunpack.c.l.b16 %v3489
        %v3655 = vunpack.c.h.b16 %v3489
        %v3656 = vunpack.c.l.b16 %v3490
        %v3657 = vunpack.c.h.b16 %v3490
        %v3658 = vunpack.c.l.b16 %v3491
        %v3659 = vunpack.c.h.b16 %v3491
        %v3660 = vunpack.c.l.b16 %v3492
        %v3661 = vunpack.c.h.b16 %v3492
        %v3662 = vunpack.c.l.b16 %v3493
        %v3663 = vunpack.c.h.b16 %v3493
        %v3664 = vunpack.c.l.b16 %v3494
        %v3665 = vunpack.c.h.b16 %v3494
        %v3666 = vunpack.c.l.b16 %v3495
        %v3667 = vunpack.c.h.b16 %v3495
        %v3668 = vunpack.c.l.b16 %v3496
        %v3669 = vunpack.c.h.b16 %v3496
        %v3670 = vunpack.c.l.b16 %v3497
        %v3671 = vunpack.c.h.b16 %v3497
        %v3672 = vunpack.c.l.b16 %v3498
        %v3673 = vunpack.c.h.b16 %v3498
        %v3674 = vunpack.c.l.b16 %v3499
        %v3675 = vunpack.c.h.b16 %v3499
        %v3676 = vunpack.c.l.b16 %v3500
        %v3677 = vunpack.c.h.b16 %v3500
        %v3678 = vunpack.c.l.b16 %v3501
        %v3679 = vunpack.c.h.b16 %v3501
        %v3680 = vunpack.c.l.b16 %v3502
        %v3681 = vunpack.c.h.b16 %v3502
        %v3682 = vunpack.c.l.b16 %v3503
        %v3683 = vunpack.c.h.b16 %v3503
        %v3684 = vunpack.c.l.b16 %v3504
        %v3685 = vunpack.c.h.b16 %v3504
        %v3686 = vunpack.c.l.b16 %v3505
        %v3687 = vunpack.c.h.b16 %v3505
        %v3688 = vunpack.c.l.b16 %v3506
        %v3689 = vunpack.c.h.b16 %v3506
        %v3690 = vunpack.c.l.b16 %v3507
        %v3691 = vunpack.c.h.b16 %v3507
        %v3692 = vunpack.c.l.b16 %v3508
        %v3693 = vunpack.c.h.b16 %v3508
        %v3694 = vunpack.c.l.b16 %v3509
        %v3695 = vunpack.c.h.b16 %v3509
        %v3696 = vunpack.c.l.b16 %v3510
        %v3697 = vunpack.c.h.b16 %v3510
        %v3698 = vunpack.c.l.b16 %v3511
        %v3699 = vunpack.c.h.b16 %v3511
        %v3700 = vunpack.c.l.b16 %v3512
        %v3701 = vunpack.c.h.b16 %v3512
        %v3702 = vunpack.c.l.b16 %v3513
        %v3703 = vunpack.c.h.b16 %v3513
        %v3704 = vunpack.c.l.b16 %v3514
        %v3705 = vunpack.c.h.b16 %v3514
        %v3706 = vunpack.c.l.b16 %v3515
        %v3707 = vunpack.c.h.b16 %v3515
        %v3708 = vunpack.c.l.b16 %v3516
        %v3709 = vunpack.c.h.b16 %v3516
        %v3710 = vunpack.c.l.b16 %v3517
        %v3711 = vunpack.c.h.b16 %v3517
        %v3712 = vunpack.c.l.b16 %v3518
        %v3713 = vunpack.c.h.b16 %v3518
        %v3714 = vunpack.c.l.b16 %v3519
        %v3715 = vunpack.c.h.b16 %v3519
        %v3716 = vunpack.c.l.b16 %v3520
        %v3717 = vunpack.c.h.b16 %v3520
        %v3718 = vunpack.c.l.b16 %v3521
        %v3719 = vunpack.c.h.b16 %v3521
        %v3720 = vunpack.c.l.b16 %v3522
        %v3721 = vunpack.c.h.b16 %v3522
        %v3722 = vunpack.c.l.b16 %v3523
        %v3723 = vunpack.c.h.b16 %v3523
        %v3724 = vunpack.c.l.b16 %v3524
        %v3725 = vunpack.c.h.b16 %v3524
        %v3726 = vunpack.c.l.b16 %v3525
        %v3727 = vunpack.c.h.b16 %v3525
        %v3728 = vunpack.c.l.b16 %v3526
        %v3729 = vunpack.c.h.b16 %v3526
        %v3730 = vunpack.c.l.b16 %v3527
        %v3731 = vunpack.c.h.b16 %v3527
        %v3732 = vunpack.c.l.b16 %v3528
        %v3733 = vunpack.c.h.b16 %v3528
        %v3734 = vunpack.c.l.b16 %v3529
        %v3735 = vunpack.c.h.b16 %v3529
        %v3736 = vunpack.c.l.b16 %v3530
        %v3737 = vunpack.c.h.b16 %v3530
        %v3738 = vunpack.c.l.b16 %v3531
        %v3739 = vunpack.c.h.b16 %v3531
        %v3740 = vunpack.c.l.b16 %v3532
        %v3741 = vunpack.c.h.b16 %v3532
        %v3742 = vunpack.c.l.b16 %v3533
        %v3743 = vunpack.c.h.b16 %v3533
        %v3744 = vunpack.c.l.b16 %v3534
        %v3745 = vunpack.c.h.b16 %v3534
        %v3746 = vunpack.c.l.b16 %v3535
        %v3747 = vunpack.c.h.b16 %v3535
        %v3748 = vunpack.c.l.b16 %v3536
        %v3749 = vunpack.c.h.b16 %v3536
        %v3750 = vunpack.c.l.b16 %v3537
        %v3751 = vunpack.c.h.b16 %v3537
        %v3752 = vpack.c.b16 %v3628, %v3624
        %v3753 = vpack.c.b16 %v3629, %v3625
        %v3754 = vpack.c.b16 %v3630, %v3626
        %v3755 = vpack.c.b16 %v3631, %v3627
        %v3756 = vpack.c.b16 %v3636, %v3632
        %v3757 = vpack.c.b16 %v3637, %v3633
        %v3758 = vpack.c.b16 %v3638, %v3634
        %v3759 = vpack.c.b16 %v3639, %v3635
        %v3760 = vpack.c.b16 %v3644, %v3640
        %v3761 = vpack.c.b16 %v3645, %v3641
        %v3762 = vpack.c.b16 %v3646, %v3642
        %v3763 = vpack.c.b16 %v3647, %v3643
        %v3764 = vpack.c.b16 %v3652, %v3648
        %v3765 = vpack.c.b16 %v3653, %v3649
        %v3766 = vpack.c.b16 %v3654, %v3650
        %v3767 = vpack.c.b16 %v3655, %v3651
        %v3768 = vpack.c.b16 %v3660, %v3656
        %v3769 = vpack.c.b16 %v3661, %v3657
        %v3770 = vpack.c.b16 %v3662, %v3658
        %v3771 = vpack.c.b16 %v3663, %v3659
        %v3772 = vpack.c.b16 %v3668, %v3664
        %v3773 = vpack.c.b16 %v3669, %v3665
        %v3774 = vpack.c.b16 %v3670, %v3666
        %v3775 = vpack.c.b16 %v3671, %v3667
        %v3776 = vpack.c.b16 %v3676, %v3672
        %v3777 = vpack.c.b16 %v3677, %v3673
        %v3778 = vpack.c.b16 %v3678, %v3674
        %v3779 = vpack.c.b16 %v3679, %v3675
        %v3780 = vpack.c.b16 %v3684, %v3680
        %v3781 = vpack.c.b16 %v3685, %v3681
        %v3782 = vpack.c.b16 %v3686, %v3682
        %v3783 = vpack.c.b16 %v3687, %v3683
        %v3784 = vpack.c.b16 %v3692, %v3688
        %v3785 = vpack.c.b16 %v3693, %v3689
        %v3786 = vpack.c.b16 %v3694, %v3690
        %v3787 = vpack.c.b16 %v3695, %v3691
        %v3788 = vpack.c.b16 %v3700, %v3696
        %v3789 = vpack.c.b16 %v3701, %v3697
        %v3790 = vpack.c.b16 %v3702, %v3698
        %v3791 = vpack.c.b16 %v3703, %v3699
        %v3792 = vpack.c.b16 %v3708, %v3704
        %v3793 = vpack.c.b16 %v3709, %v3705
        %v3794 = vpack.c.b16 %v3710, %v3706
        %v3795 = vpack.c.b16 %v3711, %v3707
        %v3796 = vpack.c.b16 %v3716, %v3712
        %v3797 = vpack.c.b16 %v3717, %v3713
        %v3798 = vpack.c.b16 %v3718, %v3714
        %v3799 = vpack.c.b16 %v3719, %v3715
        %v3800 = vpack.c.b16 %v3724, %v3720
        %v3801 = vpack.c.b16 %v3725, %v3721
        %v3802 = vpack.c.b16 %v3726, %v3722
        %v3803 = vpack.c.b16 %v3727, %v3723
        %v3804 = vpack.c.b16 %v3732, %v3728
        %v3805 = vpack.c.b16 %v3733, %v3729
        %v3806 = vpack.c.b16 %v3734, %v3730
        %v3807 = vpack.c.b16 %v3735, %v3731
        %v3808 = vpack.c.b16 %v3740, %v3736
        %v3809 = vpack.c.b16 %v3741, %v3737
        %v3810 = vpack.c.b16 %v3742, %v3738
        %v3811 = vpack.c.b16 %v3743, %v3739
        %v3812 = vpack.c.b16 %v3748, %v3744
        %v3813 = vpack.c.b16 %v3749, %v3745
        %v3814 = vpack.c.b16 %v3750, %v3746
        %v3815 = vpack.c.b16 %v3751, %v3747
        %3880 = vmatprep.subr.bf16.mxu0 %v3753
        %3881 = vmatpush1.bf16.msra.mxu0 %v3752
        %3882 = vmatprep.subr.bf16.mxu0 %v3757
        %3883 = vmatpush1.bf16.msra.mxu0 %v3756
        %3884 = vmatprep.subr.bf16.mxu0 %v3761
        %3885 = vmatpush1.bf16.msra.mxu0 %v3760
        %3886 = vmatprep.subr.bf16.mxu0 %v3765
        %3887 = vmatpush1.bf16.msra.mxu0 %v3764
        %3888 = vmatprep.subr.bf16.mxu0 %v3769
        %3889 = vmatpush1.bf16.msra.mxu0 %v3768
        %3890 = vmatprep.subr.bf16.mxu0 %v3773
        %3891 = vmatpush1.bf16.msra.mxu0 %v3772
        %3892 = vmatprep.subr.bf16.mxu0 %v3777
        %3893 = vmatpush1.bf16.msra.mxu0 %v3776
        %3894 = vmatprep.subr.bf16.mxu0 %v3781
        %3895 = vmatpush1.bf16.msra.mxu0 %v3780
        %3896 = vmatprep.subr.bf16.mxu0 %v3785
        %3897 = vmatpush1.bf16.msra.mxu0 %v3784
        %3898 = vmatprep.subr.bf16.mxu0 %v3789
        %3899 = vmatpush1.bf16.msra.mxu0 %v3788
        %3900 = vmatprep.subr.bf16.mxu0 %v3793
        %3901 = vmatpush1.bf16.msra.mxu0 %v3792
        %3902 = vmatprep.subr.bf16.mxu0 %v3797
        %3903 = vmatpush1.bf16.msra.mxu0 %v3796
        %3904 = vmatprep.subr.bf16.mxu0 %v3801
        %3905 = vmatpush1.bf16.msra.mxu0 %v3800
        %3906 = vmatprep.subr.bf16.mxu0 %v3805
        %3907 = vmatpush1.bf16.msra.mxu0 %v3804
        %3908 = vmatprep.subr.bf16.mxu0 %v3809
        %3909 = vmatpush1.bf16.msra.mxu0 %v3808
        %3910 = vmatprep.subr.bf16.mxu0 %v3813
        %3911 = vmatpush1.bf16.msra.mxu0 %v3812
        %3912 = vmatprep.mubr.bf16.mxu0 %v3473
        %3913 = vmatmul.mubr.bf16.gmra.mrb[0].mxu0 %v3472
        %v3914 = vpop.f32.mrb[0].mxu0
        %v3915 = vadd.f32 %v3543, %v3914
        %v3916 = vpop.f32.mrb[0].mxu0
        %v3917 = vadd.f32 %v3547, %v3916
        %v3918 = vpop.f32.mrb[0].mxu0
        %v3919 = vadd.f32 %v3543, %v3918
        %v3920 = vpop.f32.mrb[0].mxu0
        %v3921 = vadd.f32 %v3547, %v3920
        %3922 = vdwg.mxu0
        %3923 = vmatprep.subr.bf16.mxu0 %v3755
        %3924 = vmatpush1.bf16.msra.mxu0 %v3754
        %3925 = vmatprep.subr.bf16.mxu0 %v3759
        %3926 = vmatpush1.bf16.msra.mxu0 %v3758
        %3927 = vmatprep.subr.bf16.mxu0 %v3763
        %3928 = vmatpush1.bf16.msra.mxu0 %v3762
        %3929 = vmatprep.subr.bf16.mxu0 %v3767
        %3930 = vmatpush1.bf16.msra.mxu0 %v3766
        %3931 = vmatprep.subr.bf16.mxu0 %v3771
        %3932 = vmatpush1.bf16.msra.mxu0 %v3770
        %3933 = vmatprep.subr.bf16.mxu0 %v3775
        %3934 = vmatpush1.bf16.msra.mxu0 %v3774
        %3935 = vmatprep.subr.bf16.mxu0 %v3779
        %3936 = vmatpush1.bf16.msra.mxu0 %v3778
        %3937 = vmatprep.subr.bf16.mxu0 %v3783
        %3938 = vmatpush1.bf16.msra.mxu0 %v3782
        %3939 = vmatprep.subr.bf16.mxu0 %v3787
        %3940 = vmatpush1.bf16.msra.mxu0 %v3786
        %3941 = vmatprep.subr.bf16.mxu0 %v3791
        %3942 = vmatpush1.bf16.msra.mxu0 %v3790
        %3943 = vmatprep.subr.bf16.mxu0 %v3795
        %3944 = vmatpush1.bf16.msra.mxu0 %v3794
        %3945 = vmatprep.subr.bf16.mxu0 %v3799
        %3946 = vmatpush1.bf16.msra.mxu0 %v3798
        %3947 = vmatprep.subr.bf16.mxu0 %v3803
        %3948 = vmatpush1.bf16.msra.mxu0 %v3802
        %3949 = vmatprep.subr.bf16.mxu0 %v3807
        %3950 = vmatpush1.bf16.msra.mxu0 %v3806
        %3951 = vmatprep.subr.bf16.mxu0 %v3811
        %3952 = vmatpush1.bf16.msra.mxu0 %v3810
        %3953 = vmatprep.subr.bf16.mxu0 %v3815
        %3954 = vmatpush1.bf16.msra.mxu0 %v3814
        %3955 = vmatprep.mubr.bf16.mxu0 %v3473
        %3956 = vmatmul.mubr.bf16.gmra.mrb[0].mxu0 %v3472
        %v3957 = vpop.f32.mrb[0].mxu0
        %v3958 = vadd.f32 %v3551, %v3957
        %v3959 = vpop.f32.mrb[0].mxu0
        %v3960 = vadd.f32 %v3555, %v3959
        %v3961 = vpop.f32.mrb[0].mxu0
        %v3962 = vadd.f32 %v3551, %v3961
        %v3963 = vpop.f32.mrb[0].mxu0
        %v3964 = vadd.f32 %v3555, %v3963
        %3965 = vdwg.mxu0
        %v3966 = vmax.f32 %v3915, 0.0
        %v3967 = vmax.f32 %v3917, 0.0
        %v3968 = vmax.f32 %v3958, 0.0
        %v3969 = vmax.f32 %v3960, 0.0
        %v3970 = vmax.f32 %v3919, 0.0
        %v3971 = vmax.f32 %v3921, 0.0
        %v3972 = vmax.f32 %v3962, 0.0
        %v3973 = vmax.f32 %v3964, 0.0
        %v3974 = vpack.c.bf16 %v3970, %v3966
        %v3975 = vpack.c.bf16 %v3971, %v3967
        %v3976 = vpack.c.bf16 %v3972, %v3968
        %v3977 = vpack.c.bf16 %v3973, %v3969
        %v3978 = vld [vmem:[%s391] sm:$0xff]
        %v3979 = vld [vmem:[%s391 + $0x8] sm:$0xff]
        %v3980 = vld [vmem:[%s391 + $0x10] sm:$0xff]
        %v3981 = vld [vmem:[%s391 + $0x18] sm:$0xff]
        %v3982 = vld [vmem:[%s391 + $0x20] sm:$0xff]
        %v3983 = vld [vmem:[%s391 + $0x28] sm:$0xff]
        %v3984 = vld [vmem:[%s391 + $0x30] sm:$0xff]
        %v3985 = vld [vmem:[%s391 + $0x38] sm:$0xff]
        %v3986 = vld [vmem:[%s391 + $0x40] sm:$0xff]
        %v3987 = vld [vmem:[%s391 + $0x48] sm:$0xff]
        %v3988 = vld [vmem:[%s391 + $0x50] sm:$0xff]
        %v3989 = vld [vmem:[%s391 + $0x58] sm:$0xff]
        %v3990 = vld [vmem:[%s391 + $0x60] sm:$0xff]
        %v3991 = vld [vmem:[%s391 + $0x68] sm:$0xff]
        %v3992 = vld [vmem:[%s391 + $0x70] sm:$0xff]
        %v3993 = vld [vmem:[%s391 + $0x78] sm:$0xff]
        %v3994 = vld [vmem:[%s391 + $0x80] sm:$0xff]
        %v3995 = vld [vmem:[%s391 + $0x88] sm:$0xff]
        %v3996 = vld [vmem:[%s391 + $0x90] sm:$0xff]
        %v3997 = vld [vmem:[%s391 + $0x98] sm:$0xff]
        %v3998 = vld [vmem:[%s391 + $0xa0] sm:$0xff]
        %v3999 = vld [vmem:[%s391 + $0xa8] sm:$0xff]
        %v4000 = vld [vmem:[%s391 + $0xb0] sm:$0xff]
        %v4001 = vld [vmem:[%s391 + $0xb8] sm:$0xff]
        %v4002 = vld [vmem:[%s391 + $0xc0] sm:$0xff]
        %v4003 = vld [vmem:[%s391 + $0xc8] sm:$0xff]
        %v4004 = vld [vmem:[%s391 + $0xd0] sm:$0xff]
        %v4005 = vld [vmem:[%s391 + $0xd8] sm:$0xff]
        %v4006 = vld [vmem:[%s391 + $0xe0] sm:$0xff]
        %v4007 = vld [vmem:[%s391 + $0xe8] sm:$0xff]
        %v4008 = vld [vmem:[%s391 + $0xf0] sm:$0xff]
        %v4009 = vld [vmem:[%s391 + $0xf8] sm:$0xff]
        %v4010 = vld [vmem:[%s391 + $0x100] sm:$0xff]
        %v4011 = vld [vmem:[%s391 + $0x108] sm:$0xff]
        %v4012 = vld [vmem:[%s391 + $0x110] sm:$0xff]
        %v4013 = vld [vmem:[%s391 + $0x118] sm:$0xff]
        %v4014 = vld [vmem:[%s391 + $0x120] sm:$0xff]
        %v4015 = vld [vmem:[%s391 + $0x128] sm:$0xff]
        %v4016 = vld [vmem:[%s391 + $0x130] sm:$0xff]
        %v4017 = vld [vmem:[%s391 + $0x138] sm:$0xff]
        %v4018 = vld [vmem:[%s391 + $0x140] sm:$0xff]
        %v4019 = vld [vmem:[%s391 + $0x148] sm:$0xff]
        %v4020 = vld [vmem:[%s391 + $0x150] sm:$0xff]
        %v4021 = vld [vmem:[%s391 + $0x158] sm:$0xff]
        %v4022 = vld [vmem:[%s391 + $0x160] sm:$0xff]
        %v4023 = vld [vmem:[%s391 + $0x168] sm:$0xff]
        %v4024 = vld [vmem:[%s391 + $0x170] sm:$0xff]
        %v4025 = vld [vmem:[%s391 + $0x178] sm:$0xff]
        %v4026 = vld [vmem:[%s391 + $0x180] sm:$0xff]
        %v4027 = vld [vmem:[%s391 + $0x188] sm:$0xff]
        %v4028 = vld [vmem:[%s391 + $0x190] sm:$0xff]
        %v4029 = vld [vmem:[%s391 + $0x198] sm:$0xff]
        %v4030 = vld [vmem:[%s391 + $0x1a0] sm:$0xff]
        %v4031 = vld [vmem:[%s391 + $0x1a8] sm:$0xff]
        %v4032 = vld [vmem:[%s391 + $0x1b0] sm:$0xff]
        %v4033 = vld [vmem:[%s391 + $0x1b8] sm:$0xff]
        %v4034 = vld [vmem:[%s391 + $0x1c0] sm:$0xff]
        %v4035 = vld [vmem:[%s391 + $0x1c8] sm:$0xff]
        %v4036 = vld [vmem:[%s391 + $0x1d0] sm:$0xff]
        %v4037 = vld [vmem:[%s391 + $0x1d8] sm:$0xff]
        %v4038 = vld [vmem:[%s391 + $0x1e0] sm:$0xff]
        %v4039 = vld [vmem:[%s391 + $0x1e8] sm:$0xff]
        %v4040 = vld [vmem:[%s391 + $0x1f0] sm:$0xff]
        %v4041 = vld [vmem:[%s391 + $0x1f8] sm:$0xff]
        %v4042 = vld [vmem:[%s400 + $0x1c] sm:$0x3]
        %v4044 = vlaneseq
        %v4045 = vshrl.u32 %v4044, 7
        %v4046 = vsub.s32 0, %v4045
        %v4047 = vrot.slane %v4042, %v4046
        %v4048 = vlaneseq
        %v4049 = vshrl.u32 %v4048, 7
        %v4050 = vsub.s32 1, %v4049
        %v4051 = vrot.slane %v4042, %v4050
        %v4118 = vunpack.c.l.b16 %v3978
        %v4119 = vunpack.c.h.b16 %v3978
        %v4120 = vunpack.c.l.b16 %v3979
        %v4121 = vunpack.c.h.b16 %v3979
        %v4122 = vunpack.c.l.b16 %v3980
        %v4123 = vunpack.c.h.b16 %v3980
        %v4124 = vunpack.c.l.b16 %v3981
        %v4125 = vunpack.c.h.b16 %v3981
        %v4126 = vunpack.c.l.b16 %v3982
        %v4127 = vunpack.c.h.b16 %v3982
        %v4128 = vunpack.c.l.b16 %v3983
        %v4129 = vunpack.c.h.b16 %v3983
        %v4130 = vunpack.c.l.b16 %v3984
        %v4131 = vunpack.c.h.b16 %v3984
        %v4132 = vunpack.c.l.b16 %v3985
        %v4133 = vunpack.c.h.b16 %v3985
        %v4134 = vunpack.c.l.b16 %v3986
        %v4135 = vunpack.c.h.b16 %v3986
        %v4136 = vunpack.c.l.b16 %v3987
        %v4137 = vunpack.c.h.b16 %v3987
        %v4138 = vunpack.c.l.b16 %v3988
        %v4139 = vunpack.c.h.b16 %v3988
        %v4140 = vunpack.c.l.b16 %v3989
        %v4141 = vunpack.c.h.b16 %v3989
        %v4142 = vunpack.c.l.b16 %v3990
        %v4143 = vunpack.c.h.b16 %v3990
        %v4144 = vunpack.c.l.b16 %v3991
        %v4145 = vunpack.c.h.b16 %v3991
        %v4146 = vunpack.c.l.b16 %v3992
        %v4147 = vunpack.c.h.b16 %v3992
        %v4148 = vunpack.c.l.b16 %v3993
        %v4149 = vunpack.c.h.b16 %v3993
        %v4150 = vunpack.c.l.b16 %v3994
        %v4151 = vunpack.c.h.b16 %v3994
        %v4152 = vunpack.c.l.b16 %v3995
        %v4153 = vunpack.c.h.b16 %v3995
        %v4154 = vunpack.c.l.b16 %v3996
        %v4155 = vunpack.c.h.b16 %v3996
        %v4156 = vunpack.c.l.b16 %v3997
        %v4157 = vunpack.c.h.b16 %v3997
        %v4158 = vunpack.c.l.b16 %v3998
        %v4159 = vunpack.c.h.b16 %v3998
        %v4160 = vunpack.c.l.b16 %v3999
        %v4161 = vunpack.c.h.b16 %v3999
        %v4162 = vunpack.c.l.b16 %v4000
        %v4163 = vunpack.c.h.b16 %v4000
        %v4164 = vunpack.c.l.b16 %v4001
        %v4165 = vunpack.c.h.b16 %v4001
        %v4166 = vunpack.c.l.b16 %v4002
        %v4167 = vunpack.c.h.b16 %v4002
        %v4168 = vunpack.c.l.b16 %v4003
        %v4169 = vunpack.c.h.b16 %v4003
        %v4170 = vunpack.c.l.b16 %v4004
        %v4171 = vunpack.c.h.b16 %v4004
        %v4172 = vunpack.c.l.b16 %v4005
        %v4173 = vunpack.c.h.b16 %v4005
        %v4174 = vunpack.c.l.b16 %v4006
        %v4175 = vunpack.c.h.b16 %v4006
        %v4176 = vunpack.c.l.b16 %v4007
        %v4177 = vunpack.c.h.b16 %v4007
        %v4178 = vunpack.c.l.b16 %v4008
        %v4179 = vunpack.c.h.b16 %v4008
        %v4180 = vunpack.c.l.b16 %v4009
        %v4181 = vunpack.c.h.b16 %v4009
        %v4182 = vunpack.c.l.b16 %v4010
        %v4183 = vunpack.c.h.b16 %v4010
        %v4184 = vunpack.c.l.b16 %v4011
        %v4185 = vunpack.c.h.b16 %v4011
        %v4186 = vunpack.c.l.b16 %v4012
        %v4187 = vunpack.c.h.b16 %v4012
        %v4188 = vunpack.c.l.b16 %v4013
        %v4189 = vunpack.c.h.b16 %v4013
        %v4190 = vunpack.c.l.b16 %v4014
        %v4191 = vunpack.c.h.b16 %v4014
        %v4192 = vunpack.c.l.b16 %v4015
        %v4193 = vunpack.c.h.b16 %v4015
        %v4194 = vunpack.c.l.b16 %v4016
        %v4195 = vunpack.c.h.b16 %v4016
        %v4196 = vunpack.c.l.b16 %v4017
        %v4197 = vunpack.c.h.b16 %v4017
        %v4198 = vunpack.c.l.b16 %v4018
        %v4199 = vunpack.c.h.b16 %v4018
        %v4200 = vunpack.c.l.b16 %v4019
        %v4201 = vunpack.c.h.b16 %v4019
        %v4202 = vunpack.c.l.b16 %v4020
        %v4203 = vunpack.c.h.b16 %v4020
        %v4204 = vunpack.c.l.b16 %v4021
        %v4205 = vunpack.c.h.b16 %v4021
        %v4206 = vunpack.c.l.b16 %v4022
        %v4207 = vunpack.c.h.b16 %v4022
        %v4208 = vunpack.c.l.b16 %v4023
        %v4209 = vunpack.c.h.b16 %v4023
        %v4210 = vunpack.c.l.b16 %v4024
        %v4211 = vunpack.c.h.b16 %v4024
        %v4212 = vunpack.c.l.b16 %v4025
        %v4213 = vunpack.c.h.b16 %v4025
        %v4214 = vunpack.c.l.b16 %v4026
        %v4215 = vunpack.c.h.b16 %v4026
        %v4216 = vunpack.c.l.b16 %v4027
        %v4217 = vunpack.c.h.b16 %v4027
        %v4218 = vunpack.c.l.b16 %v4028
        %v4219 = vunpack.c.h.b16 %v4028
        %v4220 = vunpack.c.l.b16 %v4029
        %v4221 = vunpack.c.h.b16 %v4029
        %v4222 = vunpack.c.l.b16 %v4030
        %v4223 = vunpack.c.h.b16 %v4030
        %v4224 = vunpack.c.l.b16 %v4031
        %v4225 = vunpack.c.h.b16 %v4031
        %v4226 = vunpack.c.l.b16 %v4032
        %v4227 = vunpack.c.h.b16 %v4032
        %v4228 = vunpack.c.l.b16 %v4033
        %v4229 = vunpack.c.h.b16 %v4033
        %v4230 = vunpack.c.l.b16 %v4034
        %v4231 = vunpack.c.h.b16 %v4034
        %v4232 = vunpack.c.l.b16 %v4035
        %v4233 = vunpack.c.h.b16 %v4035
        %v4234 = vunpack.c.l.b16 %v4036
        %v4235 = vunpack.c.h.b16 %v4036
        %v4236 = vunpack.c.l.b16 %v4037
        %v4237 = vunpack.c.h.b16 %v4037
        %v4238 = vunpack.c.l.b16 %v4038
        %v4239 = vunpack.c.h.b16 %v4038
        %v4240 = vunpack.c.l.b16 %v4039
        %v4241 = vunpack.c.h.b16 %v4039
        %v4242 = vunpack.c.l.b16 %v4040
        %v4243 = vunpack.c.h.b16 %v4040
        %v4244 = vunpack.c.l.b16 %v4041
        %v4245 = vunpack.c.h.b16 %v4041
        %v4246 = vpack.c.b16 %v4120, %v4118
        %v4247 = vpack.c.b16 %v4121, %v4119
        %v4248 = vpack.c.b16 %v4124, %v4122
        %v4249 = vpack.c.b16 %v4125, %v4123
        %v4250 = vpack.c.b16 %v4128, %v4126
        %v4251 = vpack.c.b16 %v4129, %v4127
        %v4252 = vpack.c.b16 %v4132, %v4130
        %v4253 = vpack.c.b16 %v4133, %v4131
        %v4254 = vpack.c.b16 %v4136, %v4134
        %v4255 = vpack.c.b16 %v4137, %v4135
        %v4256 = vpack.c.b16 %v4140, %v4138
        %v4257 = vpack.c.b16 %v4141, %v4139
        %v4258 = vpack.c.b16 %v4144, %v4142
        %v4259 = vpack.c.b16 %v4145, %v4143
        %v4260 = vpack.c.b16 %v4148, %v4146
        %v4261 = vpack.c.b16 %v4149, %v4147
        %v4262 = vpack.c.b16 %v4152, %v4150
        %v4263 = vpack.c.b16 %v4153, %v4151
        %v4264 = vpack.c.b16 %v4156, %v4154
        %v4265 = vpack.c.b16 %v4157, %v4155
        %v4266 = vpack.c.b16 %v4160, %v4158
        %v4267 = vpack.c.b16 %v4161, %v4159
        %v4268 = vpack.c.b16 %v4164, %v4162
        %v4269 = vpack.c.b16 %v4165, %v4163
        %v4270 = vpack.c.b16 %v4168, %v4166
        %v4271 = vpack.c.b16 %v4169, %v4167
        %v4272 = vpack.c.b16 %v4172, %v4170
        %v4273 = vpack.c.b16 %v4173, %v4171
        %v4274 = vpack.c.b16 %v4176, %v4174
        %v4275 = vpack.c.b16 %v4177, %v4175
        %v4276 = vpack.c.b16 %v4180, %v4178
        %v4277 = vpack.c.b16 %v4181, %v4179
        %v4278 = vpack.c.b16 %v4184, %v4182
        %v4279 = vpack.c.b16 %v4185, %v4183
        %v4280 = vpack.c.b16 %v4188, %v4186
        %v4281 = vpack.c.b16 %v4189, %v4187
        %v4282 = vpack.c.b16 %v4192, %v4190
        %v4283 = vpack.c.b16 %v4193, %v4191
        %v4284 = vpack.c.b16 %v4196, %v4194
        %v4285 = vpack.c.b16 %v4197, %v4195
        %v4286 = vpack.c.b16 %v4200, %v4198
        %v4287 = vpack.c.b16 %v4201, %v4199
        %v4288 = vpack.c.b16 %v4204, %v4202
        %v4289 = vpack.c.b16 %v4205, %v4203
        %v4290 = vpack.c.b16 %v4208, %v4206
        %v4291 = vpack.c.b16 %v4209, %v4207
        %v4292 = vpack.c.b16 %v4212, %v4210
        %v4293 = vpack.c.b16 %v4213, %v4211
        %v4294 = vpack.c.b16 %v4216, %v4214
        %v4295 = vpack.c.b16 %v4217, %v4215
        %v4296 = vpack.c.b16 %v4220, %v4218
        %v4297 = vpack.c.b16 %v4221, %v4219
        %v4298 = vpack.c.b16 %v4224, %v4222
        %v4299 = vpack.c.b16 %v4225, %v4223
        %v4300 = vpack.c.b16 %v4228, %v4226
        %v4301 = vpack.c.b16 %v4229, %v4227
        %v4302 = vpack.c.b16 %v4232, %v4230
        %v4303 = vpack.c.b16 %v4233, %v4231
        %v4304 = vpack.c.b16 %v4236, %v4234
        %v4305 = vpack.c.b16 %v4237, %v4235
        %v4306 = vpack.c.b16 %v4240, %v4238
        %v4307 = vpack.c.b16 %v4241, %v4239
        %v4308 = vpack.c.b16 %v4244, %v4242
        %v4309 = vpack.c.b16 %v4245, %v4243
        %4374 = vmatprep.subr.bf16.mxu0 %v4247
        %4375 = vmatpush1.bf16.msra.mxu0 %v4246
        %4376 = vmatprep.subr.bf16.mxu0 %v4249
        %4377 = vmatpush1.bf16.msra.mxu0 %v4248
        %4378 = vmatprep.subr.bf16.mxu0 %v4251
        %4379 = vmatpush1.bf16.msra.mxu0 %v4250
        %4380 = vmatprep.subr.bf16.mxu0 %v4253
        %4381 = vmatpush1.bf16.msra.mxu0 %v4252
        %4382 = vmatprep.subr.bf16.mxu0 %v4255
        %4383 = vmatpush1.bf16.msra.mxu0 %v4254
        %4384 = vmatprep.subr.bf16.mxu0 %v4257
        %4385 = vmatpush1.bf16.msra.mxu0 %v4256
        %4386 = vmatprep.subr.bf16.mxu0 %v4259
        %4387 = vmatpush1.bf16.msra.mxu0 %v4258
        %4388 = vmatprep.subr.bf16.mxu0 %v4261
        %4389 = vmatpush1.bf16.msra.mxu0 %v4260
        %4390 = vmatprep.subr.bf16.mxu0 %v4263
        %4391 = vmatpush1.bf16.msra.mxu0 %v4262
        %4392 = vmatprep.subr.bf16.mxu0 %v4265
        %4393 = vmatpush1.bf16.msra.mxu0 %v4264
        %4394 = vmatprep.subr.bf16.mxu0 %v4267
        %4395 = vmatpush1.bf16.msra.mxu0 %v4266
        %4396 = vmatprep.subr.bf16.mxu0 %v4269
        %4397 = vmatpush1.bf16.msra.mxu0 %v4268
        %4398 = vmatprep.subr.bf16.mxu0 %v4271
        %4399 = vmatpush1.bf16.msra.mxu0 %v4270
        %4400 = vmatprep.subr.bf16.mxu0 %v4273
        %4401 = vmatpush1.bf16.msra.mxu0 %v4272
        %4402 = vmatprep.subr.bf16.mxu0 %v4275
        %4403 = vmatpush1.bf16.msra.mxu0 %v4274
        %4404 = vmatprep.subr.bf16.mxu0 %v4277
        %4405 = vmatpush1.bf16.msra.mxu0 %v4276
        %4406 = vmatprep.mubr.bf16.mxu0 %v3975
        %4407 = vmatmul.mubr.bf16.gmra.mrb[0].mxu0 %v3974
        %v4408 = vpop.f32.mrb[0].mxu0
        %v4409 = vadd.f32 %v4047, %v4408
        %v4410 = vpop.f32.mrb[0].mxu0
        %v4411 = vadd.f32 %v4051, %v4410
        %v4412 = vpop.f32.mrb[0].mxu0
        %v4413 = vadd.f32 %v4047, %v4412
        %v4414 = vpop.f32.mrb[0].mxu0
        %v4415 = vadd.f32 %v4051, %v4414
        %4416 = vdwg.mxu0
        %4417 = vmatprep.subr.bf16.mxu0 %v4279
        %4418 = vmatpush1.bf16.msra.mxu0 %v4278
        %4419 = vmatprep.subr.bf16.mxu0 %v4281
        %4420 = vmatpush1.bf16.msra.mxu0 %v4280
        %4421 = vmatprep.subr.bf16.mxu0 %v4283
        %4422 = vmatpush1.bf16.msra.mxu0 %v4282
        %4423 = vmatprep.subr.bf16.mxu0 %v4285
        %4424 = vmatpush1.bf16.msra.mxu0 %v4284
        %4425 = vmatprep.subr.bf16.mxu0 %v4287
        %4426 = vmatpush1.bf16.msra.mxu0 %v4286
        %4427 = vmatprep.subr.bf16.mxu0 %v4289
        %4428 = vmatpush1.bf16.msra.mxu0 %v4288
        %4429 = vmatprep.subr.bf16.mxu0 %v4291
        %4430 = vmatpush1.bf16.msra.mxu0 %v4290
        %4431 = vmatprep.subr.bf16.mxu0 %v4293
        %4432 = vmatpush1.bf16.msra.mxu0 %v4292
        %4433 = vmatprep.subr.bf16.mxu0 %v4295
        %4434 = vmatpush1.bf16.msra.mxu0 %v4294
        %4435 = vmatprep.subr.bf16.mxu0 %v4297
        %4436 = vmatpush1.bf16.msra.mxu0 %v4296
        %4437 = vmatprep.subr.bf16.mxu0 %v4299
        %4438 = vmatpush1.bf16.msra.mxu0 %v4298
        %4439 = vmatprep.subr.bf16.mxu0 %v4301
        %4440 = vmatpush1.bf16.msra.mxu0 %v4300
        %4441 = vmatprep.subr.bf16.mxu0 %v4303
        %4442 = vmatpush1.bf16.msra.mxu0 %v4302
        %4443 = vmatprep.subr.bf16.mxu0 %v4305
        %4444 = vmatpush1.bf16.msra.mxu0 %v4304
        %4445 = vmatprep.subr.bf16.mxu0 %v4307
        %4446 = vmatpush1.bf16.msra.mxu0 %v4306
        %4447 = vmatprep.subr.bf16.mxu0 %v4309
        %4448 = vmatpush1.bf16.msra.mxu0 %v4308
        %4449 = vmatprep.mubr.bf16.mxu0 %v3977
        %4450 = vmatmul.mubr.bf16.gmra.mrb[0].mxu0 %v3976
        %v4451 = vpop.f32.mrb[0].mxu0
        %v4452 = vadd.f32 %v4409, %v4451
        %v4453 = vpop.f32.mrb[0].mxu0
        %v4454 = vadd.f32 %v4411, %v4453
        %v4455 = vpop.f32.mrb[0].mxu0
        %v4456 = vadd.f32 %v4413, %v4455
        %v4457 = vpop.f32.mrb[0].mxu0
        %v4458 = vadd.f32 %v4415, %v4457
        %4459 = vdwg.mxu0
        %v4460 = vadd.f32 %v3468, %v4452
        %v4461 = vadd.f32 %v3469, %v4454
        %v4462 = vadd.f32 %v3470, %v4456
        %v4463 = vadd.f32 %v3471, %v4458
        %v4464 = vld [vmem:[%s400 + $0x1e] sm:$0x3]
        %v4465 = vld [vmem:[%s400 + $0x20] sm:$0x3]
        %v4466 = vadd.f32 %v4460, %v4461
        %4467 = vadd.xlane.f32.xlu0 %v4466
        %v4468 = vpop.xlane.xlu0 %4467
        %v4469 = vadd.f32 %v4462, %v4463
        %4470 = vadd.xlane.f32.xlu0 %v4469
        %v4471 = vpop.xlane.xlu0 %4470
        %v4472 = vmul.f32 %v4468, %v1907
        %v4473 = vmul.f32 %v4471, %v1907
        %v4474 = vsub.f32 %v4460, %v4472
        %v4475 = vsub.f32 %v4461, %v4472
        %v4476 = vsub.f32 %v4462, %v4473
        %v4477 = vsub.f32 %v4463, %v4473
        %v4478 = vmul.f32 %v4474, %v4474
        %v4479 = vmul.f32 %v4475, %v4475
        %v4480 = vmul.f32 %v4476, %v4476
        %v4481 = vmul.f32 %v4477, %v4477
        %v4482 = vadd.f32 %v4478, %v4479
        %4483 = vadd.xlane.f32.xlu0 %v4482
        %v4484 = vpop.xlane.xlu0 %4483
        %v4485 = vadd.f32 %v4480, %v4481
        %4486 = vadd.xlane.f32.xlu0 %v4485
        %v4487 = vpop.xlane.xlu0 %4486
        %v4488 = vmul.f32 %v4484, %v1907
        %v4489 = vmul.f32 %v4487, %v1907
        %v4490 = vadd.f32 %v4488, 1e-05
        %v4491 = vadd.f32 %v4489, 1e-05
        %v4492 = vrsqrt.pop %v4490
        %v4493 = vrsqrt.pop %v4491
        %v4494 = vmul.f32 %v4474, %v4492
        %v4495 = vmul.f32 %v4475, %v4492
        %v4496 = vmul.f32 %v4476, %v4493
        %v4497 = vmul.f32 %v4477, %v4493
        %v4499 = vlaneseq
        %v4500 = vshrl.u32 %v4499, 7
        %v4501 = vsub.s32 0, %v4500
        %v4502 = vrot.slane %v4464, %v4501
        %v4503 = vlaneseq
        %v4504 = vshrl.u32 %v4503, 7
        %v4505 = vsub.s32 1, %v4504
        %v4506 = vrot.slane %v4464, %v4505
        %v4509 = vmul.f32 %v4494, %v4502
        %v4510 = vmul.f32 %v4495, %v4506
        %v4511 = vmul.f32 %v4496, %v4502
        %v4512 = vmul.f32 %v4497, %v4506
        %v4514 = vlaneseq
        %v4515 = vshrl.u32 %v4514, 7
        %v4516 = vsub.s32 0, %v4515
        %v4517 = vrot.slane %v4465, %v4516
        %v4518 = vlaneseq
        %v4519 = vshrl.u32 %v4518, 7
        %v4520 = vsub.s32 1, %v4519
        %v4521 = vrot.slane %v4465, %v4520
        %v4524 = vadd.f32 %v4509, %v4517
        %v4525 = vadd.f32 %v4510, %v4521
        %v4526 = vadd.f32 %v4511, %v4517
        %v4527 = vadd.f32 %v4512, %v4521
        %4528 = vst [vmem:[#allocation2] sm:$0xff] %v4524
        %4529 = vst [vmem:[#allocation2 + $0x8] sm:$0xff] %v4525
        %4530 = vst [vmem:[#allocation2 + $0x10] sm:$0xff] %v4526
        %4531 = vst [vmem:[#allocation2 + $0x18] sm:$0xff] %v4527
        %p4532 = scmp.eq.s32.totalorder %s27, 1
        // Predicated region
        $region81: #{tpu_custom_call.1} parent=47 // pred_check
          %p4533 = pneg %p4532
        $region82: #{tpu_custom_call.1} parent=47 // pred_check_branch
          %4535 = sbr.rel (%p4533) target = $region84
        $region83: #{tpu_custom_call.1} parent=47 // pred_region
          %v4536 = vpack.c.bf16 %v4526, %v4524
          %v4537 = vpack.c.bf16 %v4527, %v4525
          %v4538 = vld [vmem:[#allocation11] sm:$0xff]
          %v4539 = vld [vmem:[#allocation11 + $0x8] sm:$0xff]
          %v4540 = vld [vmem:[#allocation11 + $0x10] sm:$0xff]
          %v4541 = vld [vmem:[#allocation11 + $0x18] sm:$0xff]
          %v4542 = vld [vmem:[#allocation11 + $0x20] sm:$0xff]
          %v4543 = vld [vmem:[#allocation11 + $0x28] sm:$0xff]
          %v4544 = vld [vmem:[#allocation11 + $0x30] sm:$0xff]
          %v4545 = vld [vmem:[#allocation11 + $0x38] sm:$0xff]
          %v4546 = vld [vmem:[#allocation11 + $0x40] sm:$0xff]
          %v4547 = vld [vmem:[#allocation11 + $0x48] sm:$0xff]
          %v4548 = vld [vmem:[#allocation11 + $0x50] sm:$0xff]
          %v4549 = vld [vmem:[#allocation11 + $0x58] sm:$0xff]
          %v4550 = vld [vmem:[#allocation11 + $0x60] sm:$0xff]
          %v4551 = vld [vmem:[#allocation11 + $0x68] sm:$0xff]
          %v4552 = vld [vmem:[#allocation11 + $0x70] sm:$0xff]
          %v4553 = vld [vmem:[#allocation11 + $0x78] sm:$0xff]
          %v4554 = vld [vmem:[#allocation11 + $0x80] sm:$0xff]
          %v4555 = vld [vmem:[#allocation11 + $0x88] sm:$0xff]
          %v4556 = vld [vmem:[#allocation11 + $0x90] sm:$0xff]
          %v4557 = vld [vmem:[#allocation11 + $0x98] sm:$0xff]
          %v4558 = vld [vmem:[#allocation11 + $0xa0] sm:$0xff]
          %v4559 = vld [vmem:[#allocation11 + $0xa8] sm:$0xff]
          %v4560 = vld [vmem:[#allocation11 + $0xb0] sm:$0xff]
          %v4561 = vld [vmem:[#allocation11 + $0xb8] sm:$0xff]
          %v4562 = vld [vmem:[#allocation11 + $0xc0] sm:$0xff]
          %v4563 = vld [vmem:[#allocation11 + $0xc8] sm:$0xff]
          %v4564 = vld [vmem:[#allocation11 + $0xd0] sm:$0xff]
          %v4565 = vld [vmem:[#allocation11 + $0xd8] sm:$0xff]
          %v4566 = vld [vmem:[#allocation11 + $0xe0] sm:$0xff]
          %v4567 = vld [vmem:[#allocation11 + $0xe8] sm:$0xff]
          %v4568 = vld [vmem:[#allocation11 + $0xf0] sm:$0xff]
          %v4569 = vld [vmem:[#allocation11 + $0xf8] sm:$0xff]
          %v4570 = vld [vmem:[#allocation12] sm:$0x3]
          %v4572 = vlaneseq
          %v4573 = vshrl.u32 %v4572, 7
          %v4574 = vsub.s32 0, %v4573
          %v4575 = vrot.slane %v4570, %v4574
          %v4576 = vlaneseq
          %v4577 = vshrl.u32 %v4576, 7
          %v4578 = vsub.s32 1, %v4577
          %v4579 = vrot.slane %v4570, %v4578
          %v4614 = vunpack.c.l.b16 %v4538
          %v4615 = vunpack.c.h.b16 %v4538
          %v4616 = vunpack.c.l.b16 %v4539
          %v4617 = vunpack.c.h.b16 %v4539
          %v4618 = vunpack.c.l.b16 %v4540
          %v4619 = vunpack.c.h.b16 %v4540
          %v4620 = vunpack.c.l.b16 %v4541
          %v4621 = vunpack.c.h.b16 %v4541
          %v4622 = vunpack.c.l.b16 %v4542
          %v4623 = vunpack.c.h.b16 %v4542
          %v4624 = vunpack.c.l.b16 %v4543
          %v4625 = vunpack.c.h.b16 %v4543
          %v4626 = vunpack.c.l.b16 %v4544
          %v4627 = vunpack.c.h.b16 %v4544
          %v4628 = vunpack.c.l.b16 %v4545
          %v4629 = vunpack.c.h.b16 %v4545
          %v4630 = vunpack.c.l.b16 %v4546
          %v4631 = vunpack.c.h.b16 %v4546
          %v4632 = vunpack.c.l.b16 %v4547
          %v4633 = vunpack.c.h.b16 %v4547
          %v4634 = vunpack.c.l.b16 %v4548
          %v4635 = vunpack.c.h.b16 %v4548
          %v4636 = vunpack.c.l.b16 %v4549
          %v4637 = vunpack.c.h.b16 %v4549
          %v4638 = vunpack.c.l.b16 %v4550
          %v4639 = vunpack.c.h.b16 %v4550
          %v4640 = vunpack.c.l.b16 %v4551
          %v4641 = vunpack.c.h.b16 %v4551
          %v4642 = vunpack.c.l.b16 %v4552
          %v4643 = vunpack.c.h.b16 %v4552
          %v4644 = vunpack.c.l.b16 %v4553
          %v4645 = vunpack.c.h.b16 %v4553
          %v4646 = vunpack.c.l.b16 %v4554
          %v4647 = vunpack.c.h.b16 %v4554
          %v4648 = vunpack.c.l.b16 %v4555
          %v4649 = vunpack.c.h.b16 %v4555
          %v4650 = vunpack.c.l.b16 %v4556
          %v4651 = vunpack.c.h.b16 %v4556
          %v4652 = vunpack.c.l.b16 %v4557
          %v4653 = vunpack.c.h.b16 %v4557
          %v4654 = vunpack.c.l.b16 %v4558
          %v4655 = vunpack.c.h.b16 %v4558
          %v4656 = vunpack.c.l.b16 %v4559
          %v4657 = vunpack.c.h.b16 %v4559
          %v4658 = vunpack.c.l.b16 %v4560
          %v4659 = vunpack.c.h.b16 %v4560
          %v4660 = vunpack.c.l.b16 %v4561
          %v4661 = vunpack.c.h.b16 %v4561
          %v4662 = vunpack.c.l.b16 %v4562
          %v4663 = vunpack.c.h.b16 %v4562
          %v4664 = vunpack.c.l.b16 %v4563
          %v4665 = vunpack.c.h.b16 %v4563
          %v4666 = vunpack.c.l.b16 %v4564
          %v4667 = vunpack.c.h.b16 %v4564
          %v4668 = vunpack.c.l.b16 %v4565
          %v4669 = vunpack.c.h.b16 %v4565
          %v4670 = vunpack.c.l.b16 %v4566
          %v4671 = vunpack.c.h.b16 %v4566
          %v4672 = vunpack.c.l.b16 %v4567
          %v4673 = vunpack.c.h.b16 %v4567
          %v4674 = vunpack.c.l.b16 %v4568
          %v4675 = vunpack.c.h.b16 %v4568
          %v4676 = vunpack.c.l.b16 %v4569
          %v4677 = vunpack.c.h.b16 %v4569
          %v4678 = vpack.c.b16 %v4616, %v4614
          %v4679 = vpack.c.b16 %v4617, %v4615
          %v4680 = vpack.c.b16 %v4620, %v4618
          %v4681 = vpack.c.b16 %v4621, %v4619
          %v4682 = vpack.c.b16 %v4624, %v4622
          %v4683 = vpack.c.b16 %v4625, %v4623
          %v4684 = vpack.c.b16 %v4628, %v4626
          %v4685 = vpack.c.b16 %v4629, %v4627
          %v4686 = vpack.c.b16 %v4632, %v4630
          %v4687 = vpack.c.b16 %v4633, %v4631
          %v4688 = vpack.c.b16 %v4636, %v4634
          %v4689 = vpack.c.b16 %v4637, %v4635
          %v4690 = vpack.c.b16 %v4640, %v4638
          %v4691 = vpack.c.b16 %v4641, %v4639
          %v4692 = vpack.c.b16 %v4644, %v4642
          %v4693 = vpack.c.b16 %v4645, %v4643
          %v4694 = vpack.c.b16 %v4648, %v4646
          %v4695 = vpack.c.b16 %v4649, %v4647
          %v4696 = vpack.c.b16 %v4652, %v4650
          %v4697 = vpack.c.b16 %v4653, %v4651
          %v4698 = vpack.c.b16 %v4656, %v4654
          %v4699 = vpack.c.b16 %v4657, %v4655
          %v4700 = vpack.c.b16 %v4660, %v4658
          %v4701 = vpack.c.b16 %v4661, %v4659
          %v4702 = vpack.c.b16 %v4664, %v4662
          %v4703 = vpack.c.b16 %v4665, %v4663
          %v4704 = vpack.c.b16 %v4668, %v4666
          %v4705 = vpack.c.b16 %v4669, %v4667
          %v4706 = vpack.c.b16 %v4672, %v4670
          %v4707 = vpack.c.b16 %v4673, %v4671
          %v4708 = vpack.c.b16 %v4676, %v4674
          %v4709 = vpack.c.b16 %v4677, %v4675
          %4742 = vmatprep.subr.bf16.mxu0 %v4679
          %4743 = vmatpush1.bf16.msra.mxu0 %v4678
          %4744 = vmatprep.subr.bf16.mxu0 %v4681
          %4745 = vmatpush1.bf16.msra.mxu0 %v4680
          %4746 = vmatprep.subr.bf16.mxu0 %v4683
          %4747 = vmatpush1.bf16.msra.mxu0 %v4682
          %4748 = vmatprep.subr.bf16.mxu0 %v4685
          %4749 = vmatpush1.bf16.msra.mxu0 %v4684
          %4750 = vmatprep.subr.bf16.mxu0 %v4687
          %4751 = vmatpush1.bf16.msra.mxu0 %v4686
          %4752 = vmatprep.subr.bf16.mxu0 %v4689
          %4753 = vmatpush1.bf16.msra.mxu0 %v4688
          %4754 = vmatprep.subr.bf16.mxu0 %v4691
          %4755 = vmatpush1.bf16.msra.mxu0 %v4690
          %4756 = vmatprep.subr.bf16.mxu0 %v4693
          %4757 = vmatpush1.bf16.msra.mxu0 %v4692
          %4758 = vmatprep.subr.bf16.mxu0 %v4695
          %4759 = vmatpush1.bf16.msra.mxu0 %v4694
          %4760 = vmatprep.subr.bf16.mxu0 %v4697
          %4761 = vmatpush1.bf16.msra.mxu0 %v4696
          %4762 = vmatprep.subr.bf16.mxu0 %v4699
          %4763 = vmatpush1.bf16.msra.mxu0 %v4698
          %4764 = vmatprep.subr.bf16.mxu0 %v4701
          %4765 = vmatpush1.bf16.msra.mxu0 %v4700
          %4766 = vmatprep.subr.bf16.mxu0 %v4703
          %4767 = vmatpush1.bf16.msra.mxu0 %v4702
          %4768 = vmatprep.subr.bf16.mxu0 %v4705
          %4769 = vmatpush1.bf16.msra.mxu0 %v4704
          %4770 = vmatprep.subr.bf16.mxu0 %v4707
          %4771 = vmatpush1.bf16.msra.mxu0 %v4706
          %4772 = vmatprep.subr.bf16.mxu0 %v4709
          %4773 = vmatpush1.bf16.msra.mxu0 %v4708
          %4774 = vmatprep.mubr.bf16.mxu0 %v4537
          %4775 = vmatmul.mubr.bf16.gmra.mrb[0].mxu0 %v4536
          %v4776 = vpop.f32.mrb[0].mxu0
          %v4777 = vadd.f32 %v4575, %v4776
          %v4778 = vpop.f32.mrb[0].mxu0
          %v4779 = vadd.f32 %v4579, %v4778
          %v4780 = vpop.f32.mrb[0].mxu0
          %v4781 = vadd.f32 %v4575, %v4780
          %v4782 = vpop.f32.mrb[0].mxu0
          %v4783 = vadd.f32 %v4579, %v4782
          %4784 = vdwg.mxu0
          %4785 = vst [vmem:[#allocation14] sm:$0xff] %v4777
          %4786 = vst [vmem:[#allocation14 + $0x8] sm:$0xff] %v4779
          %4787 = vst [vmem:[#allocation14 + $0x10] sm:$0xff] %v4781
          %4788 = vst [vmem:[#allocation14 + $0x18] sm:$0xff] %v4783
        $region84: #{tpu_custom_call.1} parent=47 // pred_fallthru
          _
        // Predicated region
        $region85: #{tpu_custom_call.1} parent=47 // pred_check
          %p4789 = pneg %p224
        $region86: #{tpu_custom_call.1} parent=47 // pred_check_branch
          %4791 = sbr.rel (%p4789) target = $region88
        $region87: #{tpu_custom_call.1} parent=47 // pred_region
          %s4793 = ssub.s32 512, 512
          %4794 = vsyncadd [#allocation5], %s4793
          %s4795 = smul.addr %s26, 4
          %s4796 = smul.addr %s4795, 128
          %s4797 = scalar_lea.hbm %s7, %s4796
          %s4798 = sshll.u32 [#allocation14], 4
          %s4799 = int_to_ptr.vmem [resolvable:$true] %s4798
          %4804 = dma.vmem_to_hbm [thread:$0]  %s4799, 512, %s4797, [#allocation5], 256, 256, 16
        $region88: #{tpu_custom_call.1} parent=47 // pred_fallthru
          _
        // Predicated region
        $region89: #{tpu_custom_call.1} parent=47 // pred_check
          %p4805 = pneg %p224
        $region90: #{tpu_custom_call.1} parent=47 // pred_check_branch
          %4807 = sbr.rel (%p4805) target = $region92
        $region91: #{tpu_custom_call.1} parent=47 // pred_region
          %4808 = dma.done [#allocation5], 512
        $region92: #{tpu_custom_call.1} parent=47 // pred_fallthru
          _
      $region48: #{tpu_custom_call.1} parent=5 // pred_fallthru
        _
      %p4809 = scmp.le.s32.totalorder 2, %s17
      // Predicated region
      $region93: #{tpu_custom_call.1} parent=5 // pred_check
        %p4810 = pneg %p4809
      $region94: #{tpu_custom_call.1} parent=5 // pred_check_branch
        %4812 = sbr.rel (%p4810) target = $region96
      $region95: #{tpu_custom_call.1} parent=5 // pred_region
        %s4813 = ssub.s32 %s17, 2
      $region96: #{tpu_custom_call.1} parent=5 // pred_fallthru
        _
    $region6: #{tpu_custom_call.1} parent=1 // loop_footer
      %s21 = sadd.s32 1, %s17
    $region7: #{tpu_custom_call.1} parent=1 // loop_footer_branch
      %16 = sbr.rel target = $region3
    $region8: #{tpu_custom_call.1} parent=1 // loop_exit
      _
    %4814 = vsyncpa [#allocation4], 1
    %s4815 = scalar_lea.sflag [#allocation4], 1
    %4816 = vsyncpa %s4815, 1
    %4817 = vsyncpa [#allocation7], 1
    %4818 = vsyncpa [#allocation13], 1
    %4819 = vsyncpa [#allocation5], 1
    %s4820 = scalar_lea.sflag [#allocation5], 1
    %4821 = vsyncpa %s4820, 1

</llo_original>
